<compile_context>
chip_gen: v7x
topology: tpu7x:2x2x1
jax: 0.10.0
libtpu: 0.0.40
codegen_flags: <defaults>
</compile_context>

<pallas_src>
import jax
import jax.numpy as jnp
from jax import lax
from jax.experimental import pallas as pl
from jax.experimental.pallas import tpu as pltpu


# ------------------------------ fused kernel --------------------------------

def _lenet_fused_kernel(x_ref, w1_ref, b1_ref, w2_ref, b2_ref,
                        wfc_ref, bfc_ref, out_ref):
    tb = out_ref.shape[0]

    # conv1 + the H-half of maxpool1 as ONE MXU matmul:
    #   LHS rows = (sample, pooled row hp), K = 6 image rows x 28 cols = 168
    #   out cols = (hpar, wpar)*192 + wpool*16 + oc                      (768)
    h1 = jnp.dot(x_ref[...], w1_ref[...], preferred_element_type=jnp.float32)
    h1 = jnp.maximum(h1 + b1_ref[...], 0.0)                       # (tb*12, 768)
    # maxpool1 = elementwise max over the four parity column blocks.
    p1 = jnp.maximum(jnp.maximum(h1[:, 0:192], h1[:, 192:384]),
                     jnp.maximum(h1[:, 384:576], h1[:, 576:768]))  # (tb*12, 192)

    # conv2 as ONE MXU matmul with ky folded into the contraction dim (K=960).
    p1_3d = p1.reshape(tb, 12, 192)
    lhs2 = jnp.concatenate([p1_3d[:, ky:ky + 8, :] for ky in range(5)],
                           axis=-1)                                # (tb, 8, 960)
    lhs2 = lhs2.reshape(tb * 8, 960).astype(jnp.bfloat16)
    h2 = jnp.dot(lhs2, w2_ref[...], preferred_element_type=jnp.float32)
    h2 = jnp.maximum(h2 + b2_ref[...], 0.0).reshape(tb, 8, 256)

    # maxpool2: W-pairs are the two column halves; H-pairs are adjacent rows.
    wp2 = jnp.maximum(h2[:, :, 0:128], h2[:, :, 128:256])          # (tb, 8, 128)
    p2 = jnp.concatenate(
        [jnp.max(wp2[:, 2 * i:2 * i + 2, :], axis=1) for i in range(4)],
        axis=1)                                                    # (tb, 512)

    # fc1: Linear(512, 10) padded to 128 lanes (unmasked dense stores).
    logits = jnp.dot(p2.astype(jnp.bfloat16), wfc_ref[...],
                     preferred_element_type=jnp.float32)
    out_ref[...] = logits + bfc_ref[...]                           # (tb, 128)


# ------------------------- weight repacking (JAX) ----------------------------

def _repack_weights(params):
    """Re-pack PyTorch-layout parameters into the folded matrices the fused
    kernel consumes (done once, in plain XLA)."""
    w1, b1, w2, b2, wfc, bfc = [jnp.asarray(p, jnp.float32) for p in params]

    # conv1 (+ maxpool1-H parity folded into columns):
    #   W1[j*28 + wi, hpar*384 + wpar*192 + wp*16 + oc]
    #     = w1[oc, 0, j - hpar, wi - (2*wp + wpar)]  inside 5x5 support, else 0
    w1k = w1[:, 0]                                          # (oc=16, ky=5, kx=5)
    j = jnp.arange(6).reshape(6, 1, 1, 1, 1)
    wi = jnp.arange(28).reshape(1, 28, 1, 1, 1)
    hpar = jnp.arange(2).reshape(1, 1, 2, 1, 1)
    wpar = jnp.arange(2).reshape(1, 1, 1, 2, 1)
    wp = jnp.arange(12).reshape(1, 1, 1, 1, 12)
    ky = j - hpar
    kx = wi - (2 * wp + wpar)
    valid = (ky >= 0) & (ky < 5) & (kx >= 0) & (kx < 5)     # (6,28,2,2,12)
    vals = w1k[:, jnp.clip(ky, 0, 4), jnp.clip(kx, 0, 4)]   # (16,6,28,2,2,12)
    vals = jnp.moveaxis(vals, 0, -1)                        # (6,28,2,2,12,16)
    w1p = jnp.where(valid[..., None], vals, 0.0).reshape(168, 768)
    b1p = jnp.tile(b1, 48).reshape(1, 768)

    # conv2 (ky folded into the contraction dim):
    #   W2[ky*192 + win*16 + ic, wpar*128 + wp2*32 + oc]
    #     = w2[oc, ic, ky, win - (2*wp2 + wpar)]  inside support, else 0
    w2t = jnp.transpose(w2, (2, 3, 1, 0))                   # (ky, kx, ic, oc)
    win = jnp.arange(12).reshape(12, 1, 1)
    wpar2 = jnp.arange(2).reshape(1, 2, 1)
    wp2 = jnp.arange(4).reshape(1, 1, 4)
    kx2 = win - (2 * wp2 + wpar2)                           # (12, 2, 4)
    valid2 = (kx2 >= 0) & (kx2 < 5)
    vals2 = w2t[:, jnp.clip(kx2, 0, 4)]                     # (5,12,2,4,16,32)
    vals2 = jnp.where(valid2[None, :, :, :, None, None], vals2, 0.0)
    w2p = jnp.transpose(vals2, (0, 1, 4, 2, 3, 5)).reshape(960, 256)
    b2p = jnp.tile(b2, 8).reshape(1, 256)

    # fc1: kernel flatten order is h*128 + w*32 + c; PyTorch's is c*16 + h*4 + w.
    # Lane-pad to 128 output columns for dense stores.
    wfc_r = jnp.transpose(wfc.reshape(10, 32, 4, 4), (2, 3, 1, 0)).reshape(512, 10)
    wfcp = jnp.pad(wfc_r, ((0, 0), (0, 118)))
    bfcp = jnp.pad(bfc.reshape(1, 10), ((0, 0), (0, 118)))

    return (w1p.astype(jnp.bfloat16), b1p,
            w2p.astype(jnp.bfloat16), b2p,
            wfcp.astype(jnp.bfloat16), bfcp)


# ------------------------------ model forward --------------------------------

def forward(x, params, *, tb=16):
    """x: (N, 1, 28, 28) float32 NCHW -> logits (N, 10).

    tb = batch tile (multiple of 8). 16 keeps >=2 even grid steps for N=32
    (v7x megacore); use 64 for large batches. Batch is zero-padded to tb."""
    assert tb % 8 == 0
    n = x.shape[0]
    n_pad = ((n + tb - 1) // tb) * tb

    w1p, b1p, w2p, b2p, wfcp, bfcp = _repack_weights(params)

    x2 = x[:, 0].astype(jnp.float32)                        # (N, 28, 28)
    if n_pad != n:
        x2 = jnp.pad(x2, ((0, n_pad - n), (0, 0), (0, 0)))
    # conv1 LHS: per pooled output row hp, the 6 contributing image rows
    # (2*hp .. 2*hp+5) concatenated along the lane axis -> (N*12, 168).
    x_prep = jnp.concatenate([x2[:, jj:jj + 24:2, :] for jj in range(6)],
                             axis=-1)                       # (N, 12, 168)
    x_prep = x_prep.reshape(n_pad * 12, 168).astype(jnp.bfloat16)

    out = pl.pallas_call(
        _lenet_fused_kernel,
        out_shape=jax.ShapeDtypeStruct((n_pad, 128), jnp.float32),
        grid=(n_pad // tb,),
        in_specs=[
            pl.BlockSpec((tb * 12, 168), lambda i: (i, 0)),  # images (batch tiled)
            pl.BlockSpec((168, 768), lambda i: (0, 0)),      # conv1+poolH weights
            pl.BlockSpec((1, 768), lambda i: (0, 0)),        # conv1 bias (tiled)
            pl.BlockSpec((960, 256), lambda i: (0, 0)),      # conv2 folded weights
            pl.BlockSpec((1, 256), lambda i: (0, 0)),        # conv2 bias (tiled)
            pl.BlockSpec((512, 128), lambda i: (0, 0)),      # fc weights (padded)
            pl.BlockSpec((1, 128), lambda i: (0, 0)),        # fc bias (padded)
        ],
        out_specs=pl.BlockSpec((tb, 128), lambda i: (i, 0)),
        compiler_params=pltpu.CompilerParams(
            dimension_semantics=("parallel",),
            vmem_limit_bytes=32 << 20),
    )(x_prep, w1p, b1p, w2p, b2p, wfcp, bfcp)
    return out[:n, :10]


# -------------------------- params / XLA reference ---------------------------

def init_params(key):
    """Deterministic init mimicking PyTorch's default U(-1/sqrt(fan_in), ...)."""
    ks = jax.random.split(key, 6)

    def u(k, shape, fan_in):
        bound = 1.0 / jnp.sqrt(jnp.float32(fan_in))
        return jax.random.uniform(k, shape, jnp.float32, -bound, bound)

    w1 = u(ks[0], (16, 1, 5, 5), 1 * 5 * 5)
    b1 = u(ks[1], (16,), 1 * 5 * 5)
    w2 = u(ks[2], (32, 16, 5, 5), 16 * 5 * 5)
    b2 = u(ks[3], (32,), 16 * 5 * 5)
    wfc = u(ks[4], (10, 512), 512)
    bfc = u(ks[5], (10,), 512)
    return w1, b1, w2, b2, wfc, bfc


def ref_forward(x, params):
    """Pure-JAX (XLA) reference of the PyTorch forward, NCHW throughout."""
    w1, b1, w2, b2, wfc, bfc = params
    dn = ("NCHW", "OIHW", "NCHW")
    o = lax.conv_general_dilated(x, w1, (1, 1), "VALID", dimension_numbers=dn)
    o = jnp.maximum(o + b1[None, :, None, None], 0.0)
    o = lax.reduce_window(o, -jnp.inf, lax.max, (1, 1, 2, 2), (1, 1, 2, 2), "VALID")
    o = lax.conv_general_dilated(o, w2, (1, 1), "VALID", dimension_numbers=dn)
    o = jnp.maximum(o + b2[None, :, None, None], 0.0)
    o = lax.reduce_window(o, -jnp.inf, lax.max, (1, 1, 2, 2), (1, 1, 2, 2), "VALID")
    o = o.reshape(o.shape[0], -1)
    return o @ wfc.T + bfc


# ----------------------------------- main ------------------------------------

if __name__ == "__main__":
    key = jax.random.PRNGKey(0)
    kx_, kp_ = jax.random.split(key)

    N = 32  # the module's batch_size; TB=16 -> 2 grid steps
    x = jax.random.normal(kx_, (N, 1, 28, 28), dtype=jnp.float32)
    params = init_params(kp_)

    out = jax.block_until_ready(jax.jit(forward)(x, params))
    assert out.shape == (N, 10), out.shape

    # Tight check: reference fed the same bf16-rounded matmul inputs
    # (biases stay f32, matching the kernel's precision policy).
    def q(a):
        return a.astype(jnp.bfloat16).astype(jnp.float32)

    w1, b1, w2, b2, wfc, bfc = params
    ref_q = ref_forward(q(x), (q(w1), b1, q(w2), b2, q(wfc), bfc))
    assert jnp.allclose(out, ref_q, rtol=3e-2, atol=3e-2), (
        "mismatch vs bf16-quantized reference, max abs diff = "
        f"{float(jnp.max(jnp.abs(out - ref_q)))}")

    # Loose check against the full-f32 reference (bf16 MXU inputs in kernel).
    ref = ref_forward(x, params)
    assert jnp.allclose(out, ref, rtol=1e-1, atol=1e-1), (
        "mismatch vs f32 reference, max abs diff = "
        f"{float(jnp.max(jnp.abs(out - ref)))}")

    print("KERNEL_OK")
</pallas_src>

<mosaic_0001>
module attributes {stable_mosaic.version = 11 : i64} {
  func.func @_lenet_fused_kernel(%arg0: i32, %arg1: memref<192x168xbf16, #tpu.memory_space<vmem>>, %arg2: memref<168x768xbf16, #tpu.memory_space<vmem>>, %arg3: memref<1x768xf32, #tpu.memory_space<vmem>>, %arg4: memref<960x256xbf16, #tpu.memory_space<vmem>>, %arg5: memref<1x256xf32, #tpu.memory_space<vmem>>, %arg6: memref<512x128xbf16, #tpu.memory_space<vmem>>, %arg7: memref<1x128xf32, #tpu.memory_space<vmem>>, %arg8: memref<16x128xf32, #tpu.memory_space<vmem>>) attributes {dimension_semantics = [#tpu.dimension_semantics<parallel>], iteration_bounds = array<i64: 2>, scalar_prefetch = 0 : i64, scratch_operands = 0 : i64, tpu.core_type = #tpu.core_type<tc>, window_params = [{transform_indices = @transform_0, window_bounds = array<i64: 192, 168>}, {pipeline_mode = #tpu.pipeline_mode<synchronous>, transform_indices = @transform_1, window_bounds = array<i64: 168, 768>}, {pipeline_mode = #tpu.pipeline_mode<synchronous>, transform_indices = @transform_2, window_bounds = array<i64: 1, 768>}, {pipeline_mode = #tpu.pipeline_mode<synchronous>, transform_indices = @transform_3, window_bounds = array<i64: 960, 256>}, {pipeline_mode = #tpu.pipeline_mode<synchronous>, transform_indices = @transform_4, window_bounds = array<i64: 1, 256>}, {pipeline_mode = #tpu.pipeline_mode<synchronous>, transform_indices = @transform_5, window_bounds = array<i64: 512, 128>}, {pipeline_mode = #tpu.pipeline_mode<synchronous>, transform_indices = @transform_6, window_bounds = array<i64: 1, 128>}, {transform_indices = @transform_7, window_bounds = array<i64: 16, 128>}]} {
    %c0 = arith.constant 0 : index
    %c0_0 = arith.constant 0 : index
    %0 = vector.load %arg1[%c0, %c0_0] : memref<192x168xbf16, #tpu.memory_space<vmem>>, vector<192x168xbf16>
    %c0_1 = arith.constant 0 : index
    %c0_2 = arith.constant 0 : index
    %1 = vector.load %arg2[%c0_1, %c0_2] : memref<168x768xbf16, #tpu.memory_space<vmem>>, vector<168x768xbf16>
    %cst = arith.constant dense<0.000000e+00> : vector<192x768xf32>
    %2 = tpu.matmul %0, %1, %cst {dimension_numbers = #tpu.dot_dimension_numbers<[1], [0], [0], [1], [0, 0, 1, 1], [], []>} : vector<192x168xbf16>, vector<168x768xbf16>, vector<192x768xf32> -> vector<192x768xf32>
    %c0_3 = arith.constant 0 : index
    %c0_4 = arith.constant 0 : index
    %3 = vector.load %arg3[%c0_3, %c0_4] : memref<1x768xf32, #tpu.memory_space<vmem>>, vector<1x768xf32>
    %4 = vector.broadcast %3 : vector<1x768xf32> to vector<192x768xf32>
    %5 = arith.addf %2, %4 : vector<192x768xf32>
    %cst_5 = arith.constant 0.000000e+00 : f32
    %6 = vector.broadcast %cst_5 : f32 to vector<192x768xf32>
    %7 = arith.maximumf %5, %6 : vector<192x768xf32>
    %8 = vector.extract_strided_slice %7 {offsets = [0, 0], sizes = [192, 192], strides = [1, 1]} : vector<192x768xf32> to vector<192x192xf32>
    %9 = vector.extract_strided_slice %7 {offsets = [0, 192], sizes = [192, 192], strides = [1, 1]} : vector<192x768xf32> to vector<192x192xf32>
    %10 = arith.maximumf %8, %9 : vector<192x192xf32>
    %11 = vector.extract_strided_slice %7 {offsets = [0, 384], sizes = [192, 192], strides = [1, 1]} : vector<192x768xf32> to vector<192x192xf32>
    %12 = vector.extract_strided_slice %7 {offsets = [0, 576], sizes = [192, 192], strides = [1, 1]} : vector<192x768xf32> to vector<192x192xf32>
    %13 = arith.maximumf %11, %12 : vector<192x192xf32>
    %14 = arith.maximumf %10, %13 : vector<192x192xf32>
    %15 = vector.shape_cast %14 : vector<192x192xf32> to vector<16x12x192xf32>
    %16 = vector.extract_strided_slice %15 {offsets = [0, 0, 0], sizes = [16, 8, 192], strides = [1, 1, 1]} : vector<16x12x192xf32> to vector<16x8x192xf32>
    %17 = vector.extract_strided_slice %15 {offsets = [0, 1, 0], sizes = [16, 8, 192], strides = [1, 1, 1]} : vector<16x12x192xf32> to vector<16x8x192xf32>
    %18 = vector.extract_strided_slice %15 {offsets = [0, 2, 0], sizes = [16, 8, 192], strides = [1, 1, 1]} : vector<16x12x192xf32> to vector<16x8x192xf32>
    %19 = vector.extract_strided_slice %15 {offsets = [0, 3, 0], sizes = [16, 8, 192], strides = [1, 1, 1]} : vector<16x12x192xf32> to vector<16x8x192xf32>
    %20 = vector.extract_strided_slice %15 {offsets = [0, 4, 0], sizes = [16, 8, 192], strides = [1, 1, 1]} : vector<16x12x192xf32> to vector<16x8x192xf32>
    %21 = tpu.concatenate %16, %17, %18, %19, %20 in 2 : vector<16x8x192xf32>, vector<16x8x192xf32>, vector<16x8x192xf32>, vector<16x8x192xf32>, vector<16x8x192xf32> -> vector<16x8x960xf32>
    %22 = vector.shape_cast %21 : vector<16x8x960xf32> to vector<128x960xf32>
    %23 = arith.truncf %22 : vector<128x960xf32> to vector<128x960xbf16>
    %c0_6 = arith.constant 0 : index
    %c0_7 = arith.constant 0 : index
    %24 = vector.load %arg4[%c0_6, %c0_7] : memref<960x256xbf16, #tpu.memory_space<vmem>>, vector<960x256xbf16>
    %cst_8 = arith.constant dense<0.000000e+00> : vector<128x256xf32>
    %25 = tpu.matmul %23, %24, %cst_8 {dimension_numbers = #tpu.dot_dimension_numbers<[1], [0], [0], [1], [0, 0, 1, 1], [], []>} : vector<128x960xbf16>, vector<960x256xbf16>, vector<128x256xf32> -> vector<128x256xf32>
    %c0_9 = arith.constant 0 : index
    %c0_10 = arith.constant 0 : index
    %26 = vector.load %arg5[%c0_9, %c0_10] : memref<1x256xf32, #tpu.memory_space<vmem>>, vector<1x256xf32>
    %27 = vector.broadcast %26 : vector<1x256xf32> to vector<128x256xf32>
    %28 = arith.addf %25, %27 : vector<128x256xf32>
    %cst_11 = arith.constant 0.000000e+00 : f32
    %29 = vector.broadcast %cst_11 : f32 to vector<128x256xf32>
    %30 = arith.maximumf %28, %29 : vector<128x256xf32>
    %31 = vector.shape_cast %30 : vector<128x256xf32> to vector<16x8x256xf32>
    %32 = vector.extract_strided_slice %31 {offsets = [0, 0, 0], sizes = [16, 8, 128], strides = [1, 1, 1]} : vector<16x8x256xf32> to vector<16x8x128xf32>
    %33 = vector.extract_strided_slice %31 {offsets = [0, 0, 128], sizes = [16, 8, 128], strides = [1, 1, 1]} : vector<16x8x256xf32> to vector<16x8x128xf32>
    %34 = arith.maximumf %32, %33 : vector<16x8x128xf32>
    %35 = vector.extract_strided_slice %34 {offsets = [0, 0, 0], sizes = [16, 2, 128], strides = [1, 1, 1]} : vector<16x8x128xf32> to vector<16x2x128xf32>
    %cst_12 = arith.constant dense<0xFF800000> : vector<16x128xf32>
    %36 = vector.multi_reduction <maximumf>, %35, %cst_12 [1] : vector<16x2x128xf32> to vector<16x128xf32>
    %37 = vector.extract_strided_slice %34 {offsets = [0, 2, 0], sizes = [16, 2, 128], strides = [1, 1, 1]} : vector<16x8x128xf32> to vector<16x2x128xf32>
    %cst_13 = arith.constant dense<0xFF800000> : vector<16x128xf32>
    %38 = vector.multi_reduction <maximumf>, %37, %cst_13 [1] : vector<16x2x128xf32> to vector<16x128xf32>
    %39 = vector.extract_strided_slice %34 {offsets = [0, 4, 0], sizes = [16, 2, 128], strides = [1, 1, 1]} : vector<16x8x128xf32> to vector<16x2x128xf32>
    %cst_14 = arith.constant dense<0xFF800000> : vector<16x128xf32>
    %40 = vector.multi_reduction <maximumf>, %39, %cst_14 [1] : vector<16x2x128xf32> to vector<16x128xf32>
    %41 = vector.extract_strided_slice %34 {offsets = [0, 6, 0], sizes = [16, 2, 128], strides = [1, 1, 1]} : vector<16x8x128xf32> to vector<16x2x128xf32>
    %cst_15 = arith.constant dense<0xFF800000> : vector<16x128xf32>
    %42 = vector.multi_reduction <maximumf>, %41, %cst_15 [1] : vector<16x2x128xf32> to vector<16x128xf32>
    %43 = tpu.concatenate %36, %38, %40, %42 in 1 : vector<16x128xf32>, vector<16x128xf32>, vector<16x128xf32>, vector<16x128xf32> -> vector<16x512xf32>
    %44 = arith.truncf %43 : vector<16x512xf32> to vector<16x512xbf16>
    %c0_16 = arith.constant 0 : index
    %c0_17 = arith.constant 0 : index
    %45 = vector.load %arg6[%c0_16, %c0_17] : memref<512x128xbf16, #tpu.memory_space<vmem>>, vector<512x128xbf16>
    %cst_18 = arith.constant dense<0.000000e+00> : vector<16x128xf32>
    %46 = tpu.matmul %44, %45, %cst_18 {dimension_numbers = #tpu.dot_dimension_numbers<[1], [0], [0], [1], [0, 0, 1, 1], [], []>} : vector<16x512xbf16>, vector<512x128xbf16>, vector<16x128xf32> -> vector<16x128xf32>
    %c0_19 = arith.constant 0 : index
    %c0_20 = arith.constant 0 : index
    %47 = vector.load %arg7[%c0_19, %c0_20] : memref<1x128xf32, #tpu.memory_space<vmem>>, vector<1x128xf32>
    %48 = vector.broadcast %47 : vector<1x128xf32> to vector<16x128xf32>
    %49 = arith.addf %46, %48 : vector<16x128xf32>
    %c0_21 = arith.constant 0 : index
    %c0_22 = arith.constant 0 : index
    %50 = vector.load %arg8[%c0_21, %c0_22] : memref<16x128xf32, #tpu.memory_space<vmem>>, vector<16x128xf32>
    tpu.vector_store %arg8[%c0_21, %c0_22], %49 {strides = array<i32>} : memref<16x128xf32, #tpu.memory_space<vmem>>, vector<16x128xf32>,
    return
  }
  func.func @transform_0(%arg0: i32) -> (i32, i32) {
    %c0_i32 = arith.constant 0 : i32
    %c0_i32_0 = arith.constant 0 : i32
    return %arg0, %c0_i32 : i32, i32
  }
  func.func @transform_1(%arg0: i32) -> (i32, i32) {
    %c0_i32 = arith.constant 0 : i32
    %c0_i32_0 = arith.constant 0 : i32
    %c0_i32_1 = arith.constant 0 : i32
    return %c0_i32, %c0_i32_0 : i32, i32
  }
  func.func @transform_2(%arg0: i32) -> (i32, i32) {
    %c0_i32 = arith.constant 0 : i32
    %c0_i32_0 = arith.constant 0 : i32
    %c0_i32_1 = arith.constant 0 : i32
    return %c0_i32, %c0_i32_0 : i32, i32
  }
  func.func @transform_3(%arg0: i32) -> (i32, i32) {
    %c0_i32 = arith.constant 0 : i32
    %c0_i32_0 = arith.constant 0 : i32
    %c0_i32_1 = arith.constant 0 : i32
    return %c0_i32, %c0_i32_0 : i32, i32
  }
  func.func @transform_4(%arg0: i32) -> (i32, i32) {
    %c0_i32 = arith.constant 0 : i32
    %c0_i32_0 = arith.constant 0 : i32
    %c0_i32_1 = arith.constant 0 : i32
    return %c0_i32, %c0_i32_0 : i32, i32
  }
  func.func @transform_5(%arg0: i32) -> (i32, i32) {
    %c0_i32 = arith.constant 0 : i32
    %c0_i32_0 = arith.constant 0 : i32
    %c0_i32_1 = arith.constant 0 : i32
    return %c0_i32, %c0_i32_0 : i32, i32
  }
  func.func @transform_6(%arg0: i32) -> (i32, i32) {
    %c0_i32 = arith.constant 0 : i32
    %c0_i32_0 = arith.constant 0 : i32
    %c0_i32_1 = arith.constant 0 : i32
    return %c0_i32, %c0_i32_0 : i32, i32
  }
  func.func @transform_7(%arg0: i32) -> (i32, i32) {
    %c0_i32 = arith.constant 0 : i32
    %c0_i32_0 = arith.constant 0 : i32
    return %arg0, %c0_i32 : i32, i32
  }
}

</mosaic_0001>

<llo_original>
// kernel: tile.13
$region0: #{tile.13}
  #allocation0 [shape = 's32[1]{0}', space=sflag, size = 0x4, scoped, tag = 'scoped memory for tile.13']
  %s0 = inlined_call_operand.vmem [shape: f32[16], index: 0, kind: input, shape index: {}]
  %s1 = inlined_call_operand.vmem [shape: f32[48,16], index: 1, kind: output, shape index: {}]
  // Predicated region
  $region2: #{tile.13} parent=0 // pred_check
    _
  $region3: #{tile.13} parent=0 // pred_check_branch
    %3 = sbr.rel (0) target = $region5
  $region4: #{tile.13} parent=0 // pred_region
    _
  $region5: #{tile.13} parent=0 // pred_fallthru
    _
  %v4 = vld [vmem:[%s0] ss:$0 sm:$0xff]
  %5 = vst [vmem:[%s1] sm:$0xff] %v4
  %s6 = scalar_lea.vmem %s1, 8
  %7 = vst [vmem:[%s6] sm:$0xff] %v4
  %s8 = scalar_lea.vmem %s1, 16
  %9 = vst [vmem:[%s8] sm:$0xff] %v4
  %s10 = scalar_lea.vmem %s1, 24
  %11 = vst [vmem:[%s10] sm:$0xff] %v4
  %s12 = scalar_lea.vmem %s1, 32
  %13 = vst [vmem:[%s12] sm:$0xff] %v4
  %s14 = scalar_lea.vmem %s1, 40
  %15 = vst [vmem:[%s14] sm:$0xff] %v4

// kernel: tile.14
$region0: #{tile.14}
  %s0 = inlined_call_operand.vmem [shape: f32[48,16], index: 0, kind: input, shape index: {}]
  %s1 = inlined_call_operand.vmem [shape: f32[1,768], index: 1, kind: output, shape index: {}]
  $region1: #{tile.14} parent=0
    #allocation0 [shape = 'u8[24576]{0}', space=vmem, size = 0x6000, scoped, tag = 'scoped mem for output reshape']
    %v2 = vld [vmem:[%s0] ss:$8 sm:$0xf]
    %s3 = smov 48
    %v4 = vld [vmem:[%s0] ss:$8 sm:%s3]
    %vm5 = vcmask 1045508
    %v6 = vsel %vm5, %v4, %v2
    %vm7 = vcmask 130048
    %8 = vst.msk [vmem:[#allocation0] ss:$8 sm:$0xf] %vm7, %v6
    %9 = vst.msk [vmem:[#allocation0] ss:$8 sm:$0x30] %vm7, %v6
    %s10 = scalar_lea.vmem %s0, 7
    %v11 = vld [vmem:[%s10] ss:$8 sm:$0xf]
    %s12 = scalar_lea.vmem %s0, 7
    %s13 = smov 48
    %v14 = vld [vmem:[%s12] ss:$8 sm:%s13]
    %vm15 = vcmask 1045508
    %v16 = vsel %vm15, %v14, %v11
    %17 = vrot.lane.b32.xlu0 %v16, 112
    %v18 = vpop.permute.xlu0 %17
    %vm19 = vcmask 1048448
    %20 = vst.msk [vmem:[#allocation0] ss:$8 sm:$0xf] %vm19, %v18
    %21 = vst.msk [vmem:[#allocation0] ss:$8 sm:$0x30] %vm19, %v18
    %s22 = scalar_lea.vmem %s0, 6
    %v23 = vld [vmem:[%s22] ss:$8 sm:$0xf]
    %s24 = scalar_lea.vmem %s0, 6
    %s25 = smov 48
    %v26 = vld [vmem:[%s24] ss:$8 sm:%s25]
    %vm27 = vcmask 1045508
    %v28 = vsel %vm27, %v26, %v23
    %29 = vrot.lane.b32.xlu0 %v28, 96
    %v30 = vpop.permute.xlu0 %29
    %vm31 = vcmask 917248
    %32 = vst.msk [vmem:[#allocation0] ss:$8 sm:$0xf] %vm31, %v30
    %33 = vst.msk [vmem:[#allocation0] ss:$8 sm:$0x30] %vm31, %v30
    %s34 = scalar_lea.vmem %s0, 5
    %v35 = vld [vmem:[%s34] ss:$8 sm:$0xf]
    %s36 = scalar_lea.vmem %s0, 5
    %s37 = smov 48
    %v38 = vld [vmem:[%s36] ss:$8 sm:%s37]
    %vm39 = vcmask 1045508
    %v40 = vsel %vm39, %v38, %v35
    %41 = vrot.lane.b32.xlu0 %v40, 80
    %v42 = vpop.permute.xlu0 %41
    %vm43 = vcmask 786048
    %44 = vst.msk [vmem:[#allocation0] ss:$8 sm:$0xf] %vm43, %v42
    %45 = vst.msk [vmem:[#allocation0] ss:$8 sm:$0x30] %vm43, %v42
    %s46 = scalar_lea.vmem %s0, 4
    %v47 = vld [vmem:[%s46] ss:$8 sm:$0xf]
    %s48 = scalar_lea.vmem %s0, 4
    %s49 = smov 48
    %v50 = vld [vmem:[%s48] ss:$8 sm:%s49]
    %vm51 = vcmask 1045508
    %v52 = vsel %vm51, %v50, %v47
    %53 = vrot.lane.b32.xlu0 %v52, 64
    %v54 = vpop.permute.xlu0 %53
    %vm55 = vcmask 654848
    %56 = vst.msk [vmem:[#allocation0] ss:$8 sm:$0xf] %vm55, %v54
    %57 = vst.msk [vmem:[#allocation0] ss:$8 sm:$0x30] %vm55, %v54
    %s58 = scalar_lea.vmem %s0, 3
    %v59 = vld [vmem:[%s58] ss:$8 sm:$0xf]
    %s60 = scalar_lea.vmem %s0, 3
    %s61 = smov 48
    %v62 = vld [vmem:[%s60] ss:$8 sm:%s61]
    %vm63 = vcmask 1045508
    %v64 = vsel %vm63, %v62, %v59
    %65 = vrot.lane.b32.xlu0 %v64, 48
    %v66 = vpop.permute.xlu0 %65
    %vm67 = vcmask 523648
    %68 = vst.msk [vmem:[#allocation0] ss:$8 sm:$0xf] %vm67, %v66
    %69 = vst.msk [vmem:[#allocation0] ss:$8 sm:$0x30] %vm67, %v66
    %s70 = scalar_lea.vmem %s0, 2
    %v71 = vld [vmem:[%s70] ss:$8 sm:$0xf]
    %s72 = scalar_lea.vmem %s0, 2
    %s73 = smov 48
    %v74 = vld [vmem:[%s72] ss:$8 sm:%s73]
    %vm75 = vcmask 1045508
    %v76 = vsel %vm75, %v74, %v71
    %77 = vrot.lane.b32.xlu0 %v76, 32
    %v78 = vpop.permute.xlu0 %77
    %vm79 = vcmask 392448
    %80 = vst.msk [vmem:[#allocation0] ss:$8 sm:$0xf] %vm79, %v78
    %81 = vst.msk [vmem:[#allocation0] ss:$8 sm:$0x30] %vm79, %v78
    %s82 = scalar_lea.vmem %s0, 1
    %v83 = vld [vmem:[%s82] ss:$8 sm:$0xf]
    %s84 = scalar_lea.vmem %s0, 1
    %s85 = smov 48
    %v86 = vld [vmem:[%s84] ss:$8 sm:%s85]
    %vm87 = vcmask 1045508
    %v88 = vsel %vm87, %v86, %v83
    %89 = vrot.lane.b32.xlu0 %v88, 16
    %v90 = vpop.permute.xlu0 %89
    %vm91 = vcmask 261248
    %92 = vst.msk [vmem:[#allocation0] ss:$8 sm:$0xf] %vm91, %v90
    %93 = vst.msk [vmem:[#allocation0] ss:$8 sm:$0x30] %vm91, %v90
    %s95 = sshllo.u32 0, 1
    %v97 = vld [vmem:[#allocation0] sm:%s95]
    %s98 = sshllo.u32 0, 1
    %99 = vst [vmem:[%s1] sm:%s98] %v97
    %s100 = scalar_lea.vmem [#allocation0], 8
    %v101 = vld [vmem:[%s100] sm:%s95]
    %s102 = sshllo.u32 0, 1
    %s103 = scalar_lea.vmem %s1, 1
    %104 = vst [vmem:[%s103] sm:%s102] %v101
    %s105 = scalar_lea.vmem [#allocation0], 16
    %v106 = vld [vmem:[%s105] sm:%s95]
    %s107 = sshllo.u32 0, 1
    %s108 = smul.addr 1, 2
    %s109 = scalar_lea.vmem %s1, %s108
    %110 = vst [vmem:[%s109] sm:%s107] %v106
    %s111 = scalar_lea.vmem [#allocation0], 24
    %v112 = vld [vmem:[%s111] sm:%s95]
    %s113 = sshllo.u32 0, 1
    %s114 = smul.addr 1, 3
    %s115 = scalar_lea.vmem %s1, %s114
    %116 = vst [vmem:[%s115] sm:%s113] %v112
    %s117 = scalar_lea.vmem [#allocation0], 32
    %v118 = vld [vmem:[%s117] sm:%s95]
    %s119 = sshllo.u32 0, 1
    %s120 = smul.addr 1, 4
    %s121 = scalar_lea.vmem %s1, %s120
    %122 = vst [vmem:[%s121] sm:%s119] %v118
    %s123 = scalar_lea.vmem [#allocation0], 40
    %v124 = vld [vmem:[%s123] sm:%s95]
    %s125 = sshllo.u32 0, 1
    %s126 = smul.addr 1, 5
    %s127 = scalar_lea.vmem %s1, %s126
    %128 = vst [vmem:[%s127] sm:%s125] %v124

// kernel: tile.18
$region0: #{tile.18}
  #allocation0 [shape = 's32[1]{0}', space=sflag, size = 0x4, scoped, tag = 'scoped memory for tile.18']
  %s0 = inlined_call_operand.vmem [shape: f32[32], index: 0, kind: input, shape index: {}]
  %s1 = inlined_call_operand.vmem [shape: f32[8,32], index: 1, kind: output, shape index: {}]
  // Predicated region
  $region2: #{tile.18} parent=0 // pred_check
    _
  $region3: #{tile.18} parent=0 // pred_check_branch
    %3 = sbr.rel (0) target = $region5
  $region4: #{tile.18} parent=0 // pred_region
    _
  $region5: #{tile.18} parent=0 // pred_fallthru
    _
  %v4 = vld [vmem:[%s0] ss:$0 sm:$0xff]
  %5 = vst [vmem:[%s1] sm:$0xff] %v4

// kernel: tile.19
$region0: #{tile.19}
  %s0 = inlined_call_operand.vmem [shape: f32[8,32], index: 0, kind: input, shape index: {}]
  %s1 = inlined_call_operand.vmem [shape: f32[1,256], index: 1, kind: output, shape index: {}]
  $region1: #{tile.19} parent=0
    #allocation0 [shape = 'u8[8192]{0}', space=vmem, size = 0x2000, scoped, tag = 'scoped mem for output reshape']
    %s2 = smov 3
    %v3 = vld [vmem:[%s0] ss:$4 sm:%s2]
    %vm4 = vcmask 261120
    %5 = vst.msk [vmem:[#allocation0] ss:$8 sm:$0x3] %vm4, %v3
    %s6 = scalar_lea.vmem %s0, 3
    %s7 = smov 3
    %v8 = vld [vmem:[%s6] ss:$4 sm:%s7]
    %9 = vrot.lane.b32.xlu0 %v8, 96
    %v10 = vpop.permute.xlu0 %9
    %vm11 = vcmask 1048320
    %12 = vst.msk [vmem:[#allocation0] ss:$8 sm:$0x3] %vm11, %v10
    %s13 = scalar_lea.vmem %s0, 2
    %s14 = smov 3
    %v15 = vld [vmem:[%s13] ss:$4 sm:%s14]
    %16 = vrot.lane.b32.xlu0 %v15, 64
    %v17 = vpop.permute.xlu0 %16
    %vm18 = vcmask 785920
    %19 = vst.msk [vmem:[#allocation0] ss:$8 sm:$0x3] %vm18, %v17
    %s20 = scalar_lea.vmem %s0, 1
    %s21 = smov 3
    %v22 = vld [vmem:[%s20] ss:$4 sm:%s21]
    %23 = vrot.lane.b32.xlu0 %v22, 32
    %v24 = vpop.permute.xlu0 %23
    %vm25 = vcmask 523520
    %26 = vst.msk [vmem:[#allocation0] ss:$8 sm:$0x3] %vm25, %v24
    %s28 = sshllo.u32 0, 1
    %v30 = vld [vmem:[#allocation0] sm:%s28]
    %s31 = sshllo.u32 0, 1
    %32 = vst [vmem:[%s1] sm:%s31] %v30
    %s33 = scalar_lea.vmem [#allocation0], 8
    %v34 = vld [vmem:[%s33] sm:%s28]
    %s35 = sshllo.u32 0, 1
    %s36 = scalar_lea.vmem %s1, 1
    %37 = vst [vmem:[%s36] sm:%s35] %v34

// kernel: forward.1
$region0: #{forward.1}
  #allocation0 [shape = 'u32[]', space=smem, size = 0x4, offset = 0x4, fixed_abs, tag = 'smem constant byte address 0x4 - core index']
  #allocation1 [shape = 'u32[144,128]{1,0:T(1,128)}', space=vmem, size = 0x12000, scoped, tag = 'internal scratch']
  %s0 = inlined_call_operand.vmem [shape: bf16[384,168], index: 0, kind: input, shape index: {}]
  %s1 = inlined_call_operand.vmem [shape: bf16[168,768], index: 1, kind: input, shape index: {}]
  %s2 = inlined_call_operand.vmem [shape: f32[1,768], index: 2, kind: input, shape index: {}]
  %s3 = inlined_call_operand.vmem [shape: bf16[960,256], index: 3, kind: input, shape index: {}]
  %s4 = inlined_call_operand.vmem [shape: f32[1,256], index: 4, kind: input, shape index: {}]
  %s5 = inlined_call_operand.vmem [shape: bf16[512,128], index: 5, kind: input, shape index: {}]
  %s6 = inlined_call_operand.vmem [shape: f32[1,128], index: 6, kind: input, shape index: {}]
  %s7 = inlined_call_operand.vmem [shape: f32[32,128], index: 7, kind: output, shape index: {}]
  %s8 = sld [smem:[#allocation0]]
  $region61: #{forward.1} parent=0
    _
  %s10 = ssub.s32 1, %s8
  %s11 = scalar_select 0, %s10, %s8
  loop: start=0, step=1, limit=4
  $region2: #{forward.1} parent=0 // loop_pre_header
    _
  $region3: #{forward.1} parent=0 // loop_header
    %s13 = sphi 0, %s17
    %p14 = scmp.ge.s32.totalorder %s13, 4
    %s23 = sphi 0, %s25
    %s26 = sphi 0, %s23
    %s27 = sphi 0, %s26
    %s43 = sphi 0, %s27
    %s47 = sphi 0, %s47
    %s49 = sphi 0, %s47
    %s50 = sphi 0, %s49
    %s64 = sphi 0, %s50
    %s68 = sphi 0, %s68
    %s70 = sphi 0, %s68
    %s71 = sphi 0, %s70
    %s85 = sphi 0, %s71
    %s89 = sphi 0, %s89
    %s91 = sphi 0, %s89
    %s92 = sphi 0, %s91
    %s106 = sphi 0, %s92
    %s110 = sphi 0, %s110
    %s112 = sphi 0, %s110
    %s113 = sphi 0, %s112
    %s127 = sphi 0, %s113
    %s131 = sphi 0, %s131
    %s133 = sphi 0, %s131
    %s134 = sphi 0, %s133
    %s148 = sphi 0, %s134
    %s152 = sphi 0, %s152
    %s154 = sphi 0, %s152
    %s155 = sphi 0, %s154
    %s169 = sphi 0, %s155
    %s175 = sphi 0, %s177
    %s178 = sphi 0, %s175
    %s179 = sphi 0, %s178
    %s195 = sphi 0, %s179
  $region4: #{forward.1} parent=0 // loop_header_branch
    %16 = sbr.rel (%p14) target = $region8
  $region5: #{forward.1} parent=0 // loop_body
    %s18 = ssub.s32 %s13, 1
    %s19 = ssub.s32 %s13, 2
    %s20 = sadd.s32 %s13, 1
    %s21 = ssub.s32 %s13, %s20
    %p22 = scmp.eq.s32.totalorder %s21, 0
    %s24 = sadd.s32 %s23, 1
    %s25 = scalar_select %p22, %s23, %s24
    %p28 = pneg %p22
    %p29 = scmp.eq.s32.totalorder %s13, 1
    %p30 = por %p28, %p29
    %p31 = scmp.ne.s32.totalorder %s23, %s26
    %p32 = scmp.eq.s32.totalorder %s13, 0
    %p33 = por %p31, %p32
    %p34 = scmp.ne.s32.totalorder %s23, %s26
    %p35 = scmp.eq.s32.totalorder %s18, 1
    %p36 = por %p34, %p35
    %p37 = scmp.ne.s32.totalorder %s26, %s27
    %p38 = scmp.eq.s32.totalorder %s18, 0
    %p39 = por %p37, %p38
    %p40 = scmp.ne.s32.totalorder %s26, %s27
    %p41 = scmp.eq.s32.totalorder %s19, 1
    %p42 = por %p40, %p41
    %p44 = scmp.ne.s32.totalorder %s27, %s43
    %p45 = scmp.eq.s32.totalorder %s19, 0
    %p46 = por %p44, %p45
    %s48 = sadd.s32 %s47, 1
    %p51 = scmp.eq.s32.totalorder %s13, 1
    %p52 = scmp.ne.s32.totalorder %s47, %s49
    %p53 = scmp.eq.s32.totalorder %s13, 0
    %p54 = por %p52, %p53
    %p55 = scmp.ne.s32.totalorder %s47, %s49
    %p56 = scmp.eq.s32.totalorder %s18, 1
    %p57 = por %p55, %p56
    %p58 = scmp.ne.s32.totalorder %s49, %s50
    %p59 = scmp.eq.s32.totalorder %s18, 0
    %p60 = por %p58, %p59
    %p61 = scmp.ne.s32.totalorder %s49, %s50
    %p62 = scmp.eq.s32.totalorder %s19, 1
    %p63 = por %p61, %p62
    %p65 = scmp.ne.s32.totalorder %s50, %s64
    %p66 = scmp.eq.s32.totalorder %s19, 0
    %p67 = por %p65, %p66
    %s69 = sadd.s32 %s68, 1
    %p72 = scmp.eq.s32.totalorder %s13, 1
    %p73 = scmp.ne.s32.totalorder %s68, %s70
    %p74 = scmp.eq.s32.totalorder %s13, 0
    %p75 = por %p73, %p74
    %p76 = scmp.ne.s32.totalorder %s68, %s70
    %p77 = scmp.eq.s32.totalorder %s18, 1
    %p78 = por %p76, %p77
    %p79 = scmp.ne.s32.totalorder %s70, %s71
    %p80 = scmp.eq.s32.totalorder %s18, 0
    %p81 = por %p79, %p80
    %p82 = scmp.ne.s32.totalorder %s70, %s71
    %p83 = scmp.eq.s32.totalorder %s19, 1
    %p84 = por %p82, %p83
    %p86 = scmp.ne.s32.totalorder %s71, %s85
    %p87 = scmp.eq.s32.totalorder %s19, 0
    %p88 = por %p86, %p87
    %s90 = sadd.s32 %s89, 1
    %p93 = scmp.eq.s32.totalorder %s13, 1
    %p94 = scmp.ne.s32.totalorder %s89, %s91
    %p95 = scmp.eq.s32.totalorder %s13, 0
    %p96 = por %p94, %p95
    %p97 = scmp.ne.s32.totalorder %s89, %s91
    %p98 = scmp.eq.s32.totalorder %s18, 1
    %p99 = por %p97, %p98
    %p100 = scmp.ne.s32.totalorder %s91, %s92
    %p101 = scmp.eq.s32.totalorder %s18, 0
    %p102 = por %p100, %p101
    %p103 = scmp.ne.s32.totalorder %s91, %s92
    %p104 = scmp.eq.s32.totalorder %s19, 1
    %p105 = por %p103, %p104
    %p107 = scmp.ne.s32.totalorder %s92, %s106
    %p108 = scmp.eq.s32.totalorder %s19, 0
    %p109 = por %p107, %p108
    %s111 = sadd.s32 %s110, 1
    %p114 = scmp.eq.s32.totalorder %s13, 1
    %p115 = scmp.ne.s32.totalorder %s110, %s112
    %p116 = scmp.eq.s32.totalorder %s13, 0
    %p117 = por %p115, %p116
    %p118 = scmp.ne.s32.totalorder %s110, %s112
    %p119 = scmp.eq.s32.totalorder %s18, 1
    %p120 = por %p118, %p119
    %p121 = scmp.ne.s32.totalorder %s112, %s113
    %p122 = scmp.eq.s32.totalorder %s18, 0
    %p123 = por %p121, %p122
    %p124 = scmp.ne.s32.totalorder %s112, %s113
    %p125 = scmp.eq.s32.totalorder %s19, 1
    %p126 = por %p124, %p125
    %p128 = scmp.ne.s32.totalorder %s113, %s127
    %p129 = scmp.eq.s32.totalorder %s19, 0
    %p130 = por %p128, %p129
    %s132 = sadd.s32 %s131, 1
    %p135 = scmp.eq.s32.totalorder %s13, 1
    %p136 = scmp.ne.s32.totalorder %s131, %s133
    %p137 = scmp.eq.s32.totalorder %s13, 0
    %p138 = por %p136, %p137
    %p139 = scmp.ne.s32.totalorder %s131, %s133
    %p140 = scmp.eq.s32.totalorder %s18, 1
    %p141 = por %p139, %p140
    %p142 = scmp.ne.s32.totalorder %s133, %s134
    %p143 = scmp.eq.s32.totalorder %s18, 0
    %p144 = por %p142, %p143
    %p145 = scmp.ne.s32.totalorder %s133, %s134
    %p146 = scmp.eq.s32.totalorder %s19, 1
    %p147 = por %p145, %p146
    %p149 = scmp.ne.s32.totalorder %s134, %s148
    %p150 = scmp.eq.s32.totalorder %s19, 0
    %p151 = por %p149, %p150
    %s153 = sadd.s32 %s152, 1
    %p156 = scmp.eq.s32.totalorder %s13, 1
    %p157 = scmp.ne.s32.totalorder %s152, %s154
    %p158 = scmp.eq.s32.totalorder %s13, 0
    %p159 = por %p157, %p158
    %p160 = scmp.ne.s32.totalorder %s152, %s154
    %p161 = scmp.eq.s32.totalorder %s18, 1
    %p162 = por %p160, %p161
    %p163 = scmp.ne.s32.totalorder %s154, %s155
    %p164 = scmp.eq.s32.totalorder %s18, 0
    %p165 = por %p163, %p164
    %p166 = scmp.ne.s32.totalorder %s154, %s155
    %p167 = scmp.eq.s32.totalorder %s19, 1
    %p168 = por %p166, %p167
    %p170 = scmp.ne.s32.totalorder %s155, %s169
    %p171 = scmp.eq.s32.totalorder %s19, 0
    %p172 = por %p170, %p171
    %s173 = ssub.s32 %s13, %s20
    %p174 = scmp.eq.s32.totalorder %s173, 0
    %s176 = sadd.s32 %s175, 1
    %s177 = scalar_select %p174, %s175, %s176
    %p180 = pneg %p174
    %p181 = scmp.eq.s32.totalorder %s13, 1
    %p182 = por %p180, %p181
    %p183 = scmp.ne.s32.totalorder %s175, %s178
    %p184 = scmp.eq.s32.totalorder %s13, 0
    %p185 = por %p183, %p184
    %p186 = scmp.ne.s32.totalorder %s175, %s178
    %p187 = scmp.eq.s32.totalorder %s18, 1
    %p188 = por %p186, %p187
    %p189 = scmp.ne.s32.totalorder %s178, %s179
    %p190 = scmp.eq.s32.totalorder %s18, 0
    %p191 = por %p189, %p190
    %p192 = scmp.ne.s32.totalorder %s178, %s179
    %p193 = scmp.eq.s32.totalorder %s19, 1
    %p194 = por %p192, %p193
    %p196 = scmp.ne.s32.totalorder %s179, %s195
    %p197 = scmp.eq.s32.totalorder %s19, 0
    %p198 = por %p196, %p197
    %p199 = scmp.le.s32.totalorder 1, %s13
    %p200 = scmp.lt.s32.totalorder %s13, 3
    %p201 = pnand %p199, %p200
    %p202 = pneg %p201
    // Predicated region
    $region9: #{forward.1} parent=5 // pred_check
      _
    $region10: #{forward.1} parent=5 // pred_check_branch
      %204 = sbr.rel (%p201) target = $region12
    $region11: #{forward.1} parent=5 // pred_region
      %s205 = ssub.s32 %s13, 1
      // Predicated region
      $region13: #{forward.1} parent=11 // pred_check
        %p206 = pneg %p60
      $region14: #{forward.1} parent=11 // pred_check_branch
        %208 = sbr.rel (%p206) target = $region16
      $region15: #{forward.1} parent=11 // pred_region
        _
      $region16: #{forward.1} parent=11 // pred_fallthru
        _
      // Predicated region
      $region17: #{forward.1} parent=11 // pred_check
        %p209 = pneg %p81
      $region18: #{forward.1} parent=11 // pred_check_branch
        %211 = sbr.rel (%p209) target = $region20
      $region19: #{forward.1} parent=11 // pred_region
        _
      $region20: #{forward.1} parent=11 // pred_fallthru
        _
      // Predicated region
      $region21: #{forward.1} parent=11 // pred_check
        %p212 = pneg %p102
      $region22: #{forward.1} parent=11 // pred_check_branch
        %214 = sbr.rel (%p212) target = $region24
      $region23: #{forward.1} parent=11 // pred_region
        _
      $region24: #{forward.1} parent=11 // pred_fallthru
        _
      // Predicated region
      $region25: #{forward.1} parent=11 // pred_check
        %p215 = pneg %p123
      $region26: #{forward.1} parent=11 // pred_check_branch
        %217 = sbr.rel (%p215) target = $region28
      $region27: #{forward.1} parent=11 // pred_region
        _
      $region28: #{forward.1} parent=11 // pred_fallthru
        _
      // Predicated region
      $region29: #{forward.1} parent=11 // pred_check
        %p218 = pneg %p144
      $region30: #{forward.1} parent=11 // pred_check_branch
        %220 = sbr.rel (%p218) target = $region32
      $region31: #{forward.1} parent=11 // pred_region
        _
      $region32: #{forward.1} parent=11 // pred_fallthru
        _
      // Predicated region
      $region33: #{forward.1} parent=11 // pred_check
        %p221 = pneg %p165
      $region34: #{forward.1} parent=11 // pred_check_branch
        %223 = sbr.rel (%p221) target = $region36
      $region35: #{forward.1} parent=11 // pred_region
        _
      $region36: #{forward.1} parent=11 // pred_fallthru
        _
    $region12: #{forward.1} parent=5 // pred_fallthru
      _
    %p224 = scmp.lt.s32.totalorder %s13, 2
    // Predicated region
    $region37: #{forward.1} parent=5 // pred_check
      %p225 = pneg %p224
    $region38: #{forward.1} parent=5 // pred_check_branch
      %227 = sbr.rel (%p225) target = $region40
    $region39: #{forward.1} parent=5 // pred_region
      // Predicated region
      $region41: #{forward.1} parent=39 // pred_check
        %p228 = pneg %p33
      $region42: #{forward.1} parent=39 // pred_check_branch
        %230 = sbr.rel (%p228) target = $region44
      $region43: #{forward.1} parent=39 // pred_region
        %s231 = smul.u32 24, %s13
        %p232 = scmp.lt.s32.totalorder %s231, 47
        %s233 = scalar_select %p232, %s231, 47
        %s234 = smul.addr %s233, 2
        %s235 = smul.addr %s234, 4
        %s236 = scalar_lea.vmem %s0, %s235
        %s237 = smul.u32 24, %s13
      $region44: #{forward.1} parent=39 // pred_fallthru
        _
    $region40: #{forward.1} parent=5 // pred_fallthru
      _
    %p238 = scmp.le.s32.totalorder 1, %s13
    %p239 = scmp.lt.s32.totalorder %s13, 3
    %p240 = pnand %p238, %p239
    %p241 = pneg %p240
    // Predicated region
    $region45: #{forward.1} parent=5 // pred_check
      _
    $region46: #{forward.1} parent=5 // pred_check_branch
      %243 = sbr.rel (%p240) target = $region48
    $region47: #{forward.1} parent=5 // pred_region
      %s244 = ssub.s32 %s13, 1
      %s245 = smul.u32 24, %s18
      %p246 = scmp.lt.s32.totalorder %s245, 47
      %s247 = scalar_select %p246, %s245, 47
      %s248 = smul.addr %s247, 2
      %s249 = smul.addr %s248, 4
      %s250 = scalar_lea.vmem %s0, %s249
      %p251 = pneg %p39
      %p252 = pneg %p36
      %p253 = pneg %p60
      %p254 = pneg %p57
      %p255 = pneg %p81
      %p256 = pneg %p78
      %p257 = pneg %p102
      %p258 = pneg %p99
      %p259 = pneg %p123
      %p260 = pneg %p120
      %p261 = pneg %p144
      %p262 = pneg %p141
      %p263 = pneg %p165
      %p264 = pneg %p162
      %p265 = pneg %p191
      %p266 = pneg %p188
      %s267 = smul.u32 2, %s18
      %p268 = scmp.lt.s32.totalorder %s267, 3
      %s269 = scalar_select %p268, %s267, 3
      %s270 = smul.addr %s269, 8
      %s271 = scalar_lea.vmem %s7, %s270
      %s272 = smul.u32 24, %s18
      %p273 = scmp.lt.s32.totalorder %s272, 47
      %s274 = scalar_select %p273, %s272, 47
      %s275 = smul.addr %s274, 2
      %s276 = smul.addr %s275, 4
      %s277 = scalar_lea.vmem %s0, %s276
      %s278 = smul.u32 24, %s18
      %s279 = smul.u32 2, %s18
      %p280 = scmp.lt.s32.totalorder %s279, 3
      %s281 = scalar_select %p280, %s279, 3
      %s282 = smul.addr %s281, 8
      %s283 = scalar_lea.vmem %s7, %s282
      %s284 = smul.u32 2, %s18
      %v286 = vld [vmem:[%s277] sm:$0xff]
      %v287 = vld [vmem:[%s277 + $0x8] sm:$0xff]
      %v288 = vld [vmem:[%s277 + $0x10] sm:$0xff]
      %v289 = vld [vmem:[%s277 + $0x18] sm:$0xff]
      %v290 = vld [vmem:[%s277 + $0x20] sm:$0xff]
      %v291 = vld [vmem:[%s277 + $0x28] sm:$0xff]
      %v292 = vld [vmem:[%s277 + $0x30] sm:$0xff]
      %v293 = vld [vmem:[%s277 + $0x38] sm:$0xff]
      %v294 = vld [vmem:[%s277 + $0x40] sm:$0xff]
      %v295 = vld [vmem:[%s277 + $0x48] sm:$0xff]
      %v296 = vld [vmem:[%s277 + $0x50] sm:$0xff]
      %v297 = vld [vmem:[%s277 + $0x58] sm:$0xff]
      %v298 = vld [vmem:[%s277 + $0x60] sm:$0xff]
      %v299 = vld [vmem:[%s277 + $0x68] sm:$0xff]
      %v300 = vld [vmem:[%s277 + $0x70] sm:$0xff]
      %v301 = vld [vmem:[%s277 + $0x78] sm:$0xff]
      %v302 = vld [vmem:[%s277 + $0x80] sm:$0xff]
      %v303 = vld [vmem:[%s277 + $0x88] sm:$0xff]
      %v304 = vld [vmem:[%s277 + $0x90] sm:$0xff]
      %v305 = vld [vmem:[%s277 + $0x98] sm:$0xff]
      %v306 = vld [vmem:[%s277 + $0xa0] sm:$0xff]
      %v307 = vld [vmem:[%s277 + $0xa8] sm:$0xff]
      %v308 = vld [vmem:[%s277 + $0xb0] sm:$0xff]
      %v309 = vld [vmem:[%s277 + $0xb8] sm:$0xff]
      %v310 = vld [vmem:[%s1] sm:$0xff]
      %v311 = vld [vmem:[%s1 + $0x8] sm:$0xff]
      %v312 = vld [vmem:[%s1 + $0x10] sm:$0xff]
      %v313 = vld [vmem:[%s1 + $0x18] sm:$0xff]
      %v314 = vld [vmem:[%s1 + $0x20] sm:$0xff]
      %v315 = vld [vmem:[%s1 + $0x28] sm:$0xff]
      %v316 = vld [vmem:[%s1 + $0x30] sm:$0xff]
      %v317 = vld [vmem:[%s1 + $0x38] sm:$0xff]
      %v318 = vld [vmem:[%s1 + $0x40] sm:$0xff]
      %v319 = vld [vmem:[%s1 + $0x48] sm:$0xff]
      %v320 = vld [vmem:[%s1 + $0x50] sm:$0xff]
      %v321 = vld [vmem:[%s1 + $0x58] sm:$0xff]
      %v322 = vld [vmem:[%s1 + $0x60] sm:$0xff]
      %v323 = vld [vmem:[%s1 + $0x68] sm:$0xff]
      %v324 = vld [vmem:[%s1 + $0x70] sm:$0xff]
      %v325 = vld [vmem:[%s1 + $0x78] sm:$0xff]
      %v326 = vld [vmem:[%s1 + $0x80] sm:$0xff]
      %v327 = vld [vmem:[%s1 + $0x88] sm:$0xff]
      %v328 = vld [vmem:[%s1 + $0x90] sm:$0xff]
      %v329 = vld [vmem:[%s1 + $0x98] sm:$0xff]
      %v330 = vld [vmem:[%s1 + $0xa0] sm:$0xff]
      %v331 = vld [vmem:[%s1 + $0xa8] sm:$0xff]
      %v332 = vld [vmem:[%s1 + $0xb0] sm:$0xff]
      %v333 = vld [vmem:[%s1 + $0xb8] sm:$0xff]
      %v334 = vld [vmem:[%s1 + $0xc0] sm:$0xff]
      %v335 = vld [vmem:[%s1 + $0xc8] sm:$0xff]
      %v336 = vld [vmem:[%s1 + $0xd0] sm:$0xff]
      %v337 = vld [vmem:[%s1 + $0xd8] sm:$0xff]
      %v338 = vld [vmem:[%s1 + $0xe0] sm:$0xff]
      %v339 = vld [vmem:[%s1 + $0xe8] sm:$0xff]
      %v340 = vld [vmem:[%s1 + $0xf0] sm:$0xff]
      %v341 = vld [vmem:[%s1 + $0xf8] sm:$0xff]
      %v342 = vld [vmem:[%s1 + $0x100] sm:$0xff]
      %v343 = vld [vmem:[%s1 + $0x108] sm:$0xff]
      %v344 = vld [vmem:[%s1 + $0x110] sm:$0xff]
      %v345 = vld [vmem:[%s1 + $0x118] sm:$0xff]
      %v346 = vld [vmem:[%s1 + $0x120] sm:$0xff]
      %v347 = vld [vmem:[%s1 + $0x128] sm:$0xff]
      %v348 = vld [vmem:[%s1 + $0x130] sm:$0xff]
      %v349 = vld [vmem:[%s1 + $0x138] sm:$0xff]
      %v350 = vld [vmem:[%s1 + $0x140] sm:$0xff]
      %v351 = vld [vmem:[%s1 + $0x148] sm:$0xff]
      %v352 = vld [vmem:[%s1 + $0x150] sm:$0xff]
      %v353 = vld [vmem:[%s1 + $0x158] sm:$0xff]
      %v354 = vld [vmem:[%s1 + $0x160] sm:$0xff]
      %v355 = vld [vmem:[%s1 + $0x168] sm:$0xff]
      %v356 = vld [vmem:[%s1 + $0x170] sm:$0xff]
      %v357 = vld [vmem:[%s1 + $0x178] sm:$0xff]
      %v358 = vld [vmem:[%s1 + $0x180] sm:$0xff]
      %v359 = vld [vmem:[%s1 + $0x188] sm:$0xff]
      %v360 = vld [vmem:[%s1 + $0x190] sm:$0xff]
      %v361 = vld [vmem:[%s1 + $0x198] sm:$0xff]
      %v362 = vld [vmem:[%s1 + $0x1a0] sm:$0xff]
      %v363 = vld [vmem:[%s1 + $0x1a8] sm:$0xff]
      %v364 = vld [vmem:[%s1 + $0x1b0] sm:$0xff]
      %v365 = vld [vmem:[%s1 + $0x1b8] sm:$0xff]
      %v366 = vld [vmem:[%s1 + $0x1c0] sm:$0xff]
      %v367 = vld [vmem:[%s1 + $0x1c8] sm:$0xff]
      %v368 = vld [vmem:[%s1 + $0x1d0] sm:$0xff]
      %v369 = vld [vmem:[%s1 + $0x1d8] sm:$0xff]
      %v370 = vld [vmem:[%s1 + $0x1e0] sm:$0xff]
      %v371 = vld [vmem:[%s1 + $0x1e8] sm:$0xff]
      %v372 = vld [vmem:[%s1 + $0x1f0] sm:$0xff]
      %v373 = vld [vmem:[%s2] sm:$0x3f]
      %v375 = vlaneseq
      %v376 = vshrl.u32 %v375, 7
      %v377 = vsub.s32 0, %v376
      %v378 = vrot.slane %v373, %v377
      %v379 = vlaneseq
      %v380 = vshrl.u32 %v379, 7
      %v381 = vsub.s32 1, %v380
      %v382 = vrot.slane %v373, %v381
      %v383 = vlaneseq
      %v384 = vshrl.u32 %v383, 7
      %v385 = vsub.s32 2, %v384
      %v386 = vrot.slane %v373, %v385
      %v387 = vlaneseq
      %v388 = vshrl.u32 %v387, 7
      %v389 = vsub.s32 3, %v388
      %v390 = vrot.slane %v373, %v389
      %v391 = vlaneseq
      %v392 = vshrl.u32 %v391, 7
      %v393 = vsub.s32 4, %v392
      %v394 = vrot.slane %v373, %v393
      %v395 = vlaneseq
      %v396 = vshrl.u32 %v395, 7
      %v397 = vsub.s32 5, %v396
      %v398 = vrot.slane %v373, %v397
      %v429 = vunpack.c.l.b16 %v286
      %v430 = vunpack.c.h.b16 %v286
      %v431 = vunpack.c.l.b16 %v287
      %v432 = vunpack.c.h.b16 %v287
      %v433 = vunpack.c.l.b16 %v288
      %v434 = vunpack.c.h.b16 %v288
      %v435 = vunpack.c.l.b16 %v289
      %v436 = vunpack.c.h.b16 %v289
      %v437 = vunpack.c.l.b16 %v290
      %v438 = vunpack.c.h.b16 %v290
      %v439 = vunpack.c.l.b16 %v291
      %v440 = vunpack.c.h.b16 %v291
      %v441 = vunpack.c.l.b16 %v292
      %v442 = vunpack.c.h.b16 %v292
      %v443 = vunpack.c.l.b16 %v293
      %v444 = vunpack.c.h.b16 %v293
      %v445 = vunpack.c.l.b16 %v294
      %v446 = vunpack.c.h.b16 %v294
      %v447 = vunpack.c.l.b16 %v295
      %v448 = vunpack.c.h.b16 %v295
      %v449 = vunpack.c.l.b16 %v296
      %v450 = vunpack.c.h.b16 %v296
      %v451 = vunpack.c.l.b16 %v297
      %v452 = vunpack.c.h.b16 %v297
      %v453 = vunpack.c.l.b16 %v298
      %v454 = vunpack.c.h.b16 %v298
      %v455 = vunpack.c.l.b16 %v299
      %v456 = vunpack.c.h.b16 %v299
      %v457 = vunpack.c.l.b16 %v300
      %v458 = vunpack.c.h.b16 %v300
      %v459 = vunpack.c.l.b16 %v301
      %v460 = vunpack.c.h.b16 %v301
      %v461 = vunpack.c.l.b16 %v302
      %v462 = vunpack.c.h.b16 %v302
      %v463 = vunpack.c.l.b16 %v303
      %v464 = vunpack.c.h.b16 %v303
      %v465 = vunpack.c.l.b16 %v304
      %v466 = vunpack.c.h.b16 %v304
      %v467 = vunpack.c.l.b16 %v305
      %v468 = vunpack.c.h.b16 %v305
      %v469 = vunpack.c.l.b16 %v306
      %v470 = vunpack.c.h.b16 %v306
      %v471 = vunpack.c.l.b16 %v307
      %v472 = vunpack.c.h.b16 %v307
      %v473 = vunpack.c.l.b16 %v308
      %v474 = vunpack.c.h.b16 %v308
      %v475 = vunpack.c.l.b16 %v309
      %v476 = vunpack.c.h.b16 %v309
      %v477 = vpack.c.b16 %v431, %v429
      %v478 = vpack.c.b16 %v432, %v430
      %v479 = vpack.c.b16 %v435, %v433
      %v480 = vpack.c.b16 %v436, %v434
      %v481 = vpack.c.b16 %v439, %v437
      %v482 = vpack.c.b16 %v440, %v438
      %v483 = vpack.c.b16 %v443, %v441
      %v484 = vpack.c.b16 %v444, %v442
      %v485 = vpack.c.b16 %v447, %v445
      %v486 = vpack.c.b16 %v448, %v446
      %v487 = vpack.c.b16 %v451, %v449
      %v488 = vpack.c.b16 %v452, %v450
      %v489 = vpack.c.b16 %v455, %v453
      %v490 = vpack.c.b16 %v456, %v454
      %v491 = vpack.c.b16 %v459, %v457
      %v492 = vpack.c.b16 %v460, %v458
      %v493 = vpack.c.b16 %v463, %v461
      %v494 = vpack.c.b16 %v464, %v462
      %v495 = vpack.c.b16 %v467, %v465
      %v496 = vpack.c.b16 %v468, %v466
      %v497 = vpack.c.b16 %v471, %v469
      %v498 = vpack.c.b16 %v472, %v470
      %v499 = vpack.c.b16 %v475, %v473
      %v500 = vpack.c.b16 %v476, %v474
      %v576 = vunpack.c.l.b16 %v310
      %v577 = vunpack.c.h.b16 %v310
      %v578 = vunpack.c.l.b16 %v311
      %v579 = vunpack.c.h.b16 %v311
      %v580 = vunpack.c.l.b16 %v312
      %v581 = vunpack.c.h.b16 %v312
      %v582 = vunpack.c.l.b16 %v313
      %v583 = vunpack.c.h.b16 %v313
      %v584 = vunpack.c.l.b16 %v314
      %v585 = vunpack.c.h.b16 %v314
      %v586 = vunpack.c.l.b16 %v315
      %v587 = vunpack.c.h.b16 %v315
      %v588 = vunpack.c.l.b16 %v316
      %v589 = vunpack.c.h.b16 %v316
      %v590 = vunpack.c.l.b16 %v317
      %v591 = vunpack.c.h.b16 %v317
      %v592 = vunpack.c.l.b16 %v318
      %v593 = vunpack.c.h.b16 %v318
      %v594 = vunpack.c.l.b16 %v319
      %v595 = vunpack.c.h.b16 %v319
      %v596 = vunpack.c.l.b16 %v320
      %v597 = vunpack.c.h.b16 %v320
      %v598 = vunpack.c.l.b16 %v321
      %v599 = vunpack.c.h.b16 %v321
      %v600 = vunpack.c.l.b16 %v322
      %v601 = vunpack.c.h.b16 %v322
      %v602 = vunpack.c.l.b16 %v323
      %v603 = vunpack.c.h.b16 %v323
      %v604 = vunpack.c.l.b16 %v324
      %v605 = vunpack.c.h.b16 %v324
      %v606 = vunpack.c.l.b16 %v325
      %v607 = vunpack.c.h.b16 %v325
      %v608 = vunpack.c.l.b16 %v326
      %v609 = vunpack.c.h.b16 %v326
      %v610 = vunpack.c.l.b16 %v327
      %v611 = vunpack.c.h.b16 %v327
      %v612 = vunpack.c.l.b16 %v328
      %v613 = vunpack.c.h.b16 %v328
      %v614 = vunpack.c.l.b16 %v329
      %v615 = vunpack.c.h.b16 %v329
      %v616 = vunpack.c.l.b16 %v330
      %v617 = vunpack.c.h.b16 %v330
      %v618 = vunpack.c.l.b16 %v331
      %v619 = vunpack.c.h.b16 %v331
      %v620 = vunpack.c.l.b16 %v332
      %v621 = vunpack.c.h.b16 %v332
      %v622 = vunpack.c.l.b16 %v333
      %v623 = vunpack.c.h.b16 %v333
      %v624 = vunpack.c.l.b16 %v334
      %v625 = vunpack.c.h.b16 %v334
      %v626 = vunpack.c.l.b16 %v335
      %v627 = vunpack.c.h.b16 %v335
      %v628 = vunpack.c.l.b16 %v336
      %v629 = vunpack.c.h.b16 %v336
      %v630 = vunpack.c.l.b16 %v337
      %v631 = vunpack.c.h.b16 %v337
      %v632 = vunpack.c.l.b16 %v338
      %v633 = vunpack.c.h.b16 %v338
      %v634 = vunpack.c.l.b16 %v339
      %v635 = vunpack.c.h.b16 %v339
      %v636 = vunpack.c.l.b16 %v340
      %v637 = vunpack.c.h.b16 %v340
      %v638 = vunpack.c.l.b16 %v341
      %v639 = vunpack.c.h.b16 %v341
      %v640 = vunpack.c.l.b16 %v342
      %v641 = vunpack.c.h.b16 %v342
      %v642 = vunpack.c.l.b16 %v343
      %v643 = vunpack.c.h.b16 %v343
      %v644 = vunpack.c.l.b16 %v344
      %v645 = vunpack.c.h.b16 %v344
      %v646 = vunpack.c.l.b16 %v345
      %v647 = vunpack.c.h.b16 %v345
      %v648 = vunpack.c.l.b16 %v346
      %v649 = vunpack.c.h.b16 %v346
      %v650 = vunpack.c.l.b16 %v347
      %v651 = vunpack.c.h.b16 %v347
      %v652 = vunpack.c.l.b16 %v348
      %v653 = vunpack.c.h.b16 %v348
      %v654 = vunpack.c.l.b16 %v349
      %v655 = vunpack.c.h.b16 %v349
      %v656 = vunpack.c.l.b16 %v350
      %v657 = vunpack.c.h.b16 %v350
      %v658 = vunpack.c.l.b16 %v351
      %v659 = vunpack.c.h.b16 %v351
      %v660 = vunpack.c.l.b16 %v352
      %v661 = vunpack.c.h.b16 %v352
      %v662 = vunpack.c.l.b16 %v353
      %v663 = vunpack.c.h.b16 %v353
      %v664 = vunpack.c.l.b16 %v354
      %v665 = vunpack.c.h.b16 %v354
      %v666 = vunpack.c.l.b16 %v355
      %v667 = vunpack.c.h.b16 %v355
      %v668 = vunpack.c.l.b16 %v356
      %v669 = vunpack.c.h.b16 %v356
      %v670 = vunpack.c.l.b16 %v357
      %v671 = vunpack.c.h.b16 %v357
      %v672 = vunpack.c.l.b16 %v358
      %v673 = vunpack.c.h.b16 %v358
      %v674 = vunpack.c.l.b16 %v359
      %v675 = vunpack.c.h.b16 %v359
      %v676 = vunpack.c.l.b16 %v360
      %v677 = vunpack.c.h.b16 %v360
      %v678 = vunpack.c.l.b16 %v361
      %v679 = vunpack.c.h.b16 %v361
      %v680 = vunpack.c.l.b16 %v362
      %v681 = vunpack.c.h.b16 %v362
      %v682 = vunpack.c.l.b16 %v363
      %v683 = vunpack.c.h.b16 %v363
      %v684 = vunpack.c.l.b16 %v364
      %v685 = vunpack.c.h.b16 %v364
      %v686 = vunpack.c.l.b16 %v365
      %v687 = vunpack.c.h.b16 %v365
      %v688 = vunpack.c.l.b16 %v366
      %v689 = vunpack.c.h.b16 %v366
      %v690 = vunpack.c.l.b16 %v367
      %v691 = vunpack.c.h.b16 %v367
      %v692 = vunpack.c.l.b16 %v368
      %v693 = vunpack.c.h.b16 %v368
      %v694 = vunpack.c.l.b16 %v369
      %v695 = vunpack.c.h.b16 %v369
      %v696 = vunpack.c.l.b16 %v370
      %v697 = vunpack.c.h.b16 %v370
      %v698 = vunpack.c.l.b16 %v371
      %v699 = vunpack.c.h.b16 %v371
      %v700 = vunpack.c.l.b16 %v372
      %v701 = vunpack.c.h.b16 %v372
      %v702 = vpack.c.b16 %v582, %v576
      %v703 = vpack.c.b16 %v583, %v577
      %v704 = vpack.c.b16 %v584, %v578
      %v705 = vpack.c.b16 %v585, %v579
      %v706 = vpack.c.b16 %v586, %v580
      %v707 = vpack.c.b16 %v587, %v581
      %v708 = vpack.c.b16 %v594, %v588
      %v709 = vpack.c.b16 %v595, %v589
      %v710 = vpack.c.b16 %v596, %v590
      %v711 = vpack.c.b16 %v597, %v591
      %v712 = vpack.c.b16 %v598, %v592
      %v713 = vpack.c.b16 %v599, %v593
      %v714 = vpack.c.b16 %v606, %v600
      %v715 = vpack.c.b16 %v607, %v601
      %v716 = vpack.c.b16 %v608, %v602
      %v717 = vpack.c.b16 %v609, %v603
      %v718 = vpack.c.b16 %v610, %v604
      %v719 = vpack.c.b16 %v611, %v605
      %v720 = vpack.c.b16 %v618, %v612
      %v721 = vpack.c.b16 %v619, %v613
      %v722 = vpack.c.b16 %v620, %v614
      %v723 = vpack.c.b16 %v621, %v615
      %v724 = vpack.c.b16 %v622, %v616
      %v725 = vpack.c.b16 %v623, %v617
      %v726 = vpack.c.b16 %v630, %v624
      %v727 = vpack.c.b16 %v631, %v625
      %v728 = vpack.c.b16 %v632, %v626
      %v729 = vpack.c.b16 %v633, %v627
      %v730 = vpack.c.b16 %v634, %v628
      %v731 = vpack.c.b16 %v635, %v629
      %v732 = vpack.c.b16 %v642, %v636
      %v733 = vpack.c.b16 %v643, %v637
      %v734 = vpack.c.b16 %v644, %v638
      %v735 = vpack.c.b16 %v645, %v639
      %v736 = vpack.c.b16 %v646, %v640
      %v737 = vpack.c.b16 %v647, %v641
      %v738 = vpack.c.b16 %v654, %v648
      %v739 = vpack.c.b16 %v655, %v649
      %v740 = vpack.c.b16 %v656, %v650
      %v741 = vpack.c.b16 %v657, %v651
      %v742 = vpack.c.b16 %v658, %v652
      %v743 = vpack.c.b16 %v659, %v653
      %v744 = vpack.c.b16 %v666, %v660
      %v745 = vpack.c.b16 %v667, %v661
      %v746 = vpack.c.b16 %v668, %v662
      %v747 = vpack.c.b16 %v669, %v663
      %v748 = vpack.c.b16 %v670, %v664
      %v749 = vpack.c.b16 %v671, %v665
      %v750 = vpack.c.b16 %v678, %v672
      %v751 = vpack.c.b16 %v679, %v673
      %v752 = vpack.c.b16 %v680, %v674
      %v753 = vpack.c.b16 %v681, %v675
      %v754 = vpack.c.b16 %v682, %v676
      %v755 = vpack.c.b16 %v683, %v677
      %v756 = vpack.c.b16 %v690, %v684
      %v757 = vpack.c.b16 %v691, %v685
      %v758 = vpack.c.b16 %v692, %v686
      %v759 = vpack.c.b16 %v693, %v687
      %v760 = vpack.c.b16 %v694, %v688
      %v761 = vpack.c.b16 %v695, %v689
      %v762 = vpack.c.b16 %v696, %v696
      %v763 = vpack.c.b16 %v697, %v697
      %v764 = vpack.c.b16 %v698, %v698
      %v765 = vpack.c.b16 %v699, %v699
      %v766 = vpack.c.b16 %v700, %v700
      %v767 = vpack.c.b16 %v701, %v701
      %vm828 = vcmask 326656
      %v830 = vsel %vm828, %v478, 0
      %v833 = vsel %vm828, %v480, 0
      %v836 = vsel %vm828, %v482, 0
      %v839 = vsel %vm828, %v484, 0
      %v842 = vsel %vm828, %v486, 0
      %v845 = vsel %vm828, %v488, 0
      %v848 = vsel %vm828, %v490, 0
      %v851 = vsel %vm828, %v492, 0
      %v854 = vsel %vm828, %v494, 0
      %v857 = vsel %vm828, %v496, 0
      %v860 = vsel %vm828, %v498, 0
      %v863 = vsel %vm828, %v500, 0
      %vm865 = vcmask 1043456
      %v867 = vsel %vm865, %v762, 0
      %v870 = vsel %vm865, %v763, 0
      %v873 = vsel %vm865, %v764, 0
      %v876 = vsel %vm865, %v765, 0
      %v879 = vsel %vm865, %v766, 0
      %v882 = vsel %vm865, %v767, 0
      %884 = vmatprep.subr.bf16.mxu0 %v703
      %885 = vmatpush1.bf16.msra.mxu0 %v702
      %886 = vmatprep.subr.bf16.mxu0 %v709
      %887 = vmatpush1.bf16.msra.mxu0 %v708
      %888 = vmatprep.subr.bf16.mxu0 %v715
      %889 = vmatpush1.bf16.msra.mxu0 %v714
      %890 = vmatprep.subr.bf16.mxu0 %v721
      %891 = vmatpush1.bf16.msra.mxu0 %v720
      %892 = vmatprep.subr.bf16.mxu0 %v727
      %893 = vmatpush1.bf16.msra.mxu0 %v726
      %894 = vmatprep.subr.bf16.mxu0 %v733
      %895 = vmatpush1.bf16.msra.mxu0 %v732
      %896 = vmatprep.subr.bf16.mxu0 %v739
      %897 = vmatpush1.bf16.msra.mxu0 %v738
      %898 = vmatprep.subr.bf16.mxu0 %v745
      %899 = vmatpush1.bf16.msra.mxu0 %v744
      %900 = vmatprep.subr.bf16.mxu0 %v751
      %901 = vmatpush1.bf16.msra.mxu0 %v750
      %902 = vmatprep.subr.bf16.mxu0 %v757
      %903 = vmatpush1.bf16.msra.mxu0 %v756
      %904 = vmatprep.subr.bf16.mxu0 %v870
      %905 = vmatpush1.bf16.msra.mxu0 %v867
      %906 = vmatprep.subr.bf16.mxu0 0
      %907 = vmatpush1.bf16.msra.mxu0 0
      %908 = vmatprep.subr.bf16.mxu0 0
      %909 = vmatpush1.bf16.msra.mxu0 0
      %910 = vmatprep.subr.bf16.mxu0 0
      %911 = vmatpush1.bf16.msra.mxu0 0
      %912 = vmatprep.subr.bf16.mxu0 0
      %913 = vmatpush1.bf16.msra.mxu0 0
      %914 = vmatprep.subr.bf16.mxu0 0
      %915 = vmatpush1.bf16.msra.mxu0 0
      %916 = vmatprep.mubr.bf16.mxu0 %v830
      %917 = vmatmul.mubr.bf16.gmra.mrb[0].mxu0 %v477
      %v918 = vpop.f32.mrb[0].mxu0
      %v919 = vadd.f32 %v378, %v918
      %v920 = vpop.f32.mrb[0].mxu0
      %v921 = vadd.f32 %v382, %v920
      %v922 = vpop.f32.mrb[0].mxu0
      %v923 = vadd.f32 %v378, %v922
      %v924 = vpop.f32.mrb[0].mxu0
      %v925 = vadd.f32 %v382, %v924
      %926 = vmatprep.mubr.bf16.mxu0 %v833
      %927 = vmatmul.mubr.bf16.gmra.mrb[0].mxu0 %v479
      %v928 = vpop.f32.mrb[0].mxu0
      %v929 = vadd.f32 %v378, %v928
      %v930 = vpop.f32.mrb[0].mxu0
      %v931 = vadd.f32 %v382, %v930
      %v932 = vpop.f32.mrb[0].mxu0
      %v933 = vadd.f32 %v378, %v932
      %v934 = vpop.f32.mrb[0].mxu0
      %v935 = vadd.f32 %v382, %v934
      %936 = vmatprep.mubr.bf16.mxu0 %v836
      %937 = vmatmul.mubr.bf16.gmra.mrb[0].mxu0 %v481
      %v938 = vpop.f32.mrb[0].mxu0
      %v939 = vadd.f32 %v378, %v938
      %v940 = vpop.f32.mrb[0].mxu0
      %v941 = vadd.f32 %v382, %v940
      %v942 = vpop.f32.mrb[0].mxu0
      %v943 = vadd.f32 %v378, %v942
      %v944 = vpop.f32.mrb[0].mxu0
      %v945 = vadd.f32 %v382, %v944
      %946 = vmatprep.mubr.bf16.mxu0 %v839
      %947 = vmatmul.mubr.bf16.gmra.mrb[0].mxu0 %v483
      %v948 = vpop.f32.mrb[0].mxu0
      %v949 = vadd.f32 %v378, %v948
      %v950 = vpop.f32.mrb[0].mxu0
      %v951 = vadd.f32 %v382, %v950
      %v952 = vpop.f32.mrb[0].mxu0
      %v953 = vadd.f32 %v378, %v952
      %v954 = vpop.f32.mrb[0].mxu0
      %v955 = vadd.f32 %v382, %v954
      %956 = vmatprep.mubr.bf16.mxu0 %v842
      %957 = vmatmul.mubr.bf16.gmra.mrb[0].mxu0 %v485
      %v958 = vpop.f32.mrb[0].mxu0
      %v959 = vadd.f32 %v378, %v958
      %v960 = vpop.f32.mrb[0].mxu0
      %v961 = vadd.f32 %v382, %v960
      %v962 = vpop.f32.mrb[0].mxu0
      %v963 = vadd.f32 %v378, %v962
      %v964 = vpop.f32.mrb[0].mxu0
      %v965 = vadd.f32 %v382, %v964
      %966 = vmatprep.mubr.bf16.mxu0 %v845
      %967 = vmatmul.mubr.bf16.gmra.mrb[0].mxu0 %v487
      %v968 = vpop.f32.mrb[0].mxu0
      %v969 = vadd.f32 %v378, %v968
      %v970 = vpop.f32.mrb[0].mxu0
      %v971 = vadd.f32 %v382, %v970
      %v972 = vpop.f32.mrb[0].mxu0
      %v973 = vadd.f32 %v378, %v972
      %v974 = vpop.f32.mrb[0].mxu0
      %v975 = vadd.f32 %v382, %v974
      %976 = vmatprep.mubr.bf16.mxu0 %v848
      %977 = vmatmul.mubr.bf16.gmra.mrb[0].mxu0 %v489
      %v978 = vpop.f32.mrb[0].mxu0
      %v979 = vadd.f32 %v378, %v978
      %v980 = vpop.f32.mrb[0].mxu0
      %v981 = vadd.f32 %v382, %v980
      %v982 = vpop.f32.mrb[0].mxu0
      %v983 = vadd.f32 %v378, %v982
      %v984 = vpop.f32.mrb[0].mxu0
      %v985 = vadd.f32 %v382, %v984
      %986 = vmatprep.mubr.bf16.mxu0 %v851
      %987 = vmatmul.mubr.bf16.gmra.mrb[0].mxu0 %v491
      %v988 = vpop.f32.mrb[0].mxu0
      %v989 = vadd.f32 %v378, %v988
      %v990 = vpop.f32.mrb[0].mxu0
      %v991 = vadd.f32 %v382, %v990
      %v992 = vpop.f32.mrb[0].mxu0
      %v993 = vadd.f32 %v378, %v992
      %v994 = vpop.f32.mrb[0].mxu0
      %v995 = vadd.f32 %v382, %v994
      %996 = vmatprep.mubr.bf16.mxu0 %v854
      %997 = vmatmul.mubr.bf16.gmra.mrb[0].mxu0 %v493
      %v998 = vpop.f32.mrb[0].mxu0
      %v999 = vadd.f32 %v378, %v998
      %v1000 = vpop.f32.mrb[0].mxu0
      %v1001 = vadd.f32 %v382, %v1000
      %v1002 = vpop.f32.mrb[0].mxu0
      %v1003 = vadd.f32 %v378, %v1002
      %v1004 = vpop.f32.mrb[0].mxu0
      %v1005 = vadd.f32 %v382, %v1004
      %1006 = vmatprep.mubr.bf16.mxu0 %v857
      %1007 = vmatmul.mubr.bf16.gmra.mrb[0].mxu0 %v495
      %v1008 = vpop.f32.mrb[0].mxu0
      %v1009 = vadd.f32 %v378, %v1008
      %v1010 = vpop.f32.mrb[0].mxu0
      %v1011 = vadd.f32 %v382, %v1010
      %v1012 = vpop.f32.mrb[0].mxu0
      %v1013 = vadd.f32 %v378, %v1012
      %v1014 = vpop.f32.mrb[0].mxu0
      %v1015 = vadd.f32 %v382, %v1014
      %1016 = vmatprep.mubr.bf16.mxu0 %v860
      %1017 = vmatmul.mubr.bf16.gmra.mrb[0].mxu0 %v497
      %v1018 = vpop.f32.mrb[0].mxu0
      %v1019 = vadd.f32 %v378, %v1018
      %v1020 = vpop.f32.mrb[0].mxu0
      %v1021 = vadd.f32 %v382, %v1020
      %v1022 = vpop.f32.mrb[0].mxu0
      %v1023 = vadd.f32 %v378, %v1022
      %v1024 = vpop.f32.mrb[0].mxu0
      %v1025 = vadd.f32 %v382, %v1024
      %1026 = vmatprep.mubr.bf16.mxu0 %v863
      %1027 = vmatmul.mubr.bf16.gmra.mrb[0].mxu0 %v499
      %v1028 = vpop.f32.mrb[0].mxu0
      %v1029 = vadd.f32 %v378, %v1028
      %v1030 = vpop.f32.mrb[0].mxu0
      %v1031 = vadd.f32 %v382, %v1030
      %v1032 = vpop.f32.mrb[0].mxu0
      %v1033 = vadd.f32 %v378, %v1032
      %v1034 = vpop.f32.mrb[0].mxu0
      %v1035 = vadd.f32 %v382, %v1034
      %1036 = vdwg.mxu0
      %1037 = vmatprep.subr.bf16.mxu0 %v705
      %1038 = vmatpush1.bf16.msra.mxu0 %v704
      %1039 = vmatprep.subr.bf16.mxu0 %v711
      %1040 = vmatpush1.bf16.msra.mxu0 %v710
      %1041 = vmatprep.subr.bf16.mxu0 %v717
      %1042 = vmatpush1.bf16.msra.mxu0 %v716
      %1043 = vmatprep.subr.bf16.mxu0 %v723
      %1044 = vmatpush1.bf16.msra.mxu0 %v722
      %1045 = vmatprep.subr.bf16.mxu0 %v729
      %1046 = vmatpush1.bf16.msra.mxu0 %v728
      %1047 = vmatprep.subr.bf16.mxu0 %v735
      %1048 = vmatpush1.bf16.msra.mxu0 %v734
      %1049 = vmatprep.subr.bf16.mxu0 %v741
      %1050 = vmatpush1.bf16.msra.mxu0 %v740
      %1051 = vmatprep.subr.bf16.mxu0 %v747
      %1052 = vmatpush1.bf16.msra.mxu0 %v746
      %1053 = vmatprep.subr.bf16.mxu0 %v753
      %1054 = vmatpush1.bf16.msra.mxu0 %v752
      %1055 = vmatprep.subr.bf16.mxu0 %v759
      %1056 = vmatpush1.bf16.msra.mxu0 %v758
      %1057 = vmatprep.subr.bf16.mxu0 %v876
      %1058 = vmatpush1.bf16.msra.mxu0 %v873
      %1059 = vmatprep.subr.bf16.mxu0 0
      %1060 = vmatpush1.bf16.msra.mxu0 0
      %1061 = vmatprep.subr.bf16.mxu0 0
      %1062 = vmatpush1.bf16.msra.mxu0 0
      %1063 = vmatprep.subr.bf16.mxu0 0
      %1064 = vmatpush1.bf16.msra.mxu0 0
      %1065 = vmatprep.subr.bf16.mxu0 0
      %1066 = vmatpush1.bf16.msra.mxu0 0
      %1067 = vmatprep.subr.bf16.mxu0 0
      %1068 = vmatpush1.bf16.msra.mxu0 0
      %1069 = vmatprep.mubr.bf16.mxu0 %v830
      %1070 = vmatmul.mubr.bf16.gmra.mrb[0].mxu0 %v477
      %v1071 = vpop.f32.mrb[0].mxu0
      %v1072 = vadd.f32 %v386, %v1071
      %v1073 = vpop.f32.mrb[0].mxu0
      %v1074 = vadd.f32 %v390, %v1073
      %v1075 = vpop.f32.mrb[0].mxu0
      %v1076 = vadd.f32 %v386, %v1075
      %v1077 = vpop.f32.mrb[0].mxu0
      %v1078 = vadd.f32 %v390, %v1077
      %1079 = vmatprep.mubr.bf16.mxu0 %v833
      %1080 = vmatmul.mubr.bf16.gmra.mrb[0].mxu0 %v479
      %v1081 = vpop.f32.mrb[0].mxu0
      %v1082 = vadd.f32 %v386, %v1081
      %v1083 = vpop.f32.mrb[0].mxu0
      %v1084 = vadd.f32 %v390, %v1083
      %v1085 = vpop.f32.mrb[0].mxu0
      %v1086 = vadd.f32 %v386, %v1085
      %v1087 = vpop.f32.mrb[0].mxu0
      %v1088 = vadd.f32 %v390, %v1087
      %1089 = vmatprep.mubr.bf16.mxu0 %v836
      %1090 = vmatmul.mubr.bf16.gmra.mrb[0].mxu0 %v481
      %v1091 = vpop.f32.mrb[0].mxu0
      %v1092 = vadd.f32 %v386, %v1091
      %v1093 = vpop.f32.mrb[0].mxu0
      %v1094 = vadd.f32 %v390, %v1093
      %v1095 = vpop.f32.mrb[0].mxu0
      %v1096 = vadd.f32 %v386, %v1095
      %v1097 = vpop.f32.mrb[0].mxu0
      %v1098 = vadd.f32 %v390, %v1097
      %1099 = vmatprep.mubr.bf16.mxu0 %v839
      %1100 = vmatmul.mubr.bf16.gmra.mrb[0].mxu0 %v483
      %v1101 = vpop.f32.mrb[0].mxu0
      %v1102 = vadd.f32 %v386, %v1101
      %v1103 = vpop.f32.mrb[0].mxu0
      %v1104 = vadd.f32 %v390, %v1103
      %v1105 = vpop.f32.mrb[0].mxu0
      %v1106 = vadd.f32 %v386, %v1105
      %v1107 = vpop.f32.mrb[0].mxu0
      %v1108 = vadd.f32 %v390, %v1107
      %1109 = vmatprep.mubr.bf16.mxu0 %v842
      %1110 = vmatmul.mubr.bf16.gmra.mrb[0].mxu0 %v485
      %v1111 = vpop.f32.mrb[0].mxu0
      %v1112 = vadd.f32 %v386, %v1111
      %v1113 = vpop.f32.mrb[0].mxu0
      %v1114 = vadd.f32 %v390, %v1113
      %v1115 = vpop.f32.mrb[0].mxu0
      %v1116 = vadd.f32 %v386, %v1115
      %v1117 = vpop.f32.mrb[0].mxu0
      %v1118 = vadd.f32 %v390, %v1117
      %1119 = vmatprep.mubr.bf16.mxu0 %v845
      %1120 = vmatmul.mubr.bf16.gmra.mrb[0].mxu0 %v487
      %v1121 = vpop.f32.mrb[0].mxu0
      %v1122 = vadd.f32 %v386, %v1121
      %v1123 = vpop.f32.mrb[0].mxu0
      %v1124 = vadd.f32 %v390, %v1123
      %v1125 = vpop.f32.mrb[0].mxu0
      %v1126 = vadd.f32 %v386, %v1125
      %v1127 = vpop.f32.mrb[0].mxu0
      %v1128 = vadd.f32 %v390, %v1127
      %1129 = vmatprep.mubr.bf16.mxu0 %v848
      %1130 = vmatmul.mubr.bf16.gmra.mrb[0].mxu0 %v489
      %v1131 = vpop.f32.mrb[0].mxu0
      %v1132 = vadd.f32 %v386, %v1131
      %v1133 = vpop.f32.mrb[0].mxu0
      %v1134 = vadd.f32 %v390, %v1133
      %v1135 = vpop.f32.mrb[0].mxu0
      %v1136 = vadd.f32 %v386, %v1135
      %v1137 = vpop.f32.mrb[0].mxu0
      %v1138 = vadd.f32 %v390, %v1137
      %1139 = vmatprep.mubr.bf16.mxu0 %v851
      %1140 = vmatmul.mubr.bf16.gmra.mrb[0].mxu0 %v491
      %v1141 = vpop.f32.mrb[0].mxu0
      %v1142 = vadd.f32 %v386, %v1141
      %v1143 = vpop.f32.mrb[0].mxu0
      %v1144 = vadd.f32 %v390, %v1143
      %v1145 = vpop.f32.mrb[0].mxu0
      %v1146 = vadd.f32 %v386, %v1145
      %v1147 = vpop.f32.mrb[0].mxu0
      %v1148 = vadd.f32 %v390, %v1147
      %1149 = vmatprep.mubr.bf16.mxu0 %v854
      %1150 = vmatmul.mubr.bf16.gmra.mrb[0].mxu0 %v493
      %v1151 = vpop.f32.mrb[0].mxu0
      %v1152 = vadd.f32 %v386, %v1151
      %v1153 = vpop.f32.mrb[0].mxu0
      %v1154 = vadd.f32 %v390, %v1153
      %v1155 = vpop.f32.mrb[0].mxu0
      %v1156 = vadd.f32 %v386, %v1155
      %v1157 = vpop.f32.mrb[0].mxu0
      %v1158 = vadd.f32 %v390, %v1157
      %1159 = vmatprep.mubr.bf16.mxu0 %v857
      %1160 = vmatmul.mubr.bf16.gmra.mrb[0].mxu0 %v495
      %v1161 = vpop.f32.mrb[0].mxu0
      %v1162 = vadd.f32 %v386, %v1161
      %v1163 = vpop.f32.mrb[0].mxu0
      %v1164 = vadd.f32 %v390, %v1163
      %v1165 = vpop.f32.mrb[0].mxu0
      %v1166 = vadd.f32 %v386, %v1165
      %v1167 = vpop.f32.mrb[0].mxu0
      %v1168 = vadd.f32 %v390, %v1167
      %1169 = vmatprep.mubr.bf16.mxu0 %v860
      %1170 = vmatmul.mubr.bf16.gmra.mrb[0].mxu0 %v497
      %v1171 = vpop.f32.mrb[0].mxu0
      %v1172 = vadd.f32 %v386, %v1171
      %v1173 = vpop.f32.mrb[0].mxu0
      %v1174 = vadd.f32 %v390, %v1173
      %v1175 = vpop.f32.mrb[0].mxu0
      %v1176 = vadd.f32 %v386, %v1175
      %v1177 = vpop.f32.mrb[0].mxu0
      %v1178 = vadd.f32 %v390, %v1177
      %1179 = vmatprep.mubr.bf16.mxu0 %v863
      %1180 = vmatmul.mubr.bf16.gmra.mrb[0].mxu0 %v499
      %v1181 = vpop.f32.mrb[0].mxu0
      %v1182 = vadd.f32 %v386, %v1181
      %v1183 = vpop.f32.mrb[0].mxu0
      %v1184 = vadd.f32 %v390, %v1183
      %v1185 = vpop.f32.mrb[0].mxu0
      %v1186 = vadd.f32 %v386, %v1185
      %v1187 = vpop.f32.mrb[0].mxu0
      %v1188 = vadd.f32 %v390, %v1187
      %1189 = vdwg.mxu0
      %1190 = vmatprep.subr.bf16.mxu0 %v707
      %1191 = vmatpush1.bf16.msra.mxu0 %v706
      %1192 = vmatprep.subr.bf16.mxu0 %v713
      %1193 = vmatpush1.bf16.msra.mxu0 %v712
      %1194 = vmatprep.subr.bf16.mxu0 %v719
      %1195 = vmatpush1.bf16.msra.mxu0 %v718
      %1196 = vmatprep.subr.bf16.mxu0 %v725
      %1197 = vmatpush1.bf16.msra.mxu0 %v724
      %1198 = vmatprep.subr.bf16.mxu0 %v731
      %1199 = vmatpush1.bf16.msra.mxu0 %v730
      %1200 = vmatprep.subr.bf16.mxu0 %v737
      %1201 = vmatpush1.bf16.msra.mxu0 %v736
      %1202 = vmatprep.subr.bf16.mxu0 %v743
      %1203 = vmatpush1.bf16.msra.mxu0 %v742
      %1204 = vmatprep.subr.bf16.mxu0 %v749
      %1205 = vmatpush1.bf16.msra.mxu0 %v748
      %1206 = vmatprep.subr.bf16.mxu0 %v755
      %1207 = vmatpush1.bf16.msra.mxu0 %v754
      %1208 = vmatprep.subr.bf16.mxu0 %v761
      %1209 = vmatpush1.bf16.msra.mxu0 %v760
      %1210 = vmatprep.subr.bf16.mxu0 %v882
      %1211 = vmatpush1.bf16.msra.mxu0 %v879
      %1212 = vmatprep.subr.bf16.mxu0 0
      %1213 = vmatpush1.bf16.msra.mxu0 0
      %1214 = vmatprep.subr.bf16.mxu0 0
      %1215 = vmatpush1.bf16.msra.mxu0 0
      %1216 = vmatprep.subr.bf16.mxu0 0
      %1217 = vmatpush1.bf16.msra.mxu0 0
      %1218 = vmatprep.subr.bf16.mxu0 0
      %1219 = vmatpush1.bf16.msra.mxu0 0
      %1220 = vmatprep.subr.bf16.mxu0 0
      %1221 = vmatpush1.bf16.msra.mxu0 0
      %1222 = vmatprep.mubr.bf16.mxu0 %v830
      %1223 = vmatmul.mubr.bf16.gmra.mrb[0].mxu0 %v477
      %v1224 = vpop.f32.mrb[0].mxu0
      %v1225 = vadd.f32 %v394, %v1224
      %v1226 = vpop.f32.mrb[0].mxu0
      %v1227 = vadd.f32 %v398, %v1226
      %v1228 = vpop.f32.mrb[0].mxu0
      %v1229 = vadd.f32 %v394, %v1228
      %v1230 = vpop.f32.mrb[0].mxu0
      %v1231 = vadd.f32 %v398, %v1230
      %1232 = vmatprep.mubr.bf16.mxu0 %v833
      %1233 = vmatmul.mubr.bf16.gmra.mrb[0].mxu0 %v479
      %v1234 = vpop.f32.mrb[0].mxu0
      %v1235 = vadd.f32 %v394, %v1234
      %v1236 = vpop.f32.mrb[0].mxu0
      %v1237 = vadd.f32 %v398, %v1236
      %v1238 = vpop.f32.mrb[0].mxu0
      %v1239 = vadd.f32 %v394, %v1238
      %v1240 = vpop.f32.mrb[0].mxu0
      %v1241 = vadd.f32 %v398, %v1240
      %1242 = vmatprep.mubr.bf16.mxu0 %v836
      %1243 = vmatmul.mubr.bf16.gmra.mrb[0].mxu0 %v481
      %v1244 = vpop.f32.mrb[0].mxu0
      %v1245 = vadd.f32 %v394, %v1244
      %v1246 = vpop.f32.mrb[0].mxu0
      %v1247 = vadd.f32 %v398, %v1246
      %v1248 = vpop.f32.mrb[0].mxu0
      %v1249 = vadd.f32 %v394, %v1248
      %v1250 = vpop.f32.mrb[0].mxu0
      %v1251 = vadd.f32 %v398, %v1250
      %1252 = vmatprep.mubr.bf16.mxu0 %v839
      %1253 = vmatmul.mubr.bf16.gmra.mrb[0].mxu0 %v483
      %v1254 = vpop.f32.mrb[0].mxu0
      %v1255 = vadd.f32 %v394, %v1254
      %v1256 = vpop.f32.mrb[0].mxu0
      %v1257 = vadd.f32 %v398, %v1256
      %v1258 = vpop.f32.mrb[0].mxu0
      %v1259 = vadd.f32 %v394, %v1258
      %v1260 = vpop.f32.mrb[0].mxu0
      %v1261 = vadd.f32 %v398, %v1260
      %1262 = vmatprep.mubr.bf16.mxu0 %v842
      %1263 = vmatmul.mubr.bf16.gmra.mrb[0].mxu0 %v485
      %v1264 = vpop.f32.mrb[0].mxu0
      %v1265 = vadd.f32 %v394, %v1264
      %v1266 = vpop.f32.mrb[0].mxu0
      %v1267 = vadd.f32 %v398, %v1266
      %v1268 = vpop.f32.mrb[0].mxu0
      %v1269 = vadd.f32 %v394, %v1268
      %v1270 = vpop.f32.mrb[0].mxu0
      %v1271 = vadd.f32 %v398, %v1270
      %1272 = vmatprep.mubr.bf16.mxu0 %v845
      %1273 = vmatmul.mubr.bf16.gmra.mrb[0].mxu0 %v487
      %v1274 = vpop.f32.mrb[0].mxu0
      %v1275 = vadd.f32 %v394, %v1274
      %v1276 = vpop.f32.mrb[0].mxu0
      %v1277 = vadd.f32 %v398, %v1276
      %v1278 = vpop.f32.mrb[0].mxu0
      %v1279 = vadd.f32 %v394, %v1278
      %v1280 = vpop.f32.mrb[0].mxu0
      %v1281 = vadd.f32 %v398, %v1280
      %1282 = vmatprep.mubr.bf16.mxu0 %v848
      %1283 = vmatmul.mubr.bf16.gmra.mrb[0].mxu0 %v489
      %v1284 = vpop.f32.mrb[0].mxu0
      %v1285 = vadd.f32 %v394, %v1284
      %v1286 = vpop.f32.mrb[0].mxu0
      %v1287 = vadd.f32 %v398, %v1286
      %v1288 = vpop.f32.mrb[0].mxu0
      %v1289 = vadd.f32 %v394, %v1288
      %v1290 = vpop.f32.mrb[0].mxu0
      %v1291 = vadd.f32 %v398, %v1290
      %1292 = vmatprep.mubr.bf16.mxu0 %v851
      %1293 = vmatmul.mubr.bf16.gmra.mrb[0].mxu0 %v491
      %v1294 = vpop.f32.mrb[0].mxu0
      %v1295 = vadd.f32 %v394, %v1294
      %v1296 = vpop.f32.mrb[0].mxu0
      %v1297 = vadd.f32 %v398, %v1296
      %v1298 = vpop.f32.mrb[0].mxu0
      %v1299 = vadd.f32 %v394, %v1298
      %v1300 = vpop.f32.mrb[0].mxu0
      %v1301 = vadd.f32 %v398, %v1300
      %1302 = vmatprep.mubr.bf16.mxu0 %v854
      %1303 = vmatmul.mubr.bf16.gmra.mrb[0].mxu0 %v493
      %v1304 = vpop.f32.mrb[0].mxu0
      %v1305 = vadd.f32 %v394, %v1304
      %v1306 = vpop.f32.mrb[0].mxu0
      %v1307 = vadd.f32 %v398, %v1306
      %v1308 = vpop.f32.mrb[0].mxu0
      %v1309 = vadd.f32 %v394, %v1308
      %v1310 = vpop.f32.mrb[0].mxu0
      %v1311 = vadd.f32 %v398, %v1310
      %1312 = vmatprep.mubr.bf16.mxu0 %v857
      %1313 = vmatmul.mubr.bf16.gmra.mrb[0].mxu0 %v495
      %v1314 = vpop.f32.mrb[0].mxu0
      %v1315 = vadd.f32 %v394, %v1314
      %v1316 = vpop.f32.mrb[0].mxu0
      %v1317 = vadd.f32 %v398, %v1316
      %v1318 = vpop.f32.mrb[0].mxu0
      %v1319 = vadd.f32 %v394, %v1318
      %v1320 = vpop.f32.mrb[0].mxu0
      %v1321 = vadd.f32 %v398, %v1320
      %1322 = vmatprep.mubr.bf16.mxu0 %v860
      %1323 = vmatmul.mubr.bf16.gmra.mrb[0].mxu0 %v497
      %v1324 = vpop.f32.mrb[0].mxu0
      %v1325 = vadd.f32 %v394, %v1324
      %v1326 = vpop.f32.mrb[0].mxu0
      %v1327 = vadd.f32 %v398, %v1326
      %v1328 = vpop.f32.mrb[0].mxu0
      %v1329 = vadd.f32 %v394, %v1328
      %v1330 = vpop.f32.mrb[0].mxu0
      %v1331 = vadd.f32 %v398, %v1330
      %1332 = vmatprep.mubr.bf16.mxu0 %v863
      %1333 = vmatmul.mubr.bf16.gmra.mrb[0].mxu0 %v499
      %v1334 = vpop.f32.mrb[0].mxu0
      %v1335 = vadd.f32 %v394, %v1334
      %v1336 = vpop.f32.mrb[0].mxu0
      %v1337 = vadd.f32 %v398, %v1336
      %v1338 = vpop.f32.mrb[0].mxu0
      %v1339 = vadd.f32 %v394, %v1338
      %v1340 = vpop.f32.mrb[0].mxu0
      %v1341 = vadd.f32 %v398, %v1340
      %1342 = vdwg.mxu0
      %v1343 = vmax.f32 %v919, 0.0
      %v1344 = vmax.f32 %v921, 0.0
      %v1345 = vmax.f32 %v1072, 0.0
      %v1346 = vmax.f32 %v1074, 0.0
      %v1347 = vmax.f32 %v1225, 0.0
      %v1348 = vmax.f32 %v1227, 0.0
      %v1349 = vmax.f32 %v923, 0.0
      %v1350 = vmax.f32 %v925, 0.0
      %v1351 = vmax.f32 %v1076, 0.0
      %v1352 = vmax.f32 %v1078, 0.0
      %v1353 = vmax.f32 %v1229, 0.0
      %v1354 = vmax.f32 %v1231, 0.0
      %v1355 = vmax.f32 %v929, 0.0
      %v1356 = vmax.f32 %v931, 0.0
      %v1357 = vmax.f32 %v1082, 0.0
      %v1358 = vmax.f32 %v1084, 0.0
      %v1359 = vmax.f32 %v1235, 0.0
      %v1360 = vmax.f32 %v1237, 0.0
      %v1361 = vmax.f32 %v933, 0.0
      %v1362 = vmax.f32 %v935, 0.0
      %v1363 = vmax.f32 %v1086, 0.0
      %v1364 = vmax.f32 %v1088, 0.0
      %v1365 = vmax.f32 %v1239, 0.0
      %v1366 = vmax.f32 %v1241, 0.0
      %v1367 = vmax.f32 %v939, 0.0
      %v1368 = vmax.f32 %v941, 0.0
      %v1369 = vmax.f32 %v1092, 0.0
      %v1370 = vmax.f32 %v1094, 0.0
      %v1371 = vmax.f32 %v1245, 0.0
      %v1372 = vmax.f32 %v1247, 0.0
      %v1373 = vmax.f32 %v943, 0.0
      %v1374 = vmax.f32 %v945, 0.0
      %v1375 = vmax.f32 %v1096, 0.0
      %v1376 = vmax.f32 %v1098, 0.0
      %v1377 = vmax.f32 %v1249, 0.0
      %v1378 = vmax.f32 %v1251, 0.0
      %v1379 = vmax.f32 %v949, 0.0
      %v1380 = vmax.f32 %v951, 0.0
      %v1381 = vmax.f32 %v1102, 0.0
      %v1382 = vmax.f32 %v1104, 0.0
      %v1383 = vmax.f32 %v1255, 0.0
      %v1384 = vmax.f32 %v1257, 0.0
      %v1385 = vmax.f32 %v953, 0.0
      %v1386 = vmax.f32 %v955, 0.0
      %v1387 = vmax.f32 %v1106, 0.0
      %v1388 = vmax.f32 %v1108, 0.0
      %v1389 = vmax.f32 %v1259, 0.0
      %v1390 = vmax.f32 %v1261, 0.0
      %v1391 = vmax.f32 %v959, 0.0
      %v1392 = vmax.f32 %v961, 0.0
      %v1393 = vmax.f32 %v1112, 0.0
      %v1394 = vmax.f32 %v1114, 0.0
      %v1395 = vmax.f32 %v1265, 0.0
      %v1396 = vmax.f32 %v1267, 0.0
      %v1397 = vmax.f32 %v963, 0.0
      %v1398 = vmax.f32 %v965, 0.0
      %v1399 = vmax.f32 %v1116, 0.0
      %v1400 = vmax.f32 %v1118, 0.0
      %v1401 = vmax.f32 %v1269, 0.0
      %v1402 = vmax.f32 %v1271, 0.0
      %v1403 = vmax.f32 %v969, 0.0
      %v1404 = vmax.f32 %v971, 0.0
      %v1405 = vmax.f32 %v1122, 0.0
      %v1406 = vmax.f32 %v1124, 0.0
      %v1407 = vmax.f32 %v1275, 0.0
      %v1408 = vmax.f32 %v1277, 0.0
      %v1409 = vmax.f32 %v973, 0.0
      %v1410 = vmax.f32 %v975, 0.0
      %v1411 = vmax.f32 %v1126, 0.0
      %v1412 = vmax.f32 %v1128, 0.0
      %v1413 = vmax.f32 %v1279, 0.0
      %v1414 = vmax.f32 %v1281, 0.0
      %v1415 = vmax.f32 %v979, 0.0
      %v1416 = vmax.f32 %v981, 0.0
      %v1417 = vmax.f32 %v1132, 0.0
      %v1418 = vmax.f32 %v1134, 0.0
      %v1419 = vmax.f32 %v1285, 0.0
      %v1420 = vmax.f32 %v1287, 0.0
      %v1421 = vmax.f32 %v983, 0.0
      %v1422 = vmax.f32 %v985, 0.0
      %v1423 = vmax.f32 %v1136, 0.0
      %v1424 = vmax.f32 %v1138, 0.0
      %v1425 = vmax.f32 %v1289, 0.0
      %v1426 = vmax.f32 %v1291, 0.0
      %v1427 = vmax.f32 %v989, 0.0
      %v1428 = vmax.f32 %v991, 0.0
      %v1429 = vmax.f32 %v1142, 0.0
      %v1430 = vmax.f32 %v1144, 0.0
      %v1431 = vmax.f32 %v1295, 0.0
      %v1432 = vmax.f32 %v1297, 0.0
      %v1433 = vmax.f32 %v993, 0.0
      %v1434 = vmax.f32 %v995, 0.0
      %v1435 = vmax.f32 %v1146, 0.0
      %v1436 = vmax.f32 %v1148, 0.0
      %v1437 = vmax.f32 %v1299, 0.0
      %v1438 = vmax.f32 %v1301, 0.0
      %v1439 = vmax.f32 %v999, 0.0
      %v1440 = vmax.f32 %v1001, 0.0
      %v1441 = vmax.f32 %v1152, 0.0
      %v1442 = vmax.f32 %v1154, 0.0
      %v1443 = vmax.f32 %v1305, 0.0
      %v1444 = vmax.f32 %v1307, 0.0
      %v1445 = vmax.f32 %v1003, 0.0
      %v1446 = vmax.f32 %v1005, 0.0
      %v1447 = vmax.f32 %v1156, 0.0
      %v1448 = vmax.f32 %v1158, 0.0
      %v1449 = vmax.f32 %v1309, 0.0
      %v1450 = vmax.f32 %v1311, 0.0
      %v1451 = vmax.f32 %v1009, 0.0
      %v1452 = vmax.f32 %v1011, 0.0
      %v1453 = vmax.f32 %v1162, 0.0
      %v1454 = vmax.f32 %v1164, 0.0
      %v1455 = vmax.f32 %v1315, 0.0
      %v1456 = vmax.f32 %v1317, 0.0
      %v1457 = vmax.f32 %v1013, 0.0
      %v1458 = vmax.f32 %v1015, 0.0
      %v1459 = vmax.f32 %v1166, 0.0
      %v1460 = vmax.f32 %v1168, 0.0
      %v1461 = vmax.f32 %v1319, 0.0
      %v1462 = vmax.f32 %v1321, 0.0
      %v1463 = vmax.f32 %v1019, 0.0
      %v1464 = vmax.f32 %v1021, 0.0
      %v1465 = vmax.f32 %v1172, 0.0
      %v1466 = vmax.f32 %v1174, 0.0
      %v1467 = vmax.f32 %v1325, 0.0
      %v1468 = vmax.f32 %v1327, 0.0
      %v1469 = vmax.f32 %v1023, 0.0
      %v1470 = vmax.f32 %v1025, 0.0
      %v1471 = vmax.f32 %v1176, 0.0
      %v1472 = vmax.f32 %v1178, 0.0
      %v1473 = vmax.f32 %v1329, 0.0
      %v1474 = vmax.f32 %v1331, 0.0
      %v1475 = vmax.f32 %v1029, 0.0
      %v1476 = vmax.f32 %v1031, 0.0
      %v1477 = vmax.f32 %v1182, 0.0
      %v1478 = vmax.f32 %v1184, 0.0
      %v1479 = vmax.f32 %v1335, 0.0
      %v1480 = vmax.f32 %v1337, 0.0
      %v1481 = vmax.f32 %v1033, 0.0
      %v1482 = vmax.f32 %v1035, 0.0
      %v1483 = vmax.f32 %v1186, 0.0
      %v1484 = vmax.f32 %v1188, 0.0
      %v1485 = vmax.f32 %v1339, 0.0
      %v1486 = vmax.f32 %v1341, 0.0
      %1535 = vrot.lane.b32.xlu0 %v1344, 64
      %v1536 = vpop.permute.xlu0 %1535
      %1537 = vrot.lane.b32.xlu0 %v1345, 64
      %v1538 = vpop.permute.xlu0 %1537
      %1539 = vrot.lane.b32.xlu0 %v1350, 64
      %v1540 = vpop.permute.xlu0 %1539
      %1541 = vrot.lane.b32.xlu0 %v1351, 64
      %v1542 = vpop.permute.xlu0 %1541
      %1543 = vrot.lane.b32.xlu0 %v1356, 64
      %v1544 = vpop.permute.xlu0 %1543
      %1545 = vrot.lane.b32.xlu0 %v1357, 64
      %v1546 = vpop.permute.xlu0 %1545
      %1547 = vrot.lane.b32.xlu0 %v1362, 64
      %v1548 = vpop.permute.xlu0 %1547
      %1549 = vrot.lane.b32.xlu0 %v1363, 64
      %v1550 = vpop.permute.xlu0 %1549
      %1551 = vrot.lane.b32.xlu0 %v1368, 64
      %v1552 = vpop.permute.xlu0 %1551
      %1553 = vrot.lane.b32.xlu0 %v1369, 64
      %v1554 = vpop.permute.xlu0 %1553
      %1555 = vrot.lane.b32.xlu0 %v1374, 64
      %v1556 = vpop.permute.xlu0 %1555
      %1557 = vrot.lane.b32.xlu0 %v1375, 64
      %v1558 = vpop.permute.xlu0 %1557
      %1559 = vrot.lane.b32.xlu0 %v1380, 64
      %v1560 = vpop.permute.xlu0 %1559
      %1561 = vrot.lane.b32.xlu0 %v1381, 64
      %v1562 = vpop.permute.xlu0 %1561
      %1563 = vrot.lane.b32.xlu0 %v1386, 64
      %v1564 = vpop.permute.xlu0 %1563
      %1565 = vrot.lane.b32.xlu0 %v1387, 64
      %v1566 = vpop.permute.xlu0 %1565
      %1567 = vrot.lane.b32.xlu0 %v1392, 64
      %v1568 = vpop.permute.xlu0 %1567
      %1569 = vrot.lane.b32.xlu0 %v1393, 64
      %v1570 = vpop.permute.xlu0 %1569
      %1571 = vrot.lane.b32.xlu0 %v1398, 64
      %v1572 = vpop.permute.xlu0 %1571
      %1573 = vrot.lane.b32.xlu0 %v1399, 64
      %v1574 = vpop.permute.xlu0 %1573
      %1575 = vrot.lane.b32.xlu0 %v1404, 64
      %v1576 = vpop.permute.xlu0 %1575
      %1577 = vrot.lane.b32.xlu0 %v1405, 64
      %v1578 = vpop.permute.xlu0 %1577
      %1579 = vrot.lane.b32.xlu0 %v1410, 64
      %v1580 = vpop.permute.xlu0 %1579
      %1581 = vrot.lane.b32.xlu0 %v1411, 64
      %v1582 = vpop.permute.xlu0 %1581
      %1583 = vrot.lane.b32.xlu0 %v1416, 64
      %v1584 = vpop.permute.xlu0 %1583
      %1585 = vrot.lane.b32.xlu0 %v1417, 64
      %v1586 = vpop.permute.xlu0 %1585
      %1587 = vrot.lane.b32.xlu0 %v1422, 64
      %v1588 = vpop.permute.xlu0 %1587
      %1589 = vrot.lane.b32.xlu0 %v1423, 64
      %v1590 = vpop.permute.xlu0 %1589
      %1591 = vrot.lane.b32.xlu0 %v1428, 64
      %v1592 = vpop.permute.xlu0 %1591
      %1593 = vrot.lane.b32.xlu0 %v1429, 64
      %v1594 = vpop.permute.xlu0 %1593
      %1595 = vrot.lane.b32.xlu0 %v1434, 64
      %v1596 = vpop.permute.xlu0 %1595
      %1597 = vrot.lane.b32.xlu0 %v1435, 64
      %v1598 = vpop.permute.xlu0 %1597
      %1599 = vrot.lane.b32.xlu0 %v1440, 64
      %v1600 = vpop.permute.xlu0 %1599
      %1601 = vrot.lane.b32.xlu0 %v1441, 64
      %v1602 = vpop.permute.xlu0 %1601
      %1603 = vrot.lane.b32.xlu0 %v1446, 64
      %v1604 = vpop.permute.xlu0 %1603
      %1605 = vrot.lane.b32.xlu0 %v1447, 64
      %v1606 = vpop.permute.xlu0 %1605
      %1607 = vrot.lane.b32.xlu0 %v1452, 64
      %v1608 = vpop.permute.xlu0 %1607
      %1609 = vrot.lane.b32.xlu0 %v1453, 64
      %v1610 = vpop.permute.xlu0 %1609
      %1611 = vrot.lane.b32.xlu0 %v1458, 64
      %v1612 = vpop.permute.xlu0 %1611
      %1613 = vrot.lane.b32.xlu0 %v1459, 64
      %v1614 = vpop.permute.xlu0 %1613
      %1615 = vrot.lane.b32.xlu0 %v1464, 64
      %v1616 = vpop.permute.xlu0 %1615
      %1617 = vrot.lane.b32.xlu0 %v1465, 64
      %v1618 = vpop.permute.xlu0 %1617
      %1619 = vrot.lane.b32.xlu0 %v1470, 64
      %v1620 = vpop.permute.xlu0 %1619
      %1621 = vrot.lane.b32.xlu0 %v1471, 64
      %v1622 = vpop.permute.xlu0 %1621
      %1623 = vrot.lane.b32.xlu0 %v1476, 64
      %v1624 = vpop.permute.xlu0 %1623
      %1625 = vrot.lane.b32.xlu0 %v1477, 64
      %v1626 = vpop.permute.xlu0 %1625
      %1627 = vrot.lane.b32.xlu0 %v1482, 64
      %v1628 = vpop.permute.xlu0 %1627
      %1629 = vrot.lane.b32.xlu0 %v1483, 64
      %v1630 = vpop.permute.xlu0 %1629
      %vm1631 = vcmask 523264
      %v1632 = vsel %vm1631, %v1536, %v1538
      %v1633 = vsel %vm1631, %v1540, %v1542
      %v1634 = vsel %vm1631, %v1544, %v1546
      %v1635 = vsel %vm1631, %v1548, %v1550
      %v1636 = vsel %vm1631, %v1552, %v1554
      %v1637 = vsel %vm1631, %v1556, %v1558
      %v1638 = vsel %vm1631, %v1560, %v1562
      %v1639 = vsel %vm1631, %v1564, %v1566
      %v1640 = vsel %vm1631, %v1568, %v1570
      %v1641 = vsel %vm1631, %v1572, %v1574
      %v1642 = vsel %vm1631, %v1576, %v1578
      %v1643 = vsel %vm1631, %v1580, %v1582
      %v1644 = vsel %vm1631, %v1584, %v1586
      %v1645 = vsel %vm1631, %v1588, %v1590
      %v1646 = vsel %vm1631, %v1592, %v1594
      %v1647 = vsel %vm1631, %v1596, %v1598
      %v1648 = vsel %vm1631, %v1600, %v1602
      %v1649 = vsel %vm1631, %v1604, %v1606
      %v1650 = vsel %vm1631, %v1608, %v1610
      %v1651 = vsel %vm1631, %v1612, %v1614
      %v1652 = vsel %vm1631, %v1616, %v1618
      %v1653 = vsel %vm1631, %v1620, %v1622
      %v1654 = vsel %vm1631, %v1624, %v1626
      %v1655 = vsel %vm1631, %v1628, %v1630
      %v1704 = vmax.f32 %v1343, %v1632
      %v1705 = vmax.f32 %v1344, %v1538
      %v1706 = vmax.f32 %v1349, %v1633
      %v1707 = vmax.f32 %v1350, %v1542
      %v1708 = vmax.f32 %v1355, %v1634
      %v1709 = vmax.f32 %v1356, %v1546
      %v1710 = vmax.f32 %v1361, %v1635
      %v1711 = vmax.f32 %v1362, %v1550
      %v1712 = vmax.f32 %v1367, %v1636
      %v1713 = vmax.f32 %v1368, %v1554
      %v1714 = vmax.f32 %v1373, %v1637
      %v1715 = vmax.f32 %v1374, %v1558
      %v1716 = vmax.f32 %v1379, %v1638
      %v1717 = vmax.f32 %v1380, %v1562
      %v1718 = vmax.f32 %v1385, %v1639
      %v1719 = vmax.f32 %v1386, %v1566
      %v1720 = vmax.f32 %v1391, %v1640
      %v1721 = vmax.f32 %v1392, %v1570
      %v1722 = vmax.f32 %v1397, %v1641
      %v1723 = vmax.f32 %v1398, %v1574
      %v1724 = vmax.f32 %v1403, %v1642
      %v1725 = vmax.f32 %v1404, %v1578
      %v1726 = vmax.f32 %v1409, %v1643
      %v1727 = vmax.f32 %v1410, %v1582
      %v1728 = vmax.f32 %v1415, %v1644
      %v1729 = vmax.f32 %v1416, %v1586
      %v1730 = vmax.f32 %v1421, %v1645
      %v1731 = vmax.f32 %v1422, %v1590
      %v1732 = vmax.f32 %v1427, %v1646
      %v1733 = vmax.f32 %v1428, %v1594
      %v1734 = vmax.f32 %v1433, %v1647
      %v1735 = vmax.f32 %v1434, %v1598
      %v1736 = vmax.f32 %v1439, %v1648
      %v1737 = vmax.f32 %v1440, %v1602
      %v1738 = vmax.f32 %v1445, %v1649
      %v1739 = vmax.f32 %v1446, %v1606
      %v1740 = vmax.f32 %v1451, %v1650
      %v1741 = vmax.f32 %v1452, %v1610
      %v1742 = vmax.f32 %v1457, %v1651
      %v1743 = vmax.f32 %v1458, %v1614
      %v1744 = vmax.f32 %v1463, %v1652
      %v1745 = vmax.f32 %v1464, %v1618
      %v1746 = vmax.f32 %v1469, %v1653
      %v1747 = vmax.f32 %v1470, %v1622
      %v1748 = vmax.f32 %v1475, %v1654
      %v1749 = vmax.f32 %v1476, %v1626
      %v1750 = vmax.f32 %v1481, %v1655
      %v1751 = vmax.f32 %v1482, %v1630
      %1800 = vrot.lane.b32.xlu0 %v1347, 64
      %v1801 = vpop.permute.xlu0 %1800
      %1802 = vrot.lane.b32.xlu0 %v1348, 64
      %v1803 = vpop.permute.xlu0 %1802
      %1804 = vrot.lane.b32.xlu0 %v1353, 64
      %v1805 = vpop.permute.xlu0 %1804
      %1806 = vrot.lane.b32.xlu0 %v1354, 64
      %v1807 = vpop.permute.xlu0 %1806
      %1808 = vrot.lane.b32.xlu0 %v1359, 64
      %v1809 = vpop.permute.xlu0 %1808
      %1810 = vrot.lane.b32.xlu0 %v1360, 64
      %v1811 = vpop.permute.xlu0 %1810
      %1812 = vrot.lane.b32.xlu0 %v1365, 64
      %v1813 = vpop.permute.xlu0 %1812
      %1814 = vrot.lane.b32.xlu0 %v1366, 64
      %v1815 = vpop.permute.xlu0 %1814
      %1816 = vrot.lane.b32.xlu0 %v1371, 64
      %v1817 = vpop.permute.xlu0 %1816
      %1818 = vrot.lane.b32.xlu0 %v1372, 64
      %v1819 = vpop.permute.xlu0 %1818
      %1820 = vrot.lane.b32.xlu0 %v1377, 64
      %v1821 = vpop.permute.xlu0 %1820
      %1822 = vrot.lane.b32.xlu0 %v1378, 64
      %v1823 = vpop.permute.xlu0 %1822
      %1824 = vrot.lane.b32.xlu0 %v1383, 64
      %v1825 = vpop.permute.xlu0 %1824
      %1826 = vrot.lane.b32.xlu0 %v1384, 64
      %v1827 = vpop.permute.xlu0 %1826
      %1828 = vrot.lane.b32.xlu0 %v1389, 64
      %v1829 = vpop.permute.xlu0 %1828
      %1830 = vrot.lane.b32.xlu0 %v1390, 64
      %v1831 = vpop.permute.xlu0 %1830
      %1832 = vrot.lane.b32.xlu0 %v1395, 64
      %v1833 = vpop.permute.xlu0 %1832
      %1834 = vrot.lane.b32.xlu0 %v1396, 64
      %v1835 = vpop.permute.xlu0 %1834
      %1836 = vrot.lane.b32.xlu0 %v1401, 64
      %v1837 = vpop.permute.xlu0 %1836
      %1838 = vrot.lane.b32.xlu0 %v1402, 64
      %v1839 = vpop.permute.xlu0 %1838
      %1840 = vrot.lane.b32.xlu0 %v1407, 64
      %v1841 = vpop.permute.xlu0 %1840
      %1842 = vrot.lane.b32.xlu0 %v1408, 64
      %v1843 = vpop.permute.xlu0 %1842
      %1844 = vrot.lane.b32.xlu0 %v1413, 64
      %v1845 = vpop.permute.xlu0 %1844
      %1846 = vrot.lane.b32.xlu0 %v1414, 64
      %v1847 = vpop.permute.xlu0 %1846
      %1848 = vrot.lane.b32.xlu0 %v1419, 64
      %v1849 = vpop.permute.xlu0 %1848
      %1850 = vrot.lane.b32.xlu0 %v1420, 64
      %v1851 = vpop.permute.xlu0 %1850
      %1852 = vrot.lane.b32.xlu0 %v1425, 64
      %v1853 = vpop.permute.xlu0 %1852
      %1854 = vrot.lane.b32.xlu0 %v1426, 64
      %v1855 = vpop.permute.xlu0 %1854
      %1856 = vrot.lane.b32.xlu0 %v1431, 64
      %v1857 = vpop.permute.xlu0 %1856
      %1858 = vrot.lane.b32.xlu0 %v1432, 64
      %v1859 = vpop.permute.xlu0 %1858
      %1860 = vrot.lane.b32.xlu0 %v1437, 64
      %v1861 = vpop.permute.xlu0 %1860
      %1862 = vrot.lane.b32.xlu0 %v1438, 64
      %v1863 = vpop.permute.xlu0 %1862
      %1864 = vrot.lane.b32.xlu0 %v1443, 64
      %v1865 = vpop.permute.xlu0 %1864
      %1866 = vrot.lane.b32.xlu0 %v1444, 64
      %v1867 = vpop.permute.xlu0 %1866
      %1868 = vrot.lane.b32.xlu0 %v1449, 64
      %v1869 = vpop.permute.xlu0 %1868
      %1870 = vrot.lane.b32.xlu0 %v1450, 64
      %v1871 = vpop.permute.xlu0 %1870
      %1872 = vrot.lane.b32.xlu0 %v1455, 64
      %v1873 = vpop.permute.xlu0 %1872
      %1874 = vrot.lane.b32.xlu0 %v1456, 64
      %v1875 = vpop.permute.xlu0 %1874
      %1876 = vrot.lane.b32.xlu0 %v1461, 64
      %v1877 = vpop.permute.xlu0 %1876
      %1878 = vrot.lane.b32.xlu0 %v1462, 64
      %v1879 = vpop.permute.xlu0 %1878
      %1880 = vrot.lane.b32.xlu0 %v1467, 64
      %v1881 = vpop.permute.xlu0 %1880
      %1882 = vrot.lane.b32.xlu0 %v1468, 64
      %v1883 = vpop.permute.xlu0 %1882
      %1884 = vrot.lane.b32.xlu0 %v1473, 64
      %v1885 = vpop.permute.xlu0 %1884
      %1886 = vrot.lane.b32.xlu0 %v1474, 64
      %v1887 = vpop.permute.xlu0 %1886
      %1888 = vrot.lane.b32.xlu0 %v1479, 64
      %v1889 = vpop.permute.xlu0 %1888
      %1890 = vrot.lane.b32.xlu0 %v1480, 64
      %v1891 = vpop.permute.xlu0 %1890
      %1892 = vrot.lane.b32.xlu0 %v1485, 64
      %v1893 = vpop.permute.xlu0 %1892
      %1894 = vrot.lane.b32.xlu0 %v1486, 64
      %v1895 = vpop.permute.xlu0 %1894
      %v1896 = vsel %vm1631, %v1801, %v1803
      %v1897 = vsel %vm1631, %v1805, %v1807
      %v1898 = vsel %vm1631, %v1809, %v1811
      %v1899 = vsel %vm1631, %v1813, %v1815
      %v1900 = vsel %vm1631, %v1817, %v1819
      %v1901 = vsel %vm1631, %v1821, %v1823
      %v1902 = vsel %vm1631, %v1825, %v1827
      %v1903 = vsel %vm1631, %v1829, %v1831
      %v1904 = vsel %vm1631, %v1833, %v1835
      %v1905 = vsel %vm1631, %v1837, %v1839
      %v1906 = vsel %vm1631, %v1841, %v1843
      %v1907 = vsel %vm1631, %v1845, %v1847
      %v1908 = vsel %vm1631, %v1849, %v1851
      %v1909 = vsel %vm1631, %v1853, %v1855
      %v1910 = vsel %vm1631, %v1857, %v1859
      %v1911 = vsel %vm1631, %v1861, %v1863
      %v1912 = vsel %vm1631, %v1865, %v1867
      %v1913 = vsel %vm1631, %v1869, %v1871
      %v1914 = vsel %vm1631, %v1873, %v1875
      %v1915 = vsel %vm1631, %v1877, %v1879
      %v1916 = vsel %vm1631, %v1881, %v1883
      %v1917 = vsel %vm1631, %v1885, %v1887
      %v1918 = vsel %vm1631, %v1889, %v1891
      %v1919 = vsel %vm1631, %v1893, %v1895
      %v1968 = vmax.f32 %v1346, %v1896
      %v1969 = vmax.f32 %v1347, %v1803
      %v1970 = vmax.f32 %v1352, %v1897
      %v1971 = vmax.f32 %v1353, %v1807
      %v1972 = vmax.f32 %v1358, %v1898
      %v1973 = vmax.f32 %v1359, %v1811
      %v1974 = vmax.f32 %v1364, %v1899
      %v1975 = vmax.f32 %v1365, %v1815
      %v1976 = vmax.f32 %v1370, %v1900
      %v1977 = vmax.f32 %v1371, %v1819
      %v1978 = vmax.f32 %v1376, %v1901
      %v1979 = vmax.f32 %v1377, %v1823
      %v1980 = vmax.f32 %v1382, %v1902
      %v1981 = vmax.f32 %v1383, %v1827
      %v1982 = vmax.f32 %v1388, %v1903
      %v1983 = vmax.f32 %v1389, %v1831
      %v1984 = vmax.f32 %v1394, %v1904
      %v1985 = vmax.f32 %v1395, %v1835
      %v1986 = vmax.f32 %v1400, %v1905
      %v1987 = vmax.f32 %v1401, %v1839
      %v1988 = vmax.f32 %v1406, %v1906
      %v1989 = vmax.f32 %v1407, %v1843
      %v1990 = vmax.f32 %v1412, %v1907
      %v1991 = vmax.f32 %v1413, %v1847
      %v1992 = vmax.f32 %v1418, %v1908
      %v1993 = vmax.f32 %v1419, %v1851
      %v1994 = vmax.f32 %v1424, %v1909
      %v1995 = vmax.f32 %v1425, %v1855
      %v1996 = vmax.f32 %v1430, %v1910
      %v1997 = vmax.f32 %v1431, %v1859
      %v1998 = vmax.f32 %v1436, %v1911
      %v1999 = vmax.f32 %v1437, %v1863
      %v2000 = vmax.f32 %v1442, %v1912
      %v2001 = vmax.f32 %v1443, %v1867
      %v2002 = vmax.f32 %v1448, %v1913
      %v2003 = vmax.f32 %v1449, %v1871
      %v2004 = vmax.f32 %v1454, %v1914
      %v2005 = vmax.f32 %v1455, %v1875
      %v2006 = vmax.f32 %v1460, %v1915
      %v2007 = vmax.f32 %v1461, %v1879
      %v2008 = vmax.f32 %v1466, %v1916
      %v2009 = vmax.f32 %v1467, %v1883
      %v2010 = vmax.f32 %v1472, %v1917
      %v2011 = vmax.f32 %v1473, %v1887
      %v2012 = vmax.f32 %v1478, %v1918
      %v2013 = vmax.f32 %v1479, %v1891
      %v2014 = vmax.f32 %v1484, %v1919
      %v2015 = vmax.f32 %v1485, %v1895
      %v2016 = vmax.f32 %v1704, %v1968
      %v2017 = vmax.f32 %v1705, %v1969
      %v2018 = vmax.f32 %v1706, %v1970
      %v2019 = vmax.f32 %v1707, %v1971
      %v2020 = vmax.f32 %v1708, %v1972
      %v2021 = vmax.f32 %v1709, %v1973
      %v2022 = vmax.f32 %v1710, %v1974
      %v2023 = vmax.f32 %v1711, %v1975
      %v2024 = vmax.f32 %v1712, %v1976
      %v2025 = vmax.f32 %v1713, %v1977
      %v2026 = vmax.f32 %v1714, %v1978
      %v2027 = vmax.f32 %v1715, %v1979
      %v2028 = vmax.f32 %v1716, %v1980
      %v2029 = vmax.f32 %v1717, %v1981
      %v2030 = vmax.f32 %v1718, %v1982
      %v2031 = vmax.f32 %v1719, %v1983
      %v2032 = vmax.f32 %v1720, %v1984
      %v2033 = vmax.f32 %v1721, %v1985
      %v2034 = vmax.f32 %v1722, %v1986
      %v2035 = vmax.f32 %v1723, %v1987
      %v2036 = vmax.f32 %v1724, %v1988
      %v2037 = vmax.f32 %v1725, %v1989
      %v2038 = vmax.f32 %v1726, %v1990
      %v2039 = vmax.f32 %v1727, %v1991
      %v2040 = vmax.f32 %v1728, %v1992
      %v2041 = vmax.f32 %v1729, %v1993
      %v2042 = vmax.f32 %v1730, %v1994
      %v2043 = vmax.f32 %v1731, %v1995
      %v2044 = vmax.f32 %v1732, %v1996
      %v2045 = vmax.f32 %v1733, %v1997
      %v2046 = vmax.f32 %v1734, %v1998
      %v2047 = vmax.f32 %v1735, %v1999
      %v2048 = vmax.f32 %v1736, %v2000
      %v2049 = vmax.f32 %v1737, %v2001
      %v2050 = vmax.f32 %v1738, %v2002
      %v2051 = vmax.f32 %v1739, %v2003
      %v2052 = vmax.f32 %v1740, %v2004
      %v2053 = vmax.f32 %v1741, %v2005
      %v2054 = vmax.f32 %v1742, %v2006
      %v2055 = vmax.f32 %v1743, %v2007
      %v2056 = vmax.f32 %v1744, %v2008
      %v2057 = vmax.f32 %v1745, %v2009
      %v2058 = vmax.f32 %v1746, %v2010
      %v2059 = vmax.f32 %v1747, %v2011
      %v2060 = vmax.f32 %v1748, %v2012
      %v2061 = vmax.f32 %v1749, %v2013
      %v2062 = vmax.f32 %v1750, %v2014
      %v2063 = vmax.f32 %v1751, %v2015
      %v2112 = vcombine.low %v2016, %v2017
      %v2113 = vcombine.high %v2016, %v2017
      %v2114 = vcombine.low %v2018, %v2019
      %v2115 = vcombine.high %v2018, %v2019
      %v2116 = vcombine.low %v2020, %v2021
      %v2117 = vcombine.high %v2020, %v2021
      %v2118 = vcombine.low %v2022, %v2023
      %v2119 = vcombine.high %v2022, %v2023
      %v2120 = vcombine.low %v2024, %v2025
      %v2121 = vcombine.high %v2024, %v2025
      %v2122 = vcombine.low %v2026, %v2027
      %v2123 = vcombine.high %v2026, %v2027
      %v2124 = vcombine.low %v2028, %v2029
      %v2125 = vcombine.high %v2028, %v2029
      %v2126 = vcombine.low %v2030, %v2031
      %v2127 = vcombine.high %v2030, %v2031
      %v2128 = vcombine.low %v2032, %v2033
      %v2129 = vcombine.high %v2032, %v2033
      %v2130 = vcombine.low %v2034, %v2035
      %v2131 = vcombine.high %v2034, %v2035
      %v2132 = vcombine.low %v2036, %v2037
      %v2133 = vcombine.high %v2036, %v2037
      %v2134 = vcombine.low %v2038, %v2039
      %v2135 = vcombine.high %v2038, %v2039
      %v2136 = vcombine.low %v2040, %v2041
      %v2137 = vcombine.high %v2040, %v2041
      %v2138 = vcombine.low %v2042, %v2043
      %v2139 = vcombine.high %v2042, %v2043
      %v2140 = vcombine.low %v2044, %v2045
      %v2141 = vcombine.high %v2044, %v2045
      %v2142 = vcombine.low %v2046, %v2047
      %v2143 = vcombine.high %v2046, %v2047
      %v2144 = vcombine.low %v2048, %v2049
      %v2145 = vcombine.high %v2048, %v2049
      %v2146 = vcombine.low %v2050, %v2051
      %v2147 = vcombine.high %v2050, %v2051
      %v2148 = vcombine.low %v2052, %v2053
      %v2149 = vcombine.high %v2052, %v2053
      %v2150 = vcombine.low %v2054, %v2055
      %v2151 = vcombine.high %v2054, %v2055
      %v2152 = vcombine.low %v2056, %v2057
      %v2153 = vcombine.high %v2056, %v2057
      %v2154 = vcombine.low %v2058, %v2059
      %v2155 = vcombine.high %v2058, %v2059
      %v2156 = vcombine.low %v2060, %v2061
      %v2157 = vcombine.high %v2060, %v2061
      %v2158 = vcombine.low %v2062, %v2063
      %v2159 = vcombine.high %v2062, %v2063
      %v2160 = vcombine.low %v2112, %v2113
      %v2161 = vcombine.high %v2112, %v2113
      %v2162 = vcombine.low %v2115, %v2116
      %v2163 = vcombine.high %v2115, %v2116
      %v2164 = vcombine.low %v2118, %v2119
      %v2165 = vcombine.high %v2118, %v2119
      %v2166 = vcombine.low %v2121, %v2122
      %v2167 = vcombine.high %v2121, %v2122
      %v2168 = vcombine.low %v2124, %v2125
      %v2169 = vcombine.high %v2124, %v2125
      %v2170 = vcombine.low %v2127, %v2128
      %v2171 = vcombine.high %v2127, %v2128
      %v2172 = vcombine.low %v2130, %v2131
      %v2173 = vcombine.high %v2130, %v2131
      %v2174 = vcombine.low %v2133, %v2134
      %v2175 = vcombine.high %v2133, %v2134
      %v2176 = vcombine.low %v2136, %v2137
      %v2177 = vcombine.high %v2136, %v2137
      %v2178 = vcombine.low %v2139, %v2140
      %v2179 = vcombine.high %v2139, %v2140
      %v2180 = vcombine.low %v2142, %v2143
      %v2181 = vcombine.high %v2142, %v2143
      %v2182 = vcombine.low %v2145, %v2146
      %v2183 = vcombine.high %v2145, %v2146
      %v2184 = vcombine.low %v2148, %v2149
      %v2185 = vcombine.high %v2148, %v2149
      %v2186 = vcombine.low %v2151, %v2152
      %v2187 = vcombine.high %v2151, %v2152
      %v2188 = vcombine.low %v2154, %v2155
      %v2189 = vcombine.high %v2154, %v2155
      %v2190 = vcombine.low %v2157, %v2158
      %v2191 = vcombine.high %v2157, %v2158
      %v2224 = vcombine.high %v2114, %v2114
      %v2225 = vcombine.high %v2117, %v2117
      %v2226 = vcombine.high %v2120, %v2120
      %v2227 = vcombine.high %v2123, %v2123
      %v2228 = vcombine.high %v2126, %v2126
      %v2229 = vcombine.high %v2129, %v2129
      %v2230 = vcombine.high %v2132, %v2132
      %v2231 = vcombine.high %v2135, %v2135
      %v2232 = vcombine.high %v2138, %v2138
      %v2233 = vcombine.high %v2141, %v2141
      %v2234 = vcombine.high %v2144, %v2144
      %v2235 = vcombine.high %v2147, %v2147
      %v2236 = vcombine.high %v2150, %v2150
      %v2237 = vcombine.high %v2153, %v2153
      %v2238 = vcombine.high %v2156, %v2156
      %v2239 = vcombine.high %v2159, %v2159
      %vm2240 = vcmask 1046528
      %v2241 = vrot.slane %v2160, 1
      %v2242 = vrot.slane %v2114, 1
      %v2243 = vsel %vm2240, %v2241, %v2242
      %v2244 = vrot.slane %v2161, 1
      %v2245 = vrot.slane %v2224, 1
      %v2246 = vsel %vm2240, %v2244, %v2245
      %v2247 = vrot.slane %v2162, 1
      %v2248 = vrot.slane %v2117, 1
      %v2249 = vsel %vm2240, %v2247, %v2248
      %v2250 = vrot.slane %v2163, 1
      %v2251 = vrot.slane %v2225, 1
      %v2252 = vsel %vm2240, %v2250, %v2251
      %v2253 = vrot.slane %v2164, 1
      %v2254 = vrot.slane %v2120, 1
      %v2255 = vsel %vm2240, %v2253, %v2254
      %v2256 = vrot.slane %v2165, 1
      %v2257 = vrot.slane %v2226, 1
      %v2258 = vsel %vm2240, %v2256, %v2257
      %v2259 = vrot.slane %v2166, 1
      %v2260 = vrot.slane %v2123, 1
      %v2261 = vsel %vm2240, %v2259, %v2260
      %v2262 = vrot.slane %v2167, 1
      %v2263 = vrot.slane %v2227, 1
      %v2264 = vsel %vm2240, %v2262, %v2263
      %v2265 = vrot.slane %v2168, 1
      %v2266 = vrot.slane %v2126, 1
      %v2267 = vsel %vm2240, %v2265, %v2266
      %v2268 = vrot.slane %v2169, 1
      %v2269 = vrot.slane %v2228, 1
      %v2270 = vsel %vm2240, %v2268, %v2269
      %v2271 = vrot.slane %v2170, 1
      %v2272 = vrot.slane %v2129, 1
      %v2273 = vsel %vm2240, %v2271, %v2272
      %v2274 = vrot.slane %v2171, 1
      %v2275 = vrot.slane %v2229, 1
      %v2276 = vsel %vm2240, %v2274, %v2275
      %v2277 = vrot.slane %v2172, 1
      %v2278 = vrot.slane %v2132, 1
      %v2279 = vsel %vm2240, %v2277, %v2278
      %v2280 = vrot.slane %v2173, 1
      %v2281 = vrot.slane %v2230, 1
      %v2282 = vsel %vm2240, %v2280, %v2281
      %v2283 = vrot.slane %v2174, 1
      %v2284 = vrot.slane %v2135, 1
      %v2285 = vsel %vm2240, %v2283, %v2284
      %v2286 = vrot.slane %v2175, 1
      %v2287 = vrot.slane %v2231, 1
      %v2288 = vsel %vm2240, %v2286, %v2287
      %v2289 = vrot.slane %v2176, 1
      %v2290 = vrot.slane %v2138, 1
      %v2291 = vsel %vm2240, %v2289, %v2290
      %v2292 = vrot.slane %v2177, 1
      %v2293 = vrot.slane %v2232, 1
      %v2294 = vsel %vm2240, %v2292, %v2293
      %v2295 = vrot.slane %v2178, 1
      %v2296 = vrot.slane %v2141, 1
      %v2297 = vsel %vm2240, %v2295, %v2296
      %v2298 = vrot.slane %v2179, 1
      %v2299 = vrot.slane %v2233, 1
      %v2300 = vsel %vm2240, %v2298, %v2299
      %v2301 = vrot.slane %v2180, 1
      %v2302 = vrot.slane %v2144, 1
      %v2303 = vsel %vm2240, %v2301, %v2302
      %v2304 = vrot.slane %v2181, 1
      %v2305 = vrot.slane %v2234, 1
      %v2306 = vsel %vm2240, %v2304, %v2305
      %v2307 = vrot.slane %v2182, 1
      %v2308 = vrot.slane %v2147, 1
      %v2309 = vsel %vm2240, %v2307, %v2308
      %v2310 = vrot.slane %v2183, 1
      %v2311 = vrot.slane %v2235, 1
      %v2312 = vsel %vm2240, %v2310, %v2311
      %v2313 = vrot.slane %v2184, 1
      %v2314 = vrot.slane %v2150, 1
      %v2315 = vsel %vm2240, %v2313, %v2314
      %v2316 = vrot.slane %v2185, 1
      %v2317 = vrot.slane %v2236, 1
      %v2318 = vsel %vm2240, %v2316, %v2317
      %v2319 = vrot.slane %v2186, 1
      %v2320 = vrot.slane %v2153, 1
      %v2321 = vsel %vm2240, %v2319, %v2320
      %v2322 = vrot.slane %v2187, 1
      %v2323 = vrot.slane %v2237, 1
      %v2324 = vsel %vm2240, %v2322, %v2323
      %v2325 = vrot.slane %v2188, 1
      %v2326 = vrot.slane %v2156, 1
      %v2327 = vsel %vm2240, %v2325, %v2326
      %v2328 = vrot.slane %v2189, 1
      %v2329 = vrot.slane %v2238, 1
      %v2330 = vsel %vm2240, %v2328, %v2329
      %v2331 = vrot.slane %v2190, 1
      %v2332 = vrot.slane %v2159, 1
      %v2333 = vsel %vm2240, %v2331, %v2332
      %v2334 = vrot.slane %v2191, 1
      %v2335 = vrot.slane %v2239, 1
      %v2336 = vsel %vm2240, %v2334, %v2335
      %2337 = vrot.lane.b32.xlu0 %v2243, 64
      %v2338 = vpop.permute.xlu0 %2337
      %2339 = vrot.lane.b32.xlu0 %v2246, 64
      %v2340 = vpop.permute.xlu0 %2339
      %2341 = vrot.lane.b32.xlu0 %v2249, 64
      %v2342 = vpop.permute.xlu0 %2341
      %2343 = vrot.lane.b32.xlu0 %v2252, 64
      %v2344 = vpop.permute.xlu0 %2343
      %2345 = vrot.lane.b32.xlu0 %v2255, 64
      %v2346 = vpop.permute.xlu0 %2345
      %2347 = vrot.lane.b32.xlu0 %v2258, 64
      %v2348 = vpop.permute.xlu0 %2347
      %2349 = vrot.lane.b32.xlu0 %v2261, 64
      %v2350 = vpop.permute.xlu0 %2349
      %2351 = vrot.lane.b32.xlu0 %v2264, 64
      %v2352 = vpop.permute.xlu0 %2351
      %2353 = vrot.lane.b32.xlu0 %v2267, 64
      %v2354 = vpop.permute.xlu0 %2353
      %2355 = vrot.lane.b32.xlu0 %v2270, 64
      %v2356 = vpop.permute.xlu0 %2355
      %2357 = vrot.lane.b32.xlu0 %v2273, 64
      %v2358 = vpop.permute.xlu0 %2357
      %2359 = vrot.lane.b32.xlu0 %v2276, 64
      %v2360 = vpop.permute.xlu0 %2359
      %2361 = vrot.lane.b32.xlu0 %v2279, 64
      %v2362 = vpop.permute.xlu0 %2361
      %2363 = vrot.lane.b32.xlu0 %v2282, 64
      %v2364 = vpop.permute.xlu0 %2363
      %2365 = vrot.lane.b32.xlu0 %v2285, 64
      %v2366 = vpop.permute.xlu0 %2365
      %2367 = vrot.lane.b32.xlu0 %v2288, 64
      %v2368 = vpop.permute.xlu0 %2367
      %2369 = vrot.lane.b32.xlu0 %v2291, 64
      %v2370 = vpop.permute.xlu0 %2369
      %2371 = vrot.lane.b32.xlu0 %v2294, 64
      %v2372 = vpop.permute.xlu0 %2371
      %2373 = vrot.lane.b32.xlu0 %v2297, 64
      %v2374 = vpop.permute.xlu0 %2373
      %2375 = vrot.lane.b32.xlu0 %v2300, 64
      %v2376 = vpop.permute.xlu0 %2375
      %2377 = vrot.lane.b32.xlu0 %v2303, 64
      %v2378 = vpop.permute.xlu0 %2377
      %2379 = vrot.lane.b32.xlu0 %v2306, 64
      %v2380 = vpop.permute.xlu0 %2379
      %2381 = vrot.lane.b32.xlu0 %v2309, 64
      %v2382 = vpop.permute.xlu0 %2381
      %2383 = vrot.lane.b32.xlu0 %v2312, 64
      %v2384 = vpop.permute.xlu0 %2383
      %2385 = vrot.lane.b32.xlu0 %v2315, 64
      %v2386 = vpop.permute.xlu0 %2385
      %2387 = vrot.lane.b32.xlu0 %v2318, 64
      %v2388 = vpop.permute.xlu0 %2387
      %2389 = vrot.lane.b32.xlu0 %v2321, 64
      %v2390 = vpop.permute.xlu0 %2389
      %2391 = vrot.lane.b32.xlu0 %v2324, 64
      %v2392 = vpop.permute.xlu0 %2391
      %2393 = vrot.lane.b32.xlu0 %v2327, 64
      %v2394 = vpop.permute.xlu0 %2393
      %2395 = vrot.lane.b32.xlu0 %v2330, 64
      %v2396 = vpop.permute.xlu0 %2395
      %2397 = vrot.lane.b32.xlu0 %v2333, 64
      %v2398 = vpop.permute.xlu0 %2397
      %2399 = vrot.lane.b32.xlu0 %v2336, 64
      %v2400 = vpop.permute.xlu0 %2399
      %v2401 = vsel %vm1631, %v2338, %v2340
      %v2402 = vsel %vm1631, %v2342, %v2344
      %v2403 = vsel %vm1631, %v2346, %v2348
      %v2404 = vsel %vm1631, %v2350, %v2352
      %v2405 = vsel %vm1631, %v2354, %v2356
      %v2406 = vsel %vm1631, %v2358, %v2360
      %v2407 = vsel %vm1631, %v2362, %v2364
      %v2408 = vsel %vm1631, %v2366, %v2368
      %v2409 = vsel %vm1631, %v2370, %v2372
      %v2410 = vsel %vm1631, %v2374, %v2376
      %v2411 = vsel %vm1631, %v2378, %v2380
      %v2412 = vsel %vm1631, %v2382, %v2384
      %v2413 = vsel %vm1631, %v2386, %v2388
      %v2414 = vsel %vm1631, %v2390, %v2392
      %v2415 = vsel %vm1631, %v2394, %v2396
      %v2416 = vsel %vm1631, %v2398, %v2400
      %vm2449 = vcmask 1045504
      %v2450 = vrot.slane %v2160, 2
      %v2451 = vrot.slane %v2114, 2
      %v2452 = vsel %vm2449, %v2450, %v2451
      %v2453 = vrot.slane %v2161, 2
      %v2454 = vrot.slane %v2224, 2
      %v2455 = vsel %vm2449, %v2453, %v2454
      %v2456 = vrot.slane %v2162, 2
      %v2457 = vrot.slane %v2117, 2
      %v2458 = vsel %vm2449, %v2456, %v2457
      %v2459 = vrot.slane %v2163, 2
      %v2460 = vrot.slane %v2225, 2
      %v2461 = vsel %vm2449, %v2459, %v2460
      %v2462 = vrot.slane %v2164, 2
      %v2463 = vrot.slane %v2120, 2
      %v2464 = vsel %vm2449, %v2462, %v2463
      %v2465 = vrot.slane %v2165, 2
      %v2466 = vrot.slane %v2226, 2
      %v2467 = vsel %vm2449, %v2465, %v2466
      %v2468 = vrot.slane %v2166, 2
      %v2469 = vrot.slane %v2123, 2
      %v2470 = vsel %vm2449, %v2468, %v2469
      %v2471 = vrot.slane %v2167, 2
      %v2472 = vrot.slane %v2227, 2
      %v2473 = vsel %vm2449, %v2471, %v2472
      %v2474 = vrot.slane %v2168, 2
      %v2475 = vrot.slane %v2126, 2
      %v2476 = vsel %vm2449, %v2474, %v2475
      %v2477 = vrot.slane %v2169, 2
      %v2478 = vrot.slane %v2228, 2
      %v2479 = vsel %vm2449, %v2477, %v2478
      %v2480 = vrot.slane %v2170, 2
      %v2481 = vrot.slane %v2129, 2
      %v2482 = vsel %vm2449, %v2480, %v2481
      %v2483 = vrot.slane %v2171, 2
      %v2484 = vrot.slane %v2229, 2
      %v2485 = vsel %vm2449, %v2483, %v2484
      %v2486 = vrot.slane %v2172, 2
      %v2487 = vrot.slane %v2132, 2
      %v2488 = vsel %vm2449, %v2486, %v2487
      %v2489 = vrot.slane %v2173, 2
      %v2490 = vrot.slane %v2230, 2
      %v2491 = vsel %vm2449, %v2489, %v2490
      %v2492 = vrot.slane %v2174, 2
      %v2493 = vrot.slane %v2135, 2
      %v2494 = vsel %vm2449, %v2492, %v2493
      %v2495 = vrot.slane %v2175, 2
      %v2496 = vrot.slane %v2231, 2
      %v2497 = vsel %vm2449, %v2495, %v2496
      %v2498 = vrot.slane %v2176, 2
      %v2499 = vrot.slane %v2138, 2
      %v2500 = vsel %vm2449, %v2498, %v2499
      %v2501 = vrot.slane %v2177, 2
      %v2502 = vrot.slane %v2232, 2
      %v2503 = vsel %vm2449, %v2501, %v2502
      %v2504 = vrot.slane %v2178, 2
      %v2505 = vrot.slane %v2141, 2
      %v2506 = vsel %vm2449, %v2504, %v2505
      %v2507 = vrot.slane %v2179, 2
      %v2508 = vrot.slane %v2233, 2
      %v2509 = vsel %vm2449, %v2507, %v2508
      %v2510 = vrot.slane %v2180, 2
      %v2511 = vrot.slane %v2144, 2
      %v2512 = vsel %vm2449, %v2510, %v2511
      %v2513 = vrot.slane %v2181, 2
      %v2514 = vrot.slane %v2234, 2
      %v2515 = vsel %vm2449, %v2513, %v2514
      %v2516 = vrot.slane %v2182, 2
      %v2517 = vrot.slane %v2147, 2
      %v2518 = vsel %vm2449, %v2516, %v2517
      %v2519 = vrot.slane %v2183, 2
      %v2520 = vrot.slane %v2235, 2
      %v2521 = vsel %vm2449, %v2519, %v2520
      %v2522 = vrot.slane %v2184, 2
      %v2523 = vrot.slane %v2150, 2
      %v2524 = vsel %vm2449, %v2522, %v2523
      %v2525 = vrot.slane %v2185, 2
      %v2526 = vrot.slane %v2236, 2
      %v2527 = vsel %vm2449, %v2525, %v2526
      %v2528 = vrot.slane %v2186, 2
      %v2529 = vrot.slane %v2153, 2
      %v2530 = vsel %vm2449, %v2528, %v2529
      %v2531 = vrot.slane %v2187, 2
      %v2532 = vrot.slane %v2237, 2
      %v2533 = vsel %vm2449, %v2531, %v2532
      %v2534 = vrot.slane %v2188, 2
      %v2535 = vrot.slane %v2156, 2
      %v2536 = vsel %vm2449, %v2534, %v2535
      %v2537 = vrot.slane %v2189, 2
      %v2538 = vrot.slane %v2238, 2
      %v2539 = vsel %vm2449, %v2537, %v2538
      %v2540 = vrot.slane %v2190, 2
      %v2541 = vrot.slane %v2159, 2
      %v2542 = vsel %vm2449, %v2540, %v2541
      %v2543 = vrot.slane %v2191, 2
      %v2544 = vrot.slane %v2239, 2
      %v2545 = vsel %vm2449, %v2543, %v2544
      %vm2578 = vcmask 1044480
      %v2579 = vrot.slane %v2160, 3
      %v2580 = vrot.slane %v2114, 3
      %v2581 = vsel %vm2578, %v2579, %v2580
      %v2582 = vrot.slane %v2161, 3
      %v2583 = vrot.slane %v2224, 3
      %v2584 = vsel %vm2578, %v2582, %v2583
      %v2585 = vrot.slane %v2162, 3
      %v2586 = vrot.slane %v2117, 3
      %v2587 = vsel %vm2578, %v2585, %v2586
      %v2588 = vrot.slane %v2163, 3
      %v2589 = vrot.slane %v2225, 3
      %v2590 = vsel %vm2578, %v2588, %v2589
      %v2591 = vrot.slane %v2164, 3
      %v2592 = vrot.slane %v2120, 3
      %v2593 = vsel %vm2578, %v2591, %v2592
      %v2594 = vrot.slane %v2165, 3
      %v2595 = vrot.slane %v2226, 3
      %v2596 = vsel %vm2578, %v2594, %v2595
      %v2597 = vrot.slane %v2166, 3
      %v2598 = vrot.slane %v2123, 3
      %v2599 = vsel %vm2578, %v2597, %v2598
      %v2600 = vrot.slane %v2167, 3
      %v2601 = vrot.slane %v2227, 3
      %v2602 = vsel %vm2578, %v2600, %v2601
      %v2603 = vrot.slane %v2168, 3
      %v2604 = vrot.slane %v2126, 3
      %v2605 = vsel %vm2578, %v2603, %v2604
      %v2606 = vrot.slane %v2169, 3
      %v2607 = vrot.slane %v2228, 3
      %v2608 = vsel %vm2578, %v2606, %v2607
      %v2609 = vrot.slane %v2170, 3
      %v2610 = vrot.slane %v2129, 3
      %v2611 = vsel %vm2578, %v2609, %v2610
      %v2612 = vrot.slane %v2171, 3
      %v2613 = vrot.slane %v2229, 3
      %v2614 = vsel %vm2578, %v2612, %v2613
      %v2615 = vrot.slane %v2172, 3
      %v2616 = vrot.slane %v2132, 3
      %v2617 = vsel %vm2578, %v2615, %v2616
      %v2618 = vrot.slane %v2173, 3
      %v2619 = vrot.slane %v2230, 3
      %v2620 = vsel %vm2578, %v2618, %v2619
      %v2621 = vrot.slane %v2174, 3
      %v2622 = vrot.slane %v2135, 3
      %v2623 = vsel %vm2578, %v2621, %v2622
      %v2624 = vrot.slane %v2175, 3
      %v2625 = vrot.slane %v2231, 3
      %v2626 = vsel %vm2578, %v2624, %v2625
      %v2627 = vrot.slane %v2176, 3
      %v2628 = vrot.slane %v2138, 3
      %v2629 = vsel %vm2578, %v2627, %v2628
      %v2630 = vrot.slane %v2177, 3
      %v2631 = vrot.slane %v2232, 3
      %v2632 = vsel %vm2578, %v2630, %v2631
      %v2633 = vrot.slane %v2178, 3
      %v2634 = vrot.slane %v2141, 3
      %v2635 = vsel %vm2578, %v2633, %v2634
      %v2636 = vrot.slane %v2179, 3
      %v2637 = vrot.slane %v2233, 3
      %v2638 = vsel %vm2578, %v2636, %v2637
      %v2639 = vrot.slane %v2180, 3
      %v2640 = vrot.slane %v2144, 3
      %v2641 = vsel %vm2578, %v2639, %v2640
      %v2642 = vrot.slane %v2181, 3
      %v2643 = vrot.slane %v2234, 3
      %v2644 = vsel %vm2578, %v2642, %v2643
      %v2645 = vrot.slane %v2182, 3
      %v2646 = vrot.slane %v2147, 3
      %v2647 = vsel %vm2578, %v2645, %v2646
      %v2648 = vrot.slane %v2183, 3
      %v2649 = vrot.slane %v2235, 3
      %v2650 = vsel %vm2578, %v2648, %v2649
      %v2651 = vrot.slane %v2184, 3
      %v2652 = vrot.slane %v2150, 3
      %v2653 = vsel %vm2578, %v2651, %v2652
      %v2654 = vrot.slane %v2185, 3
      %v2655 = vrot.slane %v2236, 3
      %v2656 = vsel %vm2578, %v2654, %v2655
      %v2657 = vrot.slane %v2186, 3
      %v2658 = vrot.slane %v2153, 3
      %v2659 = vsel %vm2578, %v2657, %v2658
      %v2660 = vrot.slane %v2187, 3
      %v2661 = vrot.slane %v2237, 3
      %v2662 = vsel %vm2578, %v2660, %v2661
      %v2663 = vrot.slane %v2188, 3
      %v2664 = vrot.slane %v2156, 3
      %v2665 = vsel %vm2578, %v2663, %v2664
      %v2666 = vrot.slane %v2189, 3
      %v2667 = vrot.slane %v2238, 3
      %v2668 = vsel %vm2578, %v2666, %v2667
      %v2669 = vrot.slane %v2190, 3
      %v2670 = vrot.slane %v2159, 3
      %v2671 = vsel %vm2578, %v2669, %v2670
      %v2672 = vrot.slane %v2191, 3
      %v2673 = vrot.slane %v2239, 3
      %v2674 = vsel %vm2578, %v2672, %v2673
      %2675 = vrot.lane.b32.xlu0 %v2581, 64
      %v2676 = vpop.permute.xlu0 %2675
      %2677 = vrot.lane.b32.xlu0 %v2584, 64
      %v2678 = vpop.permute.xlu0 %2677
      %2679 = vrot.lane.b32.xlu0 %v2587, 64
      %v2680 = vpop.permute.xlu0 %2679
      %2681 = vrot.lane.b32.xlu0 %v2590, 64
      %v2682 = vpop.permute.xlu0 %2681
      %2683 = vrot.lane.b32.xlu0 %v2593, 64
      %v2684 = vpop.permute.xlu0 %2683
      %2685 = vrot.lane.b32.xlu0 %v2596, 64
      %v2686 = vpop.permute.xlu0 %2685
      %2687 = vrot.lane.b32.xlu0 %v2599, 64
      %v2688 = vpop.permute.xlu0 %2687
      %2689 = vrot.lane.b32.xlu0 %v2602, 64
      %v2690 = vpop.permute.xlu0 %2689
      %2691 = vrot.lane.b32.xlu0 %v2605, 64
      %v2692 = vpop.permute.xlu0 %2691
      %2693 = vrot.lane.b32.xlu0 %v2608, 64
      %v2694 = vpop.permute.xlu0 %2693
      %2695 = vrot.lane.b32.xlu0 %v2611, 64
      %v2696 = vpop.permute.xlu0 %2695
      %2697 = vrot.lane.b32.xlu0 %v2614, 64
      %v2698 = vpop.permute.xlu0 %2697
      %2699 = vrot.lane.b32.xlu0 %v2617, 64
      %v2700 = vpop.permute.xlu0 %2699
      %2701 = vrot.lane.b32.xlu0 %v2620, 64
      %v2702 = vpop.permute.xlu0 %2701
      %2703 = vrot.lane.b32.xlu0 %v2623, 64
      %v2704 = vpop.permute.xlu0 %2703
      %2705 = vrot.lane.b32.xlu0 %v2626, 64
      %v2706 = vpop.permute.xlu0 %2705
      %2707 = vrot.lane.b32.xlu0 %v2629, 64
      %v2708 = vpop.permute.xlu0 %2707
      %2709 = vrot.lane.b32.xlu0 %v2632, 64
      %v2710 = vpop.permute.xlu0 %2709
      %2711 = vrot.lane.b32.xlu0 %v2635, 64
      %v2712 = vpop.permute.xlu0 %2711
      %2713 = vrot.lane.b32.xlu0 %v2638, 64
      %v2714 = vpop.permute.xlu0 %2713
      %2715 = vrot.lane.b32.xlu0 %v2641, 64
      %v2716 = vpop.permute.xlu0 %2715
      %2717 = vrot.lane.b32.xlu0 %v2644, 64
      %v2718 = vpop.permute.xlu0 %2717
      %2719 = vrot.lane.b32.xlu0 %v2647, 64
      %v2720 = vpop.permute.xlu0 %2719
      %2721 = vrot.lane.b32.xlu0 %v2650, 64
      %v2722 = vpop.permute.xlu0 %2721
      %2723 = vrot.lane.b32.xlu0 %v2653, 64
      %v2724 = vpop.permute.xlu0 %2723
      %2725 = vrot.lane.b32.xlu0 %v2656, 64
      %v2726 = vpop.permute.xlu0 %2725
      %2727 = vrot.lane.b32.xlu0 %v2659, 64
      %v2728 = vpop.permute.xlu0 %2727
      %2729 = vrot.lane.b32.xlu0 %v2662, 64
      %v2730 = vpop.permute.xlu0 %2729
      %2731 = vrot.lane.b32.xlu0 %v2665, 64
      %v2732 = vpop.permute.xlu0 %2731
      %2733 = vrot.lane.b32.xlu0 %v2668, 64
      %v2734 = vpop.permute.xlu0 %2733
      %2735 = vrot.lane.b32.xlu0 %v2671, 64
      %v2736 = vpop.permute.xlu0 %2735
      %2737 = vrot.lane.b32.xlu0 %v2674, 64
      %v2738 = vpop.permute.xlu0 %2737
      %v2739 = vsel %vm1631, %v2676, %v2678
      %v2740 = vsel %vm1631, %v2680, %v2682
      %v2741 = vsel %vm1631, %v2684, %v2686
      %v2742 = vsel %vm1631, %v2688, %v2690
      %v2743 = vsel %vm1631, %v2692, %v2694
      %v2744 = vsel %vm1631, %v2696, %v2698
      %v2745 = vsel %vm1631, %v2700, %v2702
      %v2746 = vsel %vm1631, %v2704, %v2706
      %v2747 = vsel %vm1631, %v2708, %v2710
      %v2748 = vsel %vm1631, %v2712, %v2714
      %v2749 = vsel %vm1631, %v2716, %v2718
      %v2750 = vsel %vm1631, %v2720, %v2722
      %v2751 = vsel %vm1631, %v2724, %v2726
      %v2752 = vsel %vm1631, %v2728, %v2730
      %v2753 = vsel %vm1631, %v2732, %v2734
      %v2754 = vsel %vm1631, %v2736, %v2738
      %v2787 = vcombine.low %v2113, %v2114
      %v2788 = vcombine.high %v2113, %v2114
      %v2789 = vcombine.low %v2116, %v2117
      %v2790 = vcombine.high %v2116, %v2117
      %v2791 = vcombine.low %v2119, %v2120
      %v2792 = vcombine.high %v2119, %v2120
      %v2793 = vcombine.low %v2122, %v2123
      %v2794 = vcombine.high %v2122, %v2123
      %v2795 = vcombine.low %v2125, %v2126
      %v2796 = vcombine.high %v2125, %v2126
      %v2797 = vcombine.low %v2128, %v2129
      %v2798 = vcombine.high %v2128, %v2129
      %v2799 = vcombine.low %v2131, %v2132
      %v2800 = vcombine.high %v2131, %v2132
      %v2801 = vcombine.low %v2134, %v2135
      %v2802 = vcombine.high %v2134, %v2135
      %v2803 = vcombine.low %v2137, %v2138
      %v2804 = vcombine.high %v2137, %v2138
      %v2805 = vcombine.low %v2140, %v2141
      %v2806 = vcombine.high %v2140, %v2141
      %v2807 = vcombine.low %v2143, %v2144
      %v2808 = vcombine.high %v2143, %v2144
      %v2809 = vcombine.low %v2146, %v2147
      %v2810 = vcombine.high %v2146, %v2147
      %v2811 = vcombine.low %v2149, %v2150
      %v2812 = vcombine.high %v2149, %v2150
      %v2813 = vcombine.low %v2152, %v2153
      %v2814 = vcombine.high %v2152, %v2153
      %v2815 = vcombine.low %v2155, %v2156
      %v2816 = vcombine.high %v2155, %v2156
      %v2817 = vcombine.low %v2158, %v2159
      %v2818 = vcombine.high %v2158, %v2159
      %v2851 = vsel %vm1631, %v2161, %v2338
      %v2852 = vsel %vm1631, %v2163, %v2342
      %v2853 = vsel %vm1631, %v2165, %v2346
      %v2854 = vsel %vm1631, %v2167, %v2350
      %v2855 = vsel %vm1631, %v2169, %v2354
      %v2856 = vsel %vm1631, %v2171, %v2358
      %v2857 = vsel %vm1631, %v2173, %v2362
      %v2858 = vsel %vm1631, %v2175, %v2366
      %v2859 = vsel %vm1631, %v2177, %v2370
      %v2860 = vsel %vm1631, %v2179, %v2374
      %v2861 = vsel %vm1631, %v2181, %v2378
      %v2862 = vsel %vm1631, %v2183, %v2382
      %v2863 = vsel %vm1631, %v2185, %v2386
      %v2864 = vsel %vm1631, %v2187, %v2390
      %v2865 = vsel %vm1631, %v2189, %v2394
      %v2866 = vsel %vm1631, %v2191, %v2398
      %v2867 = vsel %vm1631, %v2455, %v2676
      %v2868 = vsel %vm1631, %v2461, %v2680
      %v2869 = vsel %vm1631, %v2467, %v2684
      %v2870 = vsel %vm1631, %v2473, %v2688
      %v2871 = vsel %vm1631, %v2479, %v2692
      %v2872 = vsel %vm1631, %v2485, %v2696
      %v2873 = vsel %vm1631, %v2491, %v2700
      %v2874 = vsel %vm1631, %v2497, %v2704
      %v2875 = vsel %vm1631, %v2503, %v2708
      %v2876 = vsel %vm1631, %v2509, %v2712
      %v2877 = vsel %vm1631, %v2515, %v2716
      %v2878 = vsel %vm1631, %v2521, %v2720
      %v2879 = vsel %vm1631, %v2527, %v2724
      %v2880 = vsel %vm1631, %v2533, %v2728
      %v2881 = vsel %vm1631, %v2539, %v2732
      %v2882 = vsel %vm1631, %v2545, %v2736
      %v2883 = vpack.c.bf16 %v2162, %v2160
      %v2884 = vpack.c.bf16 %v2852, %v2851
      %v2885 = vpack.c.bf16 %v2402, %v2401
      %v2886 = vpack.c.bf16 %v2458, %v2452
      %v2887 = vpack.c.bf16 %v2868, %v2867
      %v2888 = vpack.c.bf16 %v2740, %v2739
      %v2889 = vpack.c.bf16 %v2789, %v2787
      %v2890 = vpack.c.bf16 %v2790, %v2788
      %v2891 = vpack.c.bf16 %v2166, %v2164
      %v2892 = vpack.c.bf16 %v2854, %v2853
      %v2893 = vpack.c.bf16 %v2404, %v2403
      %v2894 = vpack.c.bf16 %v2470, %v2464
      %v2895 = vpack.c.bf16 %v2870, %v2869
      %v2896 = vpack.c.bf16 %v2742, %v2741
      %v2897 = vpack.c.bf16 %v2793, %v2791
      %v2898 = vpack.c.bf16 %v2794, %v2792
      %v2899 = vpack.c.bf16 %v2170, %v2168
      %v2900 = vpack.c.bf16 %v2856, %v2855
      %v2901 = vpack.c.bf16 %v2406, %v2405
      %v2902 = vpack.c.bf16 %v2482, %v2476
      %v2903 = vpack.c.bf16 %v2872, %v2871
      %v2904 = vpack.c.bf16 %v2744, %v2743
      %v2905 = vpack.c.bf16 %v2797, %v2795
      %v2906 = vpack.c.bf16 %v2798, %v2796
      %v2907 = vpack.c.bf16 %v2174, %v2172
      %v2908 = vpack.c.bf16 %v2858, %v2857
      %v2909 = vpack.c.bf16 %v2408, %v2407
      %v2910 = vpack.c.bf16 %v2494, %v2488
      %v2911 = vpack.c.bf16 %v2874, %v2873
      %v2912 = vpack.c.bf16 %v2746, %v2745
      %v2913 = vpack.c.bf16 %v2801, %v2799
      %v2914 = vpack.c.bf16 %v2802, %v2800
      %v2915 = vpack.c.bf16 %v2178, %v2176
      %v2916 = vpack.c.bf16 %v2860, %v2859
      %v2917 = vpack.c.bf16 %v2410, %v2409
      %v2918 = vpack.c.bf16 %v2506, %v2500
      %v2919 = vpack.c.bf16 %v2876, %v2875
      %v2920 = vpack.c.bf16 %v2748, %v2747
      %v2921 = vpack.c.bf16 %v2805, %v2803
      %v2922 = vpack.c.bf16 %v2806, %v2804
      %v2923 = vpack.c.bf16 %v2182, %v2180
      %v2924 = vpack.c.bf16 %v2862, %v2861
      %v2925 = vpack.c.bf16 %v2412, %v2411
      %v2926 = vpack.c.bf16 %v2518, %v2512
      %v2927 = vpack.c.bf16 %v2878, %v2877
      %v2928 = vpack.c.bf16 %v2750, %v2749
      %v2929 = vpack.c.bf16 %v2809, %v2807
      %v2930 = vpack.c.bf16 %v2810, %v2808
      %v2931 = vpack.c.bf16 %v2186, %v2184
      %v2932 = vpack.c.bf16 %v2864, %v2863
      %v2933 = vpack.c.bf16 %v2414, %v2413
      %v2934 = vpack.c.bf16 %v2530, %v2524
      %v2935 = vpack.c.bf16 %v2880, %v2879
      %v2936 = vpack.c.bf16 %v2752, %v2751
      %v2937 = vpack.c.bf16 %v2813, %v2811
      %v2938 = vpack.c.bf16 %v2814, %v2812
      %v2939 = vpack.c.bf16 %v2190, %v2188
      %v2940 = vpack.c.bf16 %v2866, %v2865
      %v2941 = vpack.c.bf16 %v2416, %v2415
      %v2942 = vpack.c.bf16 %v2542, %v2536
      %v2943 = vpack.c.bf16 %v2882, %v2881
      %v2944 = vpack.c.bf16 %v2754, %v2753
      %v2945 = vpack.c.bf16 %v2817, %v2815
      %v2946 = vpack.c.bf16 %v2818, %v2816
      %v2947 = vld [vmem:[%s3] sm:$0xff]
      %v2948 = vld [vmem:[%s3 + $0x8] sm:$0xff]
      %v2949 = vld [vmem:[%s3 + $0x10] sm:$0xff]
      %v2950 = vld [vmem:[%s3 + $0x18] sm:$0xff]
      %v2951 = vld [vmem:[%s3 + $0x20] sm:$0xff]
      %v2952 = vld [vmem:[%s3 + $0x28] sm:$0xff]
      %v2953 = vld [vmem:[%s3 + $0x30] sm:$0xff]
      %v2954 = vld [vmem:[%s3 + $0x38] sm:$0xff]
      %v2955 = vld [vmem:[%s3 + $0x40] sm:$0xff]
      %v2956 = vld [vmem:[%s3 + $0x48] sm:$0xff]
      %v2957 = vld [vmem:[%s3 + $0x50] sm:$0xff]
      %v2958 = vld [vmem:[%s3 + $0x58] sm:$0xff]
      %v2959 = vld [vmem:[%s3 + $0x60] sm:$0xff]
      %v2960 = vld [vmem:[%s3 + $0x68] sm:$0xff]
      %v2961 = vld [vmem:[%s3 + $0x70] sm:$0xff]
      %v2962 = vld [vmem:[%s3 + $0x78] sm:$0xff]
      %v2963 = vld [vmem:[%s3 + $0x80] sm:$0xff]
      %v2964 = vld [vmem:[%s3 + $0x88] sm:$0xff]
      %v2965 = vld [vmem:[%s3 + $0x90] sm:$0xff]
      %v2966 = vld [vmem:[%s3 + $0x98] sm:$0xff]
      %v2967 = vld [vmem:[%s3 + $0xa0] sm:$0xff]
      %v2968 = vld [vmem:[%s3 + $0xa8] sm:$0xff]
      %v2969 = vld [vmem:[%s3 + $0xb0] sm:$0xff]
      %v2970 = vld [vmem:[%s3 + $0xb8] sm:$0xff]
      %v2971 = vld [vmem:[%s3 + $0xc0] sm:$0xff]
      %v2972 = vld [vmem:[%s3 + $0xc8] sm:$0xff]
      %v2973 = vld [vmem:[%s3 + $0xd0] sm:$0xff]
      %v2974 = vld [vmem:[%s3 + $0xd8] sm:$0xff]
      %v2975 = vld [vmem:[%s3 + $0xe0] sm:$0xff]
      %v2976 = vld [vmem:[%s3 + $0xe8] sm:$0xff]
      %v2977 = vld [vmem:[%s3 + $0xf0] sm:$0xff]
      %v2978 = vld [vmem:[%s3 + $0xf8] sm:$0xff]
      %v2979 = vld [vmem:[%s3 + $0x100] sm:$0xff]
      %v2980 = vld [vmem:[%s3 + $0x108] sm:$0xff]
      %v2981 = vld [vmem:[%s3 + $0x110] sm:$0xff]
      %v2982 = vld [vmem:[%s3 + $0x118] sm:$0xff]
      %v2983 = vld [vmem:[%s3 + $0x120] sm:$0xff]
      %v2984 = vld [vmem:[%s3 + $0x128] sm:$0xff]
      %v2985 = vld [vmem:[%s3 + $0x130] sm:$0xff]
      %v2986 = vld [vmem:[%s3 + $0x138] sm:$0xff]
      %v2987 = vld [vmem:[%s3 + $0x140] sm:$0xff]
      %v2988 = vld [vmem:[%s3 + $0x148] sm:$0xff]
      %v2989 = vld [vmem:[%s3 + $0x150] sm:$0xff]
      %v2990 = vld [vmem:[%s3 + $0x158] sm:$0xff]
      %v2991 = vld [vmem:[%s3 + $0x160] sm:$0xff]
      %v2992 = vld [vmem:[%s3 + $0x168] sm:$0xff]
      %v2993 = vld [vmem:[%s3 + $0x170] sm:$0xff]
      %v2994 = vld [vmem:[%s3 + $0x178] sm:$0xff]
      %v2995 = vld [vmem:[%s3 + $0x180] sm:$0xff]
      %v2996 = vld [vmem:[%s3 + $0x188] sm:$0xff]
      %v2997 = vld [vmem:[%s3 + $0x190] sm:$0xff]
      %v2998 = vld [vmem:[%s3 + $0x198] sm:$0xff]
      %v2999 = vld [vmem:[%s3 + $0x1a0] sm:$0xff]
      %v3000 = vld [vmem:[%s3 + $0x1a8] sm:$0xff]
      %v3001 = vld [vmem:[%s3 + $0x1b0] sm:$0xff]
      %v3002 = vld [vmem:[%s3 + $0x1b8] sm:$0xff]
      %v3003 = vld [vmem:[%s3 + $0x1c0] sm:$0xff]
      %v3004 = vld [vmem:[%s3 + $0x1c8] sm:$0xff]
      %v3005 = vld [vmem:[%s3 + $0x1d0] sm:$0xff]
      %v3006 = vld [vmem:[%s3 + $0x1d8] sm:$0xff]
      %v3007 = vld [vmem:[%s3 + $0x1e0] sm:$0xff]
      %v3008 = vld [vmem:[%s3 + $0x1e8] sm:$0xff]
      %v3009 = vld [vmem:[%s3 + $0x1f0] sm:$0xff]
      %v3010 = vld [vmem:[%s3 + $0x1f8] sm:$0xff]
      %v3011 = vld [vmem:[%s3 + $0x200] sm:$0xff]
      %v3012 = vld [vmem:[%s3 + $0x208] sm:$0xff]
      %v3013 = vld [vmem:[%s3 + $0x210] sm:$0xff]
      %v3014 = vld [vmem:[%s3 + $0x218] sm:$0xff]
      %v3015 = vld [vmem:[%s3 + $0x220] sm:$0xff]
      %v3016 = vld [vmem:[%s3 + $0x228] sm:$0xff]
      %v3017 = vld [vmem:[%s3 + $0x230] sm:$0xff]
      %v3018 = vld [vmem:[%s3 + $0x238] sm:$0xff]
      %v3019 = vld [vmem:[%s3 + $0x240] sm:$0xff]
      %v3020 = vld [vmem:[%s3 + $0x248] sm:$0xff]
      %v3021 = vld [vmem:[%s3 + $0x250] sm:$0xff]
      %v3022 = vld [vmem:[%s3 + $0x258] sm:$0xff]
      %v3023 = vld [vmem:[%s3 + $0x260] sm:$0xff]
      %v3024 = vld [vmem:[%s3 + $0x268] sm:$0xff]
      %v3025 = vld [vmem:[%s3 + $0x270] sm:$0xff]
      %v3026 = vld [vmem:[%s3 + $0x278] sm:$0xff]
      %v3027 = vld [vmem:[%s3 + $0x280] sm:$0xff]
      %v3028 = vld [vmem:[%s3 + $0x288] sm:$0xff]
      %v3029 = vld [vmem:[%s3 + $0x290] sm:$0xff]
      %v3030 = vld [vmem:[%s3 + $0x298] sm:$0xff]
      %v3031 = vld [vmem:[%s3 + $0x2a0] sm:$0xff]
      %v3032 = vld [vmem:[%s3 + $0x2a8] sm:$0xff]
      %v3033 = vld [vmem:[%s3 + $0x2b0] sm:$0xff]
      %v3034 = vld [vmem:[%s3 + $0x2b8] sm:$0xff]
      %v3035 = vld [vmem:[%s3 + $0x2c0] sm:$0xff]
      %v3036 = vld [vmem:[%s3 + $0x2c8] sm:$0xff]
      %v3037 = vld [vmem:[%s3 + $0x2d0] sm:$0xff]
      %v3038 = vld [vmem:[%s3 + $0x2d8] sm:$0xff]
      %v3039 = vld [vmem:[%s3 + $0x2e0] sm:$0xff]
      %v3040 = vld [vmem:[%s3 + $0x2e8] sm:$0xff]
      %v3041 = vld [vmem:[%s3 + $0x2f0] sm:$0xff]
      %v3042 = vld [vmem:[%s3 + $0x2f8] sm:$0xff]
      %v3043 = vld [vmem:[%s3 + $0x300] sm:$0xff]
      %v3044 = vld [vmem:[%s3 + $0x308] sm:$0xff]
      %v3045 = vld [vmem:[%s3 + $0x310] sm:$0xff]
      %v3046 = vld [vmem:[%s3 + $0x318] sm:$0xff]
      %v3047 = vld [vmem:[%s3 + $0x320] sm:$0xff]
      %v3048 = vld [vmem:[%s3 + $0x328] sm:$0xff]
      %v3049 = vld [vmem:[%s3 + $0x330] sm:$0xff]
      %v3050 = vld [vmem:[%s3 + $0x338] sm:$0xff]
      %v3051 = vld [vmem:[%s3 + $0x340] sm:$0xff]
      %v3052 = vld [vmem:[%s3 + $0x348] sm:$0xff]
      %v3053 = vld [vmem:[%s3 + $0x350] sm:$0xff]
      %v3054 = vld [vmem:[%s3 + $0x358] sm:$0xff]
      %v3055 = vld [vmem:[%s3 + $0x360] sm:$0xff]
      %v3056 = vld [vmem:[%s3 + $0x368] sm:$0xff]
      %v3057 = vld [vmem:[%s3 + $0x370] sm:$0xff]
      %v3058 = vld [vmem:[%s3 + $0x378] sm:$0xff]
      %v3059 = vld [vmem:[%s3 + $0x380] sm:$0xff]
      %v3060 = vld [vmem:[%s3 + $0x388] sm:$0xff]
      %v3061 = vld [vmem:[%s3 + $0x390] sm:$0xff]
      %v3062 = vld [vmem:[%s3 + $0x398] sm:$0xff]
      %v3063 = vld [vmem:[%s3 + $0x3a0] sm:$0xff]
      %v3064 = vld [vmem:[%s3 + $0x3a8] sm:$0xff]
      %v3065 = vld [vmem:[%s3 + $0x3b0] sm:$0xff]
      %v3066 = vld [vmem:[%s3 + $0x3b8] sm:$0xff]
      %v3067 = vld [vmem:[%s4] sm:$0x3]
      %v3069 = vlaneseq
      %v3070 = vshrl.u32 %v3069, 7
      %v3071 = vsub.s32 0, %v3070
      %v3072 = vrot.slane %v3067, %v3071
      %v3073 = vlaneseq
      %v3074 = vshrl.u32 %v3073, 7
      %v3075 = vsub.s32 1, %v3074
      %v3076 = vrot.slane %v3067, %v3075
      %v3199 = vunpack.c.l.b16 %v2947
      %v3200 = vunpack.c.h.b16 %v2947
      %v3201 = vunpack.c.l.b16 %v2948
      %v3202 = vunpack.c.h.b16 %v2948
      %v3203 = vunpack.c.l.b16 %v2949
      %v3204 = vunpack.c.h.b16 %v2949
      %v3205 = vunpack.c.l.b16 %v2950
      %v3206 = vunpack.c.h.b16 %v2950
      %v3207 = vunpack.c.l.b16 %v2951
      %v3208 = vunpack.c.h.b16 %v2951
      %v3209 = vunpack.c.l.b16 %v2952
      %v3210 = vunpack.c.h.b16 %v2952
      %v3211 = vunpack.c.l.b16 %v2953
      %v3212 = vunpack.c.h.b16 %v2953
      %v3213 = vunpack.c.l.b16 %v2954
      %v3214 = vunpack.c.h.b16 %v2954
      %v3215 = vunpack.c.l.b16 %v2955
      %v3216 = vunpack.c.h.b16 %v2955
      %v3217 = vunpack.c.l.b16 %v2956
      %v3218 = vunpack.c.h.b16 %v2956
      %v3219 = vunpack.c.l.b16 %v2957
      %v3220 = vunpack.c.h.b16 %v2957
      %v3221 = vunpack.c.l.b16 %v2958
      %v3222 = vunpack.c.h.b16 %v2958
      %v3223 = vunpack.c.l.b16 %v2959
      %v3224 = vunpack.c.h.b16 %v2959
      %v3225 = vunpack.c.l.b16 %v2960
      %v3226 = vunpack.c.h.b16 %v2960
      %v3227 = vunpack.c.l.b16 %v2961
      %v3228 = vunpack.c.h.b16 %v2961
      %v3229 = vunpack.c.l.b16 %v2962
      %v3230 = vunpack.c.h.b16 %v2962
      %v3231 = vunpack.c.l.b16 %v2963
      %v3232 = vunpack.c.h.b16 %v2963
      %v3233 = vunpack.c.l.b16 %v2964
      %v3234 = vunpack.c.h.b16 %v2964
      %v3235 = vunpack.c.l.b16 %v2965
      %v3236 = vunpack.c.h.b16 %v2965
      %v3237 = vunpack.c.l.b16 %v2966
      %v3238 = vunpack.c.h.b16 %v2966
      %v3239 = vunpack.c.l.b16 %v2967
      %v3240 = vunpack.c.h.b16 %v2967
      %v3241 = vunpack.c.l.b16 %v2968
      %v3242 = vunpack.c.h.b16 %v2968
      %v3243 = vunpack.c.l.b16 %v2969
      %v3244 = vunpack.c.h.b16 %v2969
      %v3245 = vunpack.c.l.b16 %v2970
      %v3246 = vunpack.c.h.b16 %v2970
      %v3247 = vunpack.c.l.b16 %v2971
      %v3248 = vunpack.c.h.b16 %v2971
      %v3249 = vunpack.c.l.b16 %v2972
      %v3250 = vunpack.c.h.b16 %v2972
      %v3251 = vunpack.c.l.b16 %v2973
      %v3252 = vunpack.c.h.b16 %v2973
      %v3253 = vunpack.c.l.b16 %v2974
      %v3254 = vunpack.c.h.b16 %v2974
      %v3255 = vunpack.c.l.b16 %v2975
      %v3256 = vunpack.c.h.b16 %v2975
      %v3257 = vunpack.c.l.b16 %v2976
      %v3258 = vunpack.c.h.b16 %v2976
      %v3259 = vunpack.c.l.b16 %v2977
      %v3260 = vunpack.c.h.b16 %v2977
      %v3261 = vunpack.c.l.b16 %v2978
      %v3262 = vunpack.c.h.b16 %v2978
      %v3263 = vunpack.c.l.b16 %v2979
      %v3264 = vunpack.c.h.b16 %v2979
      %v3265 = vunpack.c.l.b16 %v2980
      %v3266 = vunpack.c.h.b16 %v2980
      %v3267 = vunpack.c.l.b16 %v2981
      %v3268 = vunpack.c.h.b16 %v2981
      %v3269 = vunpack.c.l.b16 %v2982
      %v3270 = vunpack.c.h.b16 %v2982
      %v3271 = vunpack.c.l.b16 %v2983
      %v3272 = vunpack.c.h.b16 %v2983
      %v3273 = vunpack.c.l.b16 %v2984
      %v3274 = vunpack.c.h.b16 %v2984
      %v3275 = vunpack.c.l.b16 %v2985
      %v3276 = vunpack.c.h.b16 %v2985
      %v3277 = vunpack.c.l.b16 %v2986
      %v3278 = vunpack.c.h.b16 %v2986
      %v3279 = vunpack.c.l.b16 %v2987
      %v3280 = vunpack.c.h.b16 %v2987
      %v3281 = vunpack.c.l.b16 %v2988
      %v3282 = vunpack.c.h.b16 %v2988
      %v3283 = vunpack.c.l.b16 %v2989
      %v3284 = vunpack.c.h.b16 %v2989
      %v3285 = vunpack.c.l.b16 %v2990
      %v3286 = vunpack.c.h.b16 %v2990
      %v3287 = vunpack.c.l.b16 %v2991
      %v3288 = vunpack.c.h.b16 %v2991
      %v3289 = vunpack.c.l.b16 %v2992
      %v3290 = vunpack.c.h.b16 %v2992
      %v3291 = vunpack.c.l.b16 %v2993
      %v3292 = vunpack.c.h.b16 %v2993
      %v3293 = vunpack.c.l.b16 %v2994
      %v3294 = vunpack.c.h.b16 %v2994
      %v3295 = vunpack.c.l.b16 %v2995
      %v3296 = vunpack.c.h.b16 %v2995
      %v3297 = vunpack.c.l.b16 %v2996
      %v3298 = vunpack.c.h.b16 %v2996
      %v3299 = vunpack.c.l.b16 %v2997
      %v3300 = vunpack.c.h.b16 %v2997
      %v3301 = vunpack.c.l.b16 %v2998
      %v3302 = vunpack.c.h.b16 %v2998
      %v3303 = vunpack.c.l.b16 %v2999
      %v3304 = vunpack.c.h.b16 %v2999
      %v3305 = vunpack.c.l.b16 %v3000
      %v3306 = vunpack.c.h.b16 %v3000
      %v3307 = vunpack.c.l.b16 %v3001
      %v3308 = vunpack.c.h.b16 %v3001
      %v3309 = vunpack.c.l.b16 %v3002
      %v3310 = vunpack.c.h.b16 %v3002
      %v3311 = vunpack.c.l.b16 %v3003
      %v3312 = vunpack.c.h.b16 %v3003
      %v3313 = vunpack.c.l.b16 %v3004
      %v3314 = vunpack.c.h.b16 %v3004
      %v3315 = vunpack.c.l.b16 %v3005
      %v3316 = vunpack.c.h.b16 %v3005
      %v3317 = vunpack.c.l.b16 %v3006
      %v3318 = vunpack.c.h.b16 %v3006
      %v3319 = vunpack.c.l.b16 %v3007
      %v3320 = vunpack.c.h.b16 %v3007
      %v3321 = vunpack.c.l.b16 %v3008
      %v3322 = vunpack.c.h.b16 %v3008
      %v3323 = vunpack.c.l.b16 %v3009
      %v3324 = vunpack.c.h.b16 %v3009
      %v3325 = vunpack.c.l.b16 %v3010
      %v3326 = vunpack.c.h.b16 %v3010
      %v3327 = vunpack.c.l.b16 %v3011
      %v3328 = vunpack.c.h.b16 %v3011
      %v3329 = vunpack.c.l.b16 %v3012
      %v3330 = vunpack.c.h.b16 %v3012
      %v3331 = vunpack.c.l.b16 %v3013
      %v3332 = vunpack.c.h.b16 %v3013
      %v3333 = vunpack.c.l.b16 %v3014
      %v3334 = vunpack.c.h.b16 %v3014
      %v3335 = vunpack.c.l.b16 %v3015
      %v3336 = vunpack.c.h.b16 %v3015
      %v3337 = vunpack.c.l.b16 %v3016
      %v3338 = vunpack.c.h.b16 %v3016
      %v3339 = vunpack.c.l.b16 %v3017
      %v3340 = vunpack.c.h.b16 %v3017
      %v3341 = vunpack.c.l.b16 %v3018
      %v3342 = vunpack.c.h.b16 %v3018
      %v3343 = vunpack.c.l.b16 %v3019
      %v3344 = vunpack.c.h.b16 %v3019
      %v3345 = vunpack.c.l.b16 %v3020
      %v3346 = vunpack.c.h.b16 %v3020
      %v3347 = vunpack.c.l.b16 %v3021
      %v3348 = vunpack.c.h.b16 %v3021
      %v3349 = vunpack.c.l.b16 %v3022
      %v3350 = vunpack.c.h.b16 %v3022
      %v3351 = vunpack.c.l.b16 %v3023
      %v3352 = vunpack.c.h.b16 %v3023
      %v3353 = vunpack.c.l.b16 %v3024
      %v3354 = vunpack.c.h.b16 %v3024
      %v3355 = vunpack.c.l.b16 %v3025
      %v3356 = vunpack.c.h.b16 %v3025
      %v3357 = vunpack.c.l.b16 %v3026
      %v3358 = vunpack.c.h.b16 %v3026
      %v3359 = vunpack.c.l.b16 %v3027
      %v3360 = vunpack.c.h.b16 %v3027
      %v3361 = vunpack.c.l.b16 %v3028
      %v3362 = vunpack.c.h.b16 %v3028
      %v3363 = vunpack.c.l.b16 %v3029
      %v3364 = vunpack.c.h.b16 %v3029
      %v3365 = vunpack.c.l.b16 %v3030
      %v3366 = vunpack.c.h.b16 %v3030
      %v3367 = vunpack.c.l.b16 %v3031
      %v3368 = vunpack.c.h.b16 %v3031
      %v3369 = vunpack.c.l.b16 %v3032
      %v3370 = vunpack.c.h.b16 %v3032
      %v3371 = vunpack.c.l.b16 %v3033
      %v3372 = vunpack.c.h.b16 %v3033
      %v3373 = vunpack.c.l.b16 %v3034
      %v3374 = vunpack.c.h.b16 %v3034
      %v3375 = vunpack.c.l.b16 %v3035
      %v3376 = vunpack.c.h.b16 %v3035
      %v3377 = vunpack.c.l.b16 %v3036
      %v3378 = vunpack.c.h.b16 %v3036
      %v3379 = vunpack.c.l.b16 %v3037
      %v3380 = vunpack.c.h.b16 %v3037
      %v3381 = vunpack.c.l.b16 %v3038
      %v3382 = vunpack.c.h.b16 %v3038
      %v3383 = vunpack.c.l.b16 %v3039
      %v3384 = vunpack.c.h.b16 %v3039
      %v3385 = vunpack.c.l.b16 %v3040
      %v3386 = vunpack.c.h.b16 %v3040
      %v3387 = vunpack.c.l.b16 %v3041
      %v3388 = vunpack.c.h.b16 %v3041
      %v3389 = vunpack.c.l.b16 %v3042
      %v3390 = vunpack.c.h.b16 %v3042
      %v3391 = vunpack.c.l.b16 %v3043
      %v3392 = vunpack.c.h.b16 %v3043
      %v3393 = vunpack.c.l.b16 %v3044
      %v3394 = vunpack.c.h.b16 %v3044
      %v3395 = vunpack.c.l.b16 %v3045
      %v3396 = vunpack.c.h.b16 %v3045
      %v3397 = vunpack.c.l.b16 %v3046
      %v3398 = vunpack.c.h.b16 %v3046
      %v3399 = vunpack.c.l.b16 %v3047
      %v3400 = vunpack.c.h.b16 %v3047
      %v3401 = vunpack.c.l.b16 %v3048
      %v3402 = vunpack.c.h.b16 %v3048
      %v3403 = vunpack.c.l.b16 %v3049
      %v3404 = vunpack.c.h.b16 %v3049
      %v3405 = vunpack.c.l.b16 %v3050
      %v3406 = vunpack.c.h.b16 %v3050
      %v3407 = vunpack.c.l.b16 %v3051
      %v3408 = vunpack.c.h.b16 %v3051
      %v3409 = vunpack.c.l.b16 %v3052
      %v3410 = vunpack.c.h.b16 %v3052
      %v3411 = vunpack.c.l.b16 %v3053
      %v3412 = vunpack.c.h.b16 %v3053
      %v3413 = vunpack.c.l.b16 %v3054
      %v3414 = vunpack.c.h.b16 %v3054
      %v3415 = vunpack.c.l.b16 %v3055
      %v3416 = vunpack.c.h.b16 %v3055
      %v3417 = vunpack.c.l.b16 %v3056
      %v3418 = vunpack.c.h.b16 %v3056
      %v3419 = vunpack.c.l.b16 %v3057
      %v3420 = vunpack.c.h.b16 %v3057
      %v3421 = vunpack.c.l.b16 %v3058
      %v3422 = vunpack.c.h.b16 %v3058
      %v3423 = vunpack.c.l.b16 %v3059
      %v3424 = vunpack.c.h.b16 %v3059
      %v3425 = vunpack.c.l.b16 %v3060
      %v3426 = vunpack.c.h.b16 %v3060
      %v3427 = vunpack.c.l.b16 %v3061
      %v3428 = vunpack.c.h.b16 %v3061
      %v3429 = vunpack.c.l.b16 %v3062
      %v3430 = vunpack.c.h.b16 %v3062
      %v3431 = vunpack.c.l.b16 %v3063
      %v3432 = vunpack.c.h.b16 %v3063
      %v3433 = vunpack.c.l.b16 %v3064
      %v3434 = vunpack.c.h.b16 %v3064
      %v3435 = vunpack.c.l.b16 %v3065
      %v3436 = vunpack.c.h.b16 %v3065
      %v3437 = vunpack.c.l.b16 %v3066
      %v3438 = vunpack.c.h.b16 %v3066
      %v3439 = vpack.c.b16 %v3201, %v3199
      %v3440 = vpack.c.b16 %v3202, %v3200
      %v3441 = vpack.c.b16 %v3205, %v3203
      %v3442 = vpack.c.b16 %v3206, %v3204
      %v3443 = vpack.c.b16 %v3209, %v3207
      %v3444 = vpack.c.b16 %v3210, %v3208
      %v3445 = vpack.c.b16 %v3213, %v3211
      %v3446 = vpack.c.b16 %v3214, %v3212
      %v3447 = vpack.c.b16 %v3217, %v3215
      %v3448 = vpack.c.b16 %v3218, %v3216
      %v3449 = vpack.c.b16 %v3221, %v3219
      %v3450 = vpack.c.b16 %v3222, %v3220
      %v3451 = vpack.c.b16 %v3225, %v3223
      %v3452 = vpack.c.b16 %v3226, %v3224
      %v3453 = vpack.c.b16 %v3229, %v3227
      %v3454 = vpack.c.b16 %v3230, %v3228
      %v3455 = vpack.c.b16 %v3233, %v3231
      %v3456 = vpack.c.b16 %v3234, %v3232
      %v3457 = vpack.c.b16 %v3237, %v3235
      %v3458 = vpack.c.b16 %v3238, %v3236
      %v3459 = vpack.c.b16 %v3241, %v3239
      %v3460 = vpack.c.b16 %v3242, %v3240
      %v3461 = vpack.c.b16 %v3245, %v3243
      %v3462 = vpack.c.b16 %v3246, %v3244
      %v3463 = vpack.c.b16 %v3249, %v3247
      %v3464 = vpack.c.b16 %v3250, %v3248
      %v3465 = vpack.c.b16 %v3253, %v3251
      %v3466 = vpack.c.b16 %v3254, %v3252
      %v3467 = vpack.c.b16 %v3257, %v3255
      %v3468 = vpack.c.b16 %v3258, %v3256
      %v3469 = vpack.c.b16 %v3261, %v3259
      %v3470 = vpack.c.b16 %v3262, %v3260
      %v3471 = vpack.c.b16 %v3265, %v3263
      %v3472 = vpack.c.b16 %v3266, %v3264
      %v3473 = vpack.c.b16 %v3269, %v3267
      %v3474 = vpack.c.b16 %v3270, %v3268
      %v3475 = vpack.c.b16 %v3273, %v3271
      %v3476 = vpack.c.b16 %v3274, %v3272
      %v3477 = vpack.c.b16 %v3277, %v3275
      %v3478 = vpack.c.b16 %v3278, %v3276
      %v3479 = vpack.c.b16 %v3281, %v3279
      %v3480 = vpack.c.b16 %v3282, %v3280
      %v3481 = vpack.c.b16 %v3285, %v3283
      %v3482 = vpack.c.b16 %v3286, %v3284
      %v3483 = vpack.c.b16 %v3289, %v3287
      %v3484 = vpack.c.b16 %v3290, %v3288
      %v3485 = vpack.c.b16 %v3293, %v3291
      %v3486 = vpack.c.b16 %v3294, %v3292
      %v3487 = vpack.c.b16 %v3297, %v3295
      %v3488 = vpack.c.b16 %v3298, %v3296
      %v3489 = vpack.c.b16 %v3301, %v3299
      %v3490 = vpack.c.b16 %v3302, %v3300
      %v3491 = vpack.c.b16 %v3305, %v3303
      %v3492 = vpack.c.b16 %v3306, %v3304
      %v3493 = vpack.c.b16 %v3309, %v3307
      %v3494 = vpack.c.b16 %v3310, %v3308
      %v3495 = vpack.c.b16 %v3313, %v3311
      %v3496 = vpack.c.b16 %v3314, %v3312
      %v3497 = vpack.c.b16 %v3317, %v3315
      %v3498 = vpack.c.b16 %v3318, %v3316
      %v3499 = vpack.c.b16 %v3321, %v3319
      %v3500 = vpack.c.b16 %v3322, %v3320
      %v3501 = vpack.c.b16 %v3325, %v3323
      %v3502 = vpack.c.b16 %v3326, %v3324
      %v3503 = vpack.c.b16 %v3329, %v3327
      %v3504 = vpack.c.b16 %v3330, %v3328
      %v3505 = vpack.c.b16 %v3333, %v3331
      %v3506 = vpack.c.b16 %v3334, %v3332
      %v3507 = vpack.c.b16 %v3337, %v3335
      %v3508 = vpack.c.b16 %v3338, %v3336
      %v3509 = vpack.c.b16 %v3341, %v3339
      %v3510 = vpack.c.b16 %v3342, %v3340
      %v3511 = vpack.c.b16 %v3345, %v3343
      %v3512 = vpack.c.b16 %v3346, %v3344
      %v3513 = vpack.c.b16 %v3349, %v3347
      %v3514 = vpack.c.b16 %v3350, %v3348
      %v3515 = vpack.c.b16 %v3353, %v3351
      %v3516 = vpack.c.b16 %v3354, %v3352
      %v3517 = vpack.c.b16 %v3357, %v3355
      %v3518 = vpack.c.b16 %v3358, %v3356
      %v3519 = vpack.c.b16 %v3361, %v3359
      %v3520 = vpack.c.b16 %v3362, %v3360
      %v3521 = vpack.c.b16 %v3365, %v3363
      %v3522 = vpack.c.b16 %v3366, %v3364
      %v3523 = vpack.c.b16 %v3369, %v3367
      %v3524 = vpack.c.b16 %v3370, %v3368
      %v3525 = vpack.c.b16 %v3373, %v3371
      %v3526 = vpack.c.b16 %v3374, %v3372
      %v3527 = vpack.c.b16 %v3377, %v3375
      %v3528 = vpack.c.b16 %v3378, %v3376
      %v3529 = vpack.c.b16 %v3381, %v3379
      %v3530 = vpack.c.b16 %v3382, %v3380
      %v3531 = vpack.c.b16 %v3385, %v3383
      %v3532 = vpack.c.b16 %v3386, %v3384
      %v3533 = vpack.c.b16 %v3389, %v3387
      %v3534 = vpack.c.b16 %v3390, %v3388
      %v3535 = vpack.c.b16 %v3393, %v3391
      %v3536 = vpack.c.b16 %v3394, %v3392
      %v3537 = vpack.c.b16 %v3397, %v3395
      %v3538 = vpack.c.b16 %v3398, %v3396
      %v3539 = vpack.c.b16 %v3401, %v3399
      %v3540 = vpack.c.b16 %v3402, %v3400
      %v3541 = vpack.c.b16 %v3405, %v3403
      %v3542 = vpack.c.b16 %v3406, %v3404
      %v3543 = vpack.c.b16 %v3409, %v3407
      %v3544 = vpack.c.b16 %v3410, %v3408
      %v3545 = vpack.c.b16 %v3413, %v3411
      %v3546 = vpack.c.b16 %v3414, %v3412
      %v3547 = vpack.c.b16 %v3417, %v3415
      %v3548 = vpack.c.b16 %v3418, %v3416
      %v3549 = vpack.c.b16 %v3421, %v3419
      %v3550 = vpack.c.b16 %v3422, %v3420
      %v3551 = vpack.c.b16 %v3425, %v3423
      %v3552 = vpack.c.b16 %v3426, %v3424
      %v3553 = vpack.c.b16 %v3429, %v3427
      %v3554 = vpack.c.b16 %v3430, %v3428
      %v3555 = vpack.c.b16 %v3433, %v3431
      %v3556 = vpack.c.b16 %v3434, %v3432
      %v3557 = vpack.c.b16 %v3437, %v3435
      %v3558 = vpack.c.b16 %v3438, %v3436
      %v3680 = vsel %vm1631, %v2890, 0
      %v3683 = vsel %vm1631, %v2898, 0
      %v3686 = vsel %vm1631, %v2906, 0
      %v3689 = vsel %vm1631, %v2914, 0
      %v3692 = vsel %vm1631, %v2922, 0
      %v3695 = vsel %vm1631, %v2930, 0
      %v3698 = vsel %vm1631, %v2938, 0
      %v3701 = vsel %vm1631, %v2946, 0
      %3703 = vmatprep.subr.bf16.mxu0 %v3440
      %3704 = vmatpush1.bf16.msra.mxu0 %v3439
      %3705 = vmatprep.subr.bf16.mxu0 %v3442
      %3706 = vmatpush1.bf16.msra.mxu0 %v3441
      %3707 = vmatprep.subr.bf16.mxu0 %v3444
      %3708 = vmatpush1.bf16.msra.mxu0 %v3443
      %3709 = vmatprep.subr.bf16.mxu0 %v3446
      %3710 = vmatpush1.bf16.msra.mxu0 %v3445
      %3711 = vmatprep.subr.bf16.mxu0 %v3448
      %3712 = vmatpush1.bf16.msra.mxu0 %v3447
      %3713 = vmatprep.subr.bf16.mxu0 %v3450
      %3714 = vmatpush1.bf16.msra.mxu0 %v3449
      %3715 = vmatprep.subr.bf16.mxu0 %v3452
      %3716 = vmatpush1.bf16.msra.mxu0 %v3451
      %3717 = vmatprep.subr.bf16.mxu0 %v3454
      %3718 = vmatpush1.bf16.msra.mxu0 %v3453
      %3719 = vmatprep.subr.bf16.mxu0 %v3456
      %3720 = vmatpush1.bf16.msra.mxu0 %v3455
      %3721 = vmatprep.subr.bf16.mxu0 %v3458
      %3722 = vmatpush1.bf16.msra.mxu0 %v3457
      %3723 = vmatprep.subr.bf16.mxu0 %v3460
      %3724 = vmatpush1.bf16.msra.mxu0 %v3459
      %3725 = vmatprep.subr.bf16.mxu0 %v3462
      %3726 = vmatpush1.bf16.msra.mxu0 %v3461
      %3727 = vmatprep.subr.bf16.mxu0 %v3464
      %3728 = vmatpush1.bf16.msra.mxu0 %v3463
      %3729 = vmatprep.subr.bf16.mxu0 %v3466
      %3730 = vmatpush1.bf16.msra.mxu0 %v3465
      %3731 = vmatprep.subr.bf16.mxu0 %v3468
      %3732 = vmatpush1.bf16.msra.mxu0 %v3467
      %3733 = vmatprep.subr.bf16.mxu0 %v3470
      %3734 = vmatpush1.bf16.msra.mxu0 %v3469
      %3735 = vmatprep.mubr.bf16.mxu0 %v2884
      %3736 = vmatmul.mubr.bf16.gmra.mrb[0].mxu0 %v2883
      %v3737 = vpop.f32.mrb[0].mxu0
      %v3738 = vadd.f32 %v3072, %v3737
      %v3739 = vpop.f32.mrb[0].mxu0
      %v3740 = vadd.f32 %v3076, %v3739
      %v3741 = vpop.f32.mrb[0].mxu0
      %v3742 = vadd.f32 %v3072, %v3741
      %v3743 = vpop.f32.mrb[0].mxu0
      %v3744 = vadd.f32 %v3076, %v3743
      %3745 = vmatprep.mubr.bf16.mxu0 %v2892
      %3746 = vmatmul.mubr.bf16.gmra.mrb[0].mxu0 %v2891
      %v3747 = vpop.f32.mrb[0].mxu0
      %v3748 = vadd.f32 %v3072, %v3747
      %v3749 = vpop.f32.mrb[0].mxu0
      %v3750 = vadd.f32 %v3076, %v3749
      %v3751 = vpop.f32.mrb[0].mxu0
      %v3752 = vadd.f32 %v3072, %v3751
      %v3753 = vpop.f32.mrb[0].mxu0
      %v3754 = vadd.f32 %v3076, %v3753
      %3755 = vmatprep.mubr.bf16.mxu0 %v2900
      %3756 = vmatmul.mubr.bf16.gmra.mrb[0].mxu0 %v2899
      %v3757 = vpop.f32.mrb[0].mxu0
      %v3758 = vadd.f32 %v3072, %v3757
      %v3759 = vpop.f32.mrb[0].mxu0
      %v3760 = vadd.f32 %v3076, %v3759
      %v3761 = vpop.f32.mrb[0].mxu0
      %v3762 = vadd.f32 %v3072, %v3761
      %v3763 = vpop.f32.mrb[0].mxu0
      %v3764 = vadd.f32 %v3076, %v3763
      %3765 = vmatprep.mubr.bf16.mxu0 %v2908
      %3766 = vmatmul.mubr.bf16.gmra.mrb[0].mxu0 %v2907
      %v3767 = vpop.f32.mrb[0].mxu0
      %v3768 = vadd.f32 %v3072, %v3767
      %v3769 = vpop.f32.mrb[0].mxu0
      %v3770 = vadd.f32 %v3076, %v3769
      %v3771 = vpop.f32.mrb[0].mxu0
      %v3772 = vadd.f32 %v3072, %v3771
      %v3773 = vpop.f32.mrb[0].mxu0
      %v3774 = vadd.f32 %v3076, %v3773
      %3775 = vmatprep.mubr.bf16.mxu0 %v2916
      %3776 = vmatmul.mubr.bf16.gmra.mrb[0].mxu0 %v2915
      %v3777 = vpop.f32.mrb[0].mxu0
      %v3778 = vadd.f32 %v3072, %v3777
      %v3779 = vpop.f32.mrb[0].mxu0
      %v3780 = vadd.f32 %v3076, %v3779
      %v3781 = vpop.f32.mrb[0].mxu0
      %v3782 = vadd.f32 %v3072, %v3781
      %v3783 = vpop.f32.mrb[0].mxu0
      %v3784 = vadd.f32 %v3076, %v3783
      %3785 = vmatprep.mubr.bf16.mxu0 %v2924
      %3786 = vmatmul.mubr.bf16.gmra.mrb[0].mxu0 %v2923
      %v3787 = vpop.f32.mrb[0].mxu0
      %v3788 = vadd.f32 %v3072, %v3787
      %v3789 = vpop.f32.mrb[0].mxu0
      %v3790 = vadd.f32 %v3076, %v3789
      %v3791 = vpop.f32.mrb[0].mxu0
      %v3792 = vadd.f32 %v3072, %v3791
      %v3793 = vpop.f32.mrb[0].mxu0
      %v3794 = vadd.f32 %v3076, %v3793
      %3795 = vmatprep.mubr.bf16.mxu0 %v2932
      %3796 = vmatmul.mubr.bf16.gmra.mrb[0].mxu0 %v2931
      %v3797 = vpop.f32.mrb[0].mxu0
      %v3798 = vadd.f32 %v3072, %v3797
      %v3799 = vpop.f32.mrb[0].mxu0
      %v3800 = vadd.f32 %v3076, %v3799
      %v3801 = vpop.f32.mrb[0].mxu0
      %v3802 = vadd.f32 %v3072, %v3801
      %v3803 = vpop.f32.mrb[0].mxu0
      %v3804 = vadd.f32 %v3076, %v3803
      %3805 = vmatprep.mubr.bf16.mxu0 %v2940
      %3806 = vmatmul.mubr.bf16.gmra.mrb[0].mxu0 %v2939
      %v3807 = vpop.f32.mrb[0].mxu0
      %v3808 = vadd.f32 %v3072, %v3807
      %v3809 = vpop.f32.mrb[0].mxu0
      %v3810 = vadd.f32 %v3076, %v3809
      %v3811 = vpop.f32.mrb[0].mxu0
      %v3812 = vadd.f32 %v3072, %v3811
      %v3813 = vpop.f32.mrb[0].mxu0
      %v3814 = vadd.f32 %v3076, %v3813
      %3815 = vdwg.mxu0
      %3816 = vmatprep.subr.bf16.mxu0 %v3472
      %3817 = vmatpush1.bf16.msra.mxu0 %v3471
      %3818 = vmatprep.subr.bf16.mxu0 %v3474
      %3819 = vmatpush1.bf16.msra.mxu0 %v3473
      %3820 = vmatprep.subr.bf16.mxu0 %v3476
      %3821 = vmatpush1.bf16.msra.mxu0 %v3475
      %3822 = vmatprep.subr.bf16.mxu0 %v3478
      %3823 = vmatpush1.bf16.msra.mxu0 %v3477
      %3824 = vmatprep.subr.bf16.mxu0 %v3480
      %3825 = vmatpush1.bf16.msra.mxu0 %v3479
      %3826 = vmatprep.subr.bf16.mxu0 %v3482
      %3827 = vmatpush1.bf16.msra.mxu0 %v3481
      %3828 = vmatprep.subr.bf16.mxu0 %v3484
      %3829 = vmatpush1.bf16.msra.mxu0 %v3483
      %3830 = vmatprep.subr.bf16.mxu0 %v3486
      %3831 = vmatpush1.bf16.msra.mxu0 %v3485
      %3832 = vmatprep.subr.bf16.mxu0 %v3488
      %3833 = vmatpush1.bf16.msra.mxu0 %v3487
      %3834 = vmatprep.subr.bf16.mxu0 %v3490
      %3835 = vmatpush1.bf16.msra.mxu0 %v3489
      %3836 = vmatprep.subr.bf16.mxu0 %v3492
      %3837 = vmatpush1.bf16.msra.mxu0 %v3491
      %3838 = vmatprep.subr.bf16.mxu0 %v3494
      %3839 = vmatpush1.bf16.msra.mxu0 %v3493
      %3840 = vmatprep.subr.bf16.mxu0 %v3496
      %3841 = vmatpush1.bf16.msra.mxu0 %v3495
      %3842 = vmatprep.subr.bf16.mxu0 %v3498
      %3843 = vmatpush1.bf16.msra.mxu0 %v3497
      %3844 = vmatprep.subr.bf16.mxu0 %v3500
      %3845 = vmatpush1.bf16.msra.mxu0 %v3499
      %3846 = vmatprep.subr.bf16.mxu0 %v3502
      %3847 = vmatpush1.bf16.msra.mxu0 %v3501
      %3848 = vmatprep.mubr.bf16.mxu0 %v2886
      %3849 = vmatmul.mubr.bf16.gmra.mrb[0].mxu0 %v2885
      %v3850 = vpop.f32.mrb[0].mxu0
      %v3851 = vadd.f32 %v3738, %v3850
      %v3852 = vpop.f32.mrb[0].mxu0
      %v3853 = vadd.f32 %v3740, %v3852
      %v3854 = vpop.f32.mrb[0].mxu0
      %v3855 = vadd.f32 %v3742, %v3854
      %v3856 = vpop.f32.mrb[0].mxu0
      %v3857 = vadd.f32 %v3744, %v3856
      %3858 = vmatprep.mubr.bf16.mxu0 %v2894
      %3859 = vmatmul.mubr.bf16.gmra.mrb[0].mxu0 %v2893
      %v3860 = vpop.f32.mrb[0].mxu0
      %v3861 = vadd.f32 %v3748, %v3860
      %v3862 = vpop.f32.mrb[0].mxu0
      %v3863 = vadd.f32 %v3750, %v3862
      %v3864 = vpop.f32.mrb[0].mxu0
      %v3865 = vadd.f32 %v3752, %v3864
      %v3866 = vpop.f32.mrb[0].mxu0
      %v3867 = vadd.f32 %v3754, %v3866
      %3868 = vmatprep.mubr.bf16.mxu0 %v2902
      %3869 = vmatmul.mubr.bf16.gmra.mrb[0].mxu0 %v2901
      %v3870 = vpop.f32.mrb[0].mxu0
      %v3871 = vadd.f32 %v3758, %v3870
      %v3872 = vpop.f32.mrb[0].mxu0
      %v3873 = vadd.f32 %v3760, %v3872
      %v3874 = vpop.f32.mrb[0].mxu0
      %v3875 = vadd.f32 %v3762, %v3874
      %v3876 = vpop.f32.mrb[0].mxu0
      %v3877 = vadd.f32 %v3764, %v3876
      %3878 = vmatprep.mubr.bf16.mxu0 %v2910
      %3879 = vmatmul.mubr.bf16.gmra.mrb[0].mxu0 %v2909
      %v3880 = vpop.f32.mrb[0].mxu0
      %v3881 = vadd.f32 %v3768, %v3880
      %v3882 = vpop.f32.mrb[0].mxu0
      %v3883 = vadd.f32 %v3770, %v3882
      %v3884 = vpop.f32.mrb[0].mxu0
      %v3885 = vadd.f32 %v3772, %v3884
      %v3886 = vpop.f32.mrb[0].mxu0
      %v3887 = vadd.f32 %v3774, %v3886
      %3888 = vmatprep.mubr.bf16.mxu0 %v2918
      %3889 = vmatmul.mubr.bf16.gmra.mrb[0].mxu0 %v2917
      %v3890 = vpop.f32.mrb[0].mxu0
      %v3891 = vadd.f32 %v3778, %v3890
      %v3892 = vpop.f32.mrb[0].mxu0
      %v3893 = vadd.f32 %v3780, %v3892
      %v3894 = vpop.f32.mrb[0].mxu0
      %v3895 = vadd.f32 %v3782, %v3894
      %v3896 = vpop.f32.mrb[0].mxu0
      %v3897 = vadd.f32 %v3784, %v3896
      %3898 = vmatprep.mubr.bf16.mxu0 %v2926
      %3899 = vmatmul.mubr.bf16.gmra.mrb[0].mxu0 %v2925
      %v3900 = vpop.f32.mrb[0].mxu0
      %v3901 = vadd.f32 %v3788, %v3900
      %v3902 = vpop.f32.mrb[0].mxu0
      %v3903 = vadd.f32 %v3790, %v3902
      %v3904 = vpop.f32.mrb[0].mxu0
      %v3905 = vadd.f32 %v3792, %v3904
      %v3906 = vpop.f32.mrb[0].mxu0
      %v3907 = vadd.f32 %v3794, %v3906
      %3908 = vmatprep.mubr.bf16.mxu0 %v2934
      %3909 = vmatmul.mubr.bf16.gmra.mrb[0].mxu0 %v2933
      %v3910 = vpop.f32.mrb[0].mxu0
      %v3911 = vadd.f32 %v3798, %v3910
      %v3912 = vpop.f32.mrb[0].mxu0
      %v3913 = vadd.f32 %v3800, %v3912
      %v3914 = vpop.f32.mrb[0].mxu0
      %v3915 = vadd.f32 %v3802, %v3914
      %v3916 = vpop.f32.mrb[0].mxu0
      %v3917 = vadd.f32 %v3804, %v3916
      %3918 = vmatprep.mubr.bf16.mxu0 %v2942
      %3919 = vmatmul.mubr.bf16.gmra.mrb[0].mxu0 %v2941
      %v3920 = vpop.f32.mrb[0].mxu0
      %v3921 = vadd.f32 %v3808, %v3920
      %v3922 = vpop.f32.mrb[0].mxu0
      %v3923 = vadd.f32 %v3810, %v3922
      %v3924 = vpop.f32.mrb[0].mxu0
      %v3925 = vadd.f32 %v3812, %v3924
      %v3926 = vpop.f32.mrb[0].mxu0
      %v3927 = vadd.f32 %v3814, %v3926
      %3928 = vdwg.mxu0
      %3929 = vmatprep.subr.bf16.mxu0 %v3504
      %3930 = vmatpush1.bf16.msra.mxu0 %v3503
      %3931 = vmatprep.subr.bf16.mxu0 %v3506
      %3932 = vmatpush1.bf16.msra.mxu0 %v3505
      %3933 = vmatprep.subr.bf16.mxu0 %v3508
      %3934 = vmatpush1.bf16.msra.mxu0 %v3507
      %3935 = vmatprep.subr.bf16.mxu0 %v3510
      %3936 = vmatpush1.bf16.msra.mxu0 %v3509
      %3937 = vmatprep.subr.bf16.mxu0 %v3512
      %3938 = vmatpush1.bf16.msra.mxu0 %v3511
      %3939 = vmatprep.subr.bf16.mxu0 %v3514
      %3940 = vmatpush1.bf16.msra.mxu0 %v3513
      %3941 = vmatprep.subr.bf16.mxu0 %v3516
      %3942 = vmatpush1.bf16.msra.mxu0 %v3515
      %3943 = vmatprep.subr.bf16.mxu0 %v3518
      %3944 = vmatpush1.bf16.msra.mxu0 %v3517
      %3945 = vmatprep.subr.bf16.mxu0 %v3520
      %3946 = vmatpush1.bf16.msra.mxu0 %v3519
      %3947 = vmatprep.subr.bf16.mxu0 %v3522
      %3948 = vmatpush1.bf16.msra.mxu0 %v3521
      %3949 = vmatprep.subr.bf16.mxu0 %v3524
      %3950 = vmatpush1.bf16.msra.mxu0 %v3523
      %3951 = vmatprep.subr.bf16.mxu0 %v3526
      %3952 = vmatpush1.bf16.msra.mxu0 %v3525
      %3953 = vmatprep.subr.bf16.mxu0 %v3528
      %3954 = vmatpush1.bf16.msra.mxu0 %v3527
      %3955 = vmatprep.subr.bf16.mxu0 %v3530
      %3956 = vmatpush1.bf16.msra.mxu0 %v3529
      %3957 = vmatprep.subr.bf16.mxu0 %v3532
      %3958 = vmatpush1.bf16.msra.mxu0 %v3531
      %3959 = vmatprep.subr.bf16.mxu0 %v3534
      %3960 = vmatpush1.bf16.msra.mxu0 %v3533
      %3961 = vmatprep.mubr.bf16.mxu0 %v2888
      %3962 = vmatmul.mubr.bf16.gmra.mrb[0].mxu0 %v2887
      %v3963 = vpop.f32.mrb[0].mxu0
      %v3964 = vadd.f32 %v3851, %v3963
      %v3965 = vpop.f32.mrb[0].mxu0
      %v3966 = vadd.f32 %v3853, %v3965
      %v3967 = vpop.f32.mrb[0].mxu0
      %v3968 = vadd.f32 %v3855, %v3967
      %v3969 = vpop.f32.mrb[0].mxu0
      %v3970 = vadd.f32 %v3857, %v3969
      %3971 = vmatprep.mubr.bf16.mxu0 %v2896
      %3972 = vmatmul.mubr.bf16.gmra.mrb[0].mxu0 %v2895
      %v3973 = vpop.f32.mrb[0].mxu0
      %v3974 = vadd.f32 %v3861, %v3973
      %v3975 = vpop.f32.mrb[0].mxu0
      %v3976 = vadd.f32 %v3863, %v3975
      %v3977 = vpop.f32.mrb[0].mxu0
      %v3978 = vadd.f32 %v3865, %v3977
      %v3979 = vpop.f32.mrb[0].mxu0
      %v3980 = vadd.f32 %v3867, %v3979
      %3981 = vmatprep.mubr.bf16.mxu0 %v2904
      %3982 = vmatmul.mubr.bf16.gmra.mrb[0].mxu0 %v2903
      %v3983 = vpop.f32.mrb[0].mxu0
      %v3984 = vadd.f32 %v3871, %v3983
      %v3985 = vpop.f32.mrb[0].mxu0
      %v3986 = vadd.f32 %v3873, %v3985
      %v3987 = vpop.f32.mrb[0].mxu0
      %v3988 = vadd.f32 %v3875, %v3987
      %v3989 = vpop.f32.mrb[0].mxu0
      %v3990 = vadd.f32 %v3877, %v3989
      %3991 = vmatprep.mubr.bf16.mxu0 %v2912
      %3992 = vmatmul.mubr.bf16.gmra.mrb[0].mxu0 %v2911
      %v3993 = vpop.f32.mrb[0].mxu0
      %v3994 = vadd.f32 %v3881, %v3993
      %v3995 = vpop.f32.mrb[0].mxu0
      %v3996 = vadd.f32 %v3883, %v3995
      %v3997 = vpop.f32.mrb[0].mxu0
      %v3998 = vadd.f32 %v3885, %v3997
      %v3999 = vpop.f32.mrb[0].mxu0
      %v4000 = vadd.f32 %v3887, %v3999
      %4001 = vmatprep.mubr.bf16.mxu0 %v2920
      %4002 = vmatmul.mubr.bf16.gmra.mrb[0].mxu0 %v2919
      %v4003 = vpop.f32.mrb[0].mxu0
      %v4004 = vadd.f32 %v3891, %v4003
      %v4005 = vpop.f32.mrb[0].mxu0
      %v4006 = vadd.f32 %v3893, %v4005
      %v4007 = vpop.f32.mrb[0].mxu0
      %v4008 = vadd.f32 %v3895, %v4007
      %v4009 = vpop.f32.mrb[0].mxu0
      %v4010 = vadd.f32 %v3897, %v4009
      %4011 = vmatprep.mubr.bf16.mxu0 %v2928
      %4012 = vmatmul.mubr.bf16.gmra.mrb[0].mxu0 %v2927
      %v4013 = vpop.f32.mrb[0].mxu0
      %v4014 = vadd.f32 %v3901, %v4013
      %v4015 = vpop.f32.mrb[0].mxu0
      %v4016 = vadd.f32 %v3903, %v4015
      %v4017 = vpop.f32.mrb[0].mxu0
      %v4018 = vadd.f32 %v3905, %v4017
      %v4019 = vpop.f32.mrb[0].mxu0
      %v4020 = vadd.f32 %v3907, %v4019
      %4021 = vmatprep.mubr.bf16.mxu0 %v2936
      %4022 = vmatmul.mubr.bf16.gmra.mrb[0].mxu0 %v2935
      %v4023 = vpop.f32.mrb[0].mxu0
      %v4024 = vadd.f32 %v3911, %v4023
      %v4025 = vpop.f32.mrb[0].mxu0
      %v4026 = vadd.f32 %v3913, %v4025
      %v4027 = vpop.f32.mrb[0].mxu0
      %v4028 = vadd.f32 %v3915, %v4027
      %v4029 = vpop.f32.mrb[0].mxu0
      %v4030 = vadd.f32 %v3917, %v4029
      %4031 = vmatprep.mubr.bf16.mxu0 %v2944
      %4032 = vmatmul.mubr.bf16.gmra.mrb[0].mxu0 %v2943
      %v4033 = vpop.f32.mrb[0].mxu0
      %v4034 = vadd.f32 %v3921, %v4033
      %v4035 = vpop.f32.mrb[0].mxu0
      %v4036 = vadd.f32 %v3923, %v4035
      %v4037 = vpop.f32.mrb[0].mxu0
      %v4038 = vadd.f32 %v3925, %v4037
      %v4039 = vpop.f32.mrb[0].mxu0
      %v4040 = vadd.f32 %v3927, %v4039
      %4041 = vdwg.mxu0
      %4042 = vmatprep.subr.bf16.mxu0 %v3536
      %4043 = vmatpush1.bf16.msra.mxu0 %v3535
      %4044 = vmatprep.subr.bf16.mxu0 %v3538
      %4045 = vmatpush1.bf16.msra.mxu0 %v3537
      %4046 = vmatprep.subr.bf16.mxu0 %v3540
      %4047 = vmatpush1.bf16.msra.mxu0 %v3539
      %4048 = vmatprep.subr.bf16.mxu0 %v3542
      %4049 = vmatpush1.bf16.msra.mxu0 %v3541
      %4050 = vmatprep.subr.bf16.mxu0 %v3544
      %4051 = vmatpush1.bf16.msra.mxu0 %v3543
      %4052 = vmatprep.subr.bf16.mxu0 %v3546
      %4053 = vmatpush1.bf16.msra.mxu0 %v3545
      %4054 = vmatprep.subr.bf16.mxu0 %v3548
      %4055 = vmatpush1.bf16.msra.mxu0 %v3547
      %4056 = vmatprep.subr.bf16.mxu0 %v3550
      %4057 = vmatpush1.bf16.msra.mxu0 %v3549
      %4058 = vmatprep.subr.bf16.mxu0 %v3552
      %4059 = vmatpush1.bf16.msra.mxu0 %v3551
      %4060 = vmatprep.subr.bf16.mxu0 %v3554
      %4061 = vmatpush1.bf16.msra.mxu0 %v3553
      %4062 = vmatprep.subr.bf16.mxu0 %v3556
      %4063 = vmatpush1.bf16.msra.mxu0 %v3555
      %4064 = vmatprep.subr.bf16.mxu0 %v3558
      %4065 = vmatpush1.bf16.msra.mxu0 %v3557
      %4066 = vmatprep.subr.bf16.mxu0 0
      %4067 = vmatpush1.bf16.msra.mxu0 0
      %4068 = vmatprep.subr.bf16.mxu0 0
      %4069 = vmatpush1.bf16.msra.mxu0 0
      %4070 = vmatprep.subr.bf16.mxu0 0
      %4071 = vmatpush1.bf16.msra.mxu0 0
      %4072 = vmatprep.subr.bf16.mxu0 0
      %4073 = vmatpush1.bf16.msra.mxu0 0
      %4074 = vmatprep.mubr.bf16.mxu0 %v3680
      %4075 = vmatmul.mubr.bf16.gmra.mrb[0].mxu0 %v2889
      %v4076 = vpop.f32.mrb[0].mxu0
      %v4077 = vadd.f32 %v3964, %v4076
      %v4078 = vpop.f32.mrb[0].mxu0
      %v4079 = vadd.f32 %v3966, %v4078
      %v4080 = vpop.f32.mrb[0].mxu0
      %v4081 = vadd.f32 %v3968, %v4080
      %v4082 = vpop.f32.mrb[0].mxu0
      %v4083 = vadd.f32 %v3970, %v4082
      %4084 = vmatprep.mubr.bf16.mxu0 %v3683
      %4085 = vmatmul.mubr.bf16.gmra.mrb[0].mxu0 %v2897
      %v4086 = vpop.f32.mrb[0].mxu0
      %v4087 = vadd.f32 %v3974, %v4086
      %v4088 = vpop.f32.mrb[0].mxu0
      %v4089 = vadd.f32 %v3976, %v4088
      %v4090 = vpop.f32.mrb[0].mxu0
      %v4091 = vadd.f32 %v3978, %v4090
      %v4092 = vpop.f32.mrb[0].mxu0
      %v4093 = vadd.f32 %v3980, %v4092
      %4094 = vmatprep.mubr.bf16.mxu0 %v3686
      %4095 = vmatmul.mubr.bf16.gmra.mrb[0].mxu0 %v2905
      %v4096 = vpop.f32.mrb[0].mxu0
      %v4097 = vadd.f32 %v3984, %v4096
      %v4098 = vpop.f32.mrb[0].mxu0
      %v4099 = vadd.f32 %v3986, %v4098
      %v4100 = vpop.f32.mrb[0].mxu0
      %v4101 = vadd.f32 %v3988, %v4100
      %v4102 = vpop.f32.mrb[0].mxu0
      %v4103 = vadd.f32 %v3990, %v4102
      %4104 = vmatprep.mubr.bf16.mxu0 %v3689
      %4105 = vmatmul.mubr.bf16.gmra.mrb[0].mxu0 %v2913
      %v4106 = vpop.f32.mrb[0].mxu0
      %v4107 = vadd.f32 %v3994, %v4106
      %v4108 = vpop.f32.mrb[0].mxu0
      %v4109 = vadd.f32 %v3996, %v4108
      %v4110 = vpop.f32.mrb[0].mxu0
      %v4111 = vadd.f32 %v3998, %v4110
      %v4112 = vpop.f32.mrb[0].mxu0
      %v4113 = vadd.f32 %v4000, %v4112
      %4114 = vmatprep.mubr.bf16.mxu0 %v3692
      %4115 = vmatmul.mubr.bf16.gmra.mrb[0].mxu0 %v2921
      %v4116 = vpop.f32.mrb[0].mxu0
      %v4117 = vadd.f32 %v4004, %v4116
      %v4118 = vpop.f32.mrb[0].mxu0
      %v4119 = vadd.f32 %v4006, %v4118
      %v4120 = vpop.f32.mrb[0].mxu0
      %v4121 = vadd.f32 %v4008, %v4120
      %v4122 = vpop.f32.mrb[0].mxu0
      %v4123 = vadd.f32 %v4010, %v4122
      %4124 = vmatprep.mubr.bf16.mxu0 %v3695
      %4125 = vmatmul.mubr.bf16.gmra.mrb[0].mxu0 %v2929
      %v4126 = vpop.f32.mrb[0].mxu0
      %v4127 = vadd.f32 %v4014, %v4126
      %v4128 = vpop.f32.mrb[0].mxu0
      %v4129 = vadd.f32 %v4016, %v4128
      %v4130 = vpop.f32.mrb[0].mxu0
      %v4131 = vadd.f32 %v4018, %v4130
      %v4132 = vpop.f32.mrb[0].mxu0
      %v4133 = vadd.f32 %v4020, %v4132
      %4134 = vmatprep.mubr.bf16.mxu0 %v3698
      %4135 = vmatmul.mubr.bf16.gmra.mrb[0].mxu0 %v2937
      %v4136 = vpop.f32.mrb[0].mxu0
      %v4137 = vadd.f32 %v4024, %v4136
      %v4138 = vpop.f32.mrb[0].mxu0
      %v4139 = vadd.f32 %v4026, %v4138
      %v4140 = vpop.f32.mrb[0].mxu0
      %v4141 = vadd.f32 %v4028, %v4140
      %v4142 = vpop.f32.mrb[0].mxu0
      %v4143 = vadd.f32 %v4030, %v4142
      %4144 = vmatprep.mubr.bf16.mxu0 %v3701
      %4145 = vmatmul.mubr.bf16.gmra.mrb[0].mxu0 %v2945
      %v4146 = vpop.f32.mrb[0].mxu0
      %v4147 = vadd.f32 %v4034, %v4146
      %v4148 = vpop.f32.mrb[0].mxu0
      %v4149 = vadd.f32 %v4036, %v4148
      %v4150 = vpop.f32.mrb[0].mxu0
      %v4151 = vadd.f32 %v4038, %v4150
      %v4152 = vpop.f32.mrb[0].mxu0
      %v4153 = vadd.f32 %v4040, %v4152
      %4154 = vdwg.mxu0
      %v4155 = vmax.f32 %v4077, 0.0
      %v4156 = vmax.f32 %v4079, 0.0
      %v4157 = vmax.f32 %v4081, 0.0
      %v4158 = vmax.f32 %v4083, 0.0
      %v4159 = vmax.f32 %v4087, 0.0
      %v4160 = vmax.f32 %v4089, 0.0
      %v4161 = vmax.f32 %v4091, 0.0
      %v4162 = vmax.f32 %v4093, 0.0
      %v4163 = vmax.f32 %v4097, 0.0
      %v4164 = vmax.f32 %v4099, 0.0
      %v4165 = vmax.f32 %v4101, 0.0
      %v4166 = vmax.f32 %v4103, 0.0
      %v4167 = vmax.f32 %v4107, 0.0
      %v4168 = vmax.f32 %v4109, 0.0
      %v4169 = vmax.f32 %v4111, 0.0
      %v4170 = vmax.f32 %v4113, 0.0
      %v4171 = vmax.f32 %v4117, 0.0
      %v4172 = vmax.f32 %v4119, 0.0
      %v4173 = vmax.f32 %v4121, 0.0
      %v4174 = vmax.f32 %v4123, 0.0
      %v4175 = vmax.f32 %v4127, 0.0
      %v4176 = vmax.f32 %v4129, 0.0
      %v4177 = vmax.f32 %v4131, 0.0
      %v4178 = vmax.f32 %v4133, 0.0
      %v4179 = vmax.f32 %v4137, 0.0
      %v4180 = vmax.f32 %v4139, 0.0
      %v4181 = vmax.f32 %v4141, 0.0
      %v4182 = vmax.f32 %v4143, 0.0
      %v4183 = vmax.f32 %v4147, 0.0
      %v4184 = vmax.f32 %v4149, 0.0
      %v4185 = vmax.f32 %v4151, 0.0
      %v4186 = vmax.f32 %v4153, 0.0
      %v4187 = vmax.f32 %v4155, %v4156
      %v4188 = vmax.f32 %v4157, %v4158
      %v4189 = vmax.f32 %v4159, %v4160
      %v4190 = vmax.f32 %v4161, %v4162
      %v4191 = vmax.f32 %v4163, %v4164
      %v4192 = vmax.f32 %v4165, %v4166
      %v4193 = vmax.f32 %v4167, %v4168
      %v4194 = vmax.f32 %v4169, %v4170
      %v4195 = vmax.f32 %v4171, %v4172
      %v4196 = vmax.f32 %v4173, %v4174
      %v4197 = vmax.f32 %v4175, %v4176
      %v4198 = vmax.f32 %v4177, %v4178
      %v4199 = vmax.f32 %v4179, %v4180
      %v4200 = vmax.f32 %v4181, %v4182
      %v4201 = vmax.f32 %v4183, %v4184
      %v4202 = vmax.f32 %v4185, %v4186
      %vm4203 = vcmask 1041408
      %v4204 = vsel %vm4203, %v4187, -inf
      %v4205 = vrot.slane %v4204, 4
      %v4206 = vmax.f32 %v4204, %v4205
      %v4207 = vrot.slane %v4206, 2
      %v4208 = vmax.f32 %v4206, %v4207
      %v4209 = vrot.slane %v4208, 1
      %v4210 = vmax.f32 %v4208, %v4209
      %v4211 = vsel %vm4203, %v4188, -inf
      %v4212 = vrot.slane %v4211, 4
      %v4213 = vmax.f32 %v4211, %v4212
      %v4214 = vrot.slane %v4213, 2
      %v4215 = vmax.f32 %v4213, %v4214
      %v4216 = vrot.slane %v4215, 1
      %v4217 = vmax.f32 %v4215, %v4216
      %v4218 = vsel %vm4203, %v4189, -inf
      %v4219 = vrot.slane %v4218, 4
      %v4220 = vmax.f32 %v4218, %v4219
      %v4221 = vrot.slane %v4220, 2
      %v4222 = vmax.f32 %v4220, %v4221
      %v4223 = vrot.slane %v4222, 1
      %v4224 = vmax.f32 %v4222, %v4223
      %v4225 = vsel %vm4203, %v4190, -inf
      %v4226 = vrot.slane %v4225, 4
      %v4227 = vmax.f32 %v4225, %v4226
      %v4228 = vrot.slane %v4227, 2
      %v4229 = vmax.f32 %v4227, %v4228
      %v4230 = vrot.slane %v4229, 1
      %v4231 = vmax.f32 %v4229, %v4230
      %v4232 = vsel %vm4203, %v4191, -inf
      %v4233 = vrot.slane %v4232, 4
      %v4234 = vmax.f32 %v4232, %v4233
      %v4235 = vrot.slane %v4234, 2
      %v4236 = vmax.f32 %v4234, %v4235
      %v4237 = vrot.slane %v4236, 1
      %v4238 = vmax.f32 %v4236, %v4237
      %v4239 = vsel %vm4203, %v4192, -inf
      %v4240 = vrot.slane %v4239, 4
      %v4241 = vmax.f32 %v4239, %v4240
      %v4242 = vrot.slane %v4241, 2
      %v4243 = vmax.f32 %v4241, %v4242
      %v4244 = vrot.slane %v4243, 1
      %v4245 = vmax.f32 %v4243, %v4244
      %v4246 = vsel %vm4203, %v4193, -inf
      %v4247 = vrot.slane %v4246, 4
      %v4248 = vmax.f32 %v4246, %v4247
      %v4249 = vrot.slane %v4248, 2
      %v4250 = vmax.f32 %v4248, %v4249
      %v4251 = vrot.slane %v4250, 1
      %v4252 = vmax.f32 %v4250, %v4251
      %v4253 = vsel %vm4203, %v4194, -inf
      %v4254 = vrot.slane %v4253, 4
      %v4255 = vmax.f32 %v4253, %v4254
      %v4256 = vrot.slane %v4255, 2
      %v4257 = vmax.f32 %v4255, %v4256
      %v4258 = vrot.slane %v4257, 1
      %v4259 = vmax.f32 %v4257, %v4258
      %v4260 = vsel %vm4203, %v4195, -inf
      %v4261 = vrot.slane %v4260, 4
      %v4262 = vmax.f32 %v4260, %v4261
      %v4263 = vrot.slane %v4262, 2
      %v4264 = vmax.f32 %v4262, %v4263
      %v4265 = vrot.slane %v4264, 1
      %v4266 = vmax.f32 %v4264, %v4265
      %v4267 = vsel %vm4203, %v4196, -inf
      %v4268 = vrot.slane %v4267, 4
      %v4269 = vmax.f32 %v4267, %v4268
      %v4270 = vrot.slane %v4269, 2
      %v4271 = vmax.f32 %v4269, %v4270
      %v4272 = vrot.slane %v4271, 1
      %v4273 = vmax.f32 %v4271, %v4272
      %v4274 = vsel %vm4203, %v4197, -inf
      %v4275 = vrot.slane %v4274, 4
      %v4276 = vmax.f32 %v4274, %v4275
      %v4277 = vrot.slane %v4276, 2
      %v4278 = vmax.f32 %v4276, %v4277
      %v4279 = vrot.slane %v4278, 1
      %v4280 = vmax.f32 %v4278, %v4279
      %v4281 = vsel %vm4203, %v4198, -inf
      %v4282 = vrot.slane %v4281, 4
      %v4283 = vmax.f32 %v4281, %v4282
      %v4284 = vrot.slane %v4283, 2
      %v4285 = vmax.f32 %v4283, %v4284
      %v4286 = vrot.slane %v4285, 1
      %v4287 = vmax.f32 %v4285, %v4286
      %v4288 = vsel %vm4203, %v4199, -inf
      %v4289 = vrot.slane %v4288, 4
      %v4290 = vmax.f32 %v4288, %v4289
      %v4291 = vrot.slane %v4290, 2
      %v4292 = vmax.f32 %v4290, %v4291
      %v4293 = vrot.slane %v4292, 1
      %v4294 = vmax.f32 %v4292, %v4293
      %v4295 = vsel %vm4203, %v4200, -inf
      %v4296 = vrot.slane %v4295, 4
      %v4297 = vmax.f32 %v4295, %v4296
      %v4298 = vrot.slane %v4297, 2
      %v4299 = vmax.f32 %v4297, %v4298
      %v4300 = vrot.slane %v4299, 1
      %v4301 = vmax.f32 %v4299, %v4300
      %v4302 = vsel %vm4203, %v4201, -inf
      %v4303 = vrot.slane %v4302, 4
      %v4304 = vmax.f32 %v4302, %v4303
      %v4305 = vrot.slane %v4304, 2
      %v4306 = vmax.f32 %v4304, %v4305
      %v4307 = vrot.slane %v4306, 1
      %v4308 = vmax.f32 %v4306, %v4307
      %v4309 = vsel %vm4203, %v4202, -inf
      %v4310 = vrot.slane %v4309, 4
      %v4311 = vmax.f32 %v4309, %v4310
      %v4312 = vrot.slane %v4311, 2
      %v4313 = vmax.f32 %v4311, %v4312
      %v4314 = vrot.slane %v4313, 1
      %v4315 = vmax.f32 %v4313, %v4314
      %vm4316 = vcmask 1043458
      %v4317 = vsel %vm4316, %v4187, -inf
      %v4318 = vrot.slane %v4317, 4
      %v4319 = vmax.f32 %v4317, %v4318
      %v4320 = vrot.slane %v4319, 2
      %v4321 = vmax.f32 %v4319, %v4320
      %v4322 = vrot.slane %v4321, 1
      %v4323 = vmax.f32 %v4321, %v4322
      %v4324 = vsel %vm4316, %v4188, -inf
      %v4325 = vrot.slane %v4324, 4
      %v4326 = vmax.f32 %v4324, %v4325
      %v4327 = vrot.slane %v4326, 2
      %v4328 = vmax.f32 %v4326, %v4327
      %v4329 = vrot.slane %v4328, 1
      %v4330 = vmax.f32 %v4328, %v4329
      %v4331 = vsel %vm4316, %v4189, -inf
      %v4332 = vrot.slane %v4331, 4
      %v4333 = vmax.f32 %v4331, %v4332
      %v4334 = vrot.slane %v4333, 2
      %v4335 = vmax.f32 %v4333, %v4334
      %v4336 = vrot.slane %v4335, 1
      %v4337 = vmax.f32 %v4335, %v4336
      %v4338 = vsel %vm4316, %v4190, -inf
      %v4339 = vrot.slane %v4338, 4
      %v4340 = vmax.f32 %v4338, %v4339
      %v4341 = vrot.slane %v4340, 2
      %v4342 = vmax.f32 %v4340, %v4341
      %v4343 = vrot.slane %v4342, 1
      %v4344 = vmax.f32 %v4342, %v4343
      %v4345 = vsel %vm4316, %v4191, -inf
      %v4346 = vrot.slane %v4345, 4
      %v4347 = vmax.f32 %v4345, %v4346
      %v4348 = vrot.slane %v4347, 2
      %v4349 = vmax.f32 %v4347, %v4348
      %v4350 = vrot.slane %v4349, 1
      %v4351 = vmax.f32 %v4349, %v4350
      %v4352 = vsel %vm4316, %v4192, -inf
      %v4353 = vrot.slane %v4352, 4
      %v4354 = vmax.f32 %v4352, %v4353
      %v4355 = vrot.slane %v4354, 2
      %v4356 = vmax.f32 %v4354, %v4355
      %v4357 = vrot.slane %v4356, 1
      %v4358 = vmax.f32 %v4356, %v4357
      %v4359 = vsel %vm4316, %v4193, -inf
      %v4360 = vrot.slane %v4359, 4
      %v4361 = vmax.f32 %v4359, %v4360
      %v4362 = vrot.slane %v4361, 2
      %v4363 = vmax.f32 %v4361, %v4362
      %v4364 = vrot.slane %v4363, 1
      %v4365 = vmax.f32 %v4363, %v4364
      %v4366 = vsel %vm4316, %v4194, -inf
      %v4367 = vrot.slane %v4366, 4
      %v4368 = vmax.f32 %v4366, %v4367
      %v4369 = vrot.slane %v4368, 2
      %v4370 = vmax.f32 %v4368, %v4369
      %v4371 = vrot.slane %v4370, 1
      %v4372 = vmax.f32 %v4370, %v4371
      %v4373 = vsel %vm4316, %v4195, -inf
      %v4374 = vrot.slane %v4373, 4
      %v4375 = vmax.f32 %v4373, %v4374
      %v4376 = vrot.slane %v4375, 2
      %v4377 = vmax.f32 %v4375, %v4376
      %v4378 = vrot.slane %v4377, 1
      %v4379 = vmax.f32 %v4377, %v4378
      %v4380 = vsel %vm4316, %v4196, -inf
      %v4381 = vrot.slane %v4380, 4
      %v4382 = vmax.f32 %v4380, %v4381
      %v4383 = vrot.slane %v4382, 2
      %v4384 = vmax.f32 %v4382, %v4383
      %v4385 = vrot.slane %v4384, 1
      %v4386 = vmax.f32 %v4384, %v4385
      %v4387 = vsel %vm4316, %v4197, -inf
      %v4388 = vrot.slane %v4387, 4
      %v4389 = vmax.f32 %v4387, %v4388
      %v4390 = vrot.slane %v4389, 2
      %v4391 = vmax.f32 %v4389, %v4390
      %v4392 = vrot.slane %v4391, 1
      %v4393 = vmax.f32 %v4391, %v4392
      %v4394 = vsel %vm4316, %v4198, -inf
      %v4395 = vrot.slane %v4394, 4
      %v4396 = vmax.f32 %v4394, %v4395
      %v4397 = vrot.slane %v4396, 2
      %v4398 = vmax.f32 %v4396, %v4397
      %v4399 = vrot.slane %v4398, 1
      %v4400 = vmax.f32 %v4398, %v4399
      %v4401 = vsel %vm4316, %v4199, -inf
      %v4402 = vrot.slane %v4401, 4
      %v4403 = vmax.f32 %v4401, %v4402
      %v4404 = vrot.slane %v4403, 2
      %v4405 = vmax.f32 %v4403, %v4404
      %v4406 = vrot.slane %v4405, 1
      %v4407 = vmax.f32 %v4405, %v4406
      %v4408 = vsel %vm4316, %v4200, -inf
      %v4409 = vrot.slane %v4408, 4
      %v4410 = vmax.f32 %v4408, %v4409
      %v4411 = vrot.slane %v4410, 2
      %v4412 = vmax.f32 %v4410, %v4411
      %v4413 = vrot.slane %v4412, 1
      %v4414 = vmax.f32 %v4412, %v4413
      %v4415 = vsel %vm4316, %v4201, -inf
      %v4416 = vrot.slane %v4415, 4
      %v4417 = vmax.f32 %v4415, %v4416
      %v4418 = vrot.slane %v4417, 2
      %v4419 = vmax.f32 %v4417, %v4418
      %v4420 = vrot.slane %v4419, 1
      %v4421 = vmax.f32 %v4419, %v4420
      %v4422 = vsel %vm4316, %v4202, -inf
      %v4423 = vrot.slane %v4422, 4
      %v4424 = vmax.f32 %v4422, %v4423
      %v4425 = vrot.slane %v4424, 2
      %v4426 = vmax.f32 %v4424, %v4425
      %v4427 = vrot.slane %v4426, 1
      %v4428 = vmax.f32 %v4426, %v4427
      %vm4429 = vcmask 1045508
      %v4430 = vsel %vm4429, %v4187, -inf
      %v4431 = vrot.slane %v4430, 4
      %v4432 = vmax.f32 %v4430, %v4431
      %v4433 = vrot.slane %v4432, 2
      %v4434 = vmax.f32 %v4432, %v4433
      %v4435 = vrot.slane %v4434, 1
      %v4436 = vmax.f32 %v4434, %v4435
      %v4437 = vsel %vm4429, %v4188, -inf
      %v4438 = vrot.slane %v4437, 4
      %v4439 = vmax.f32 %v4437, %v4438
      %v4440 = vrot.slane %v4439, 2
      %v4441 = vmax.f32 %v4439, %v4440
      %v4442 = vrot.slane %v4441, 1
      %v4443 = vmax.f32 %v4441, %v4442
      %v4444 = vsel %vm4429, %v4189, -inf
      %v4445 = vrot.slane %v4444, 4
      %v4446 = vmax.f32 %v4444, %v4445
      %v4447 = vrot.slane %v4446, 2
      %v4448 = vmax.f32 %v4446, %v4447
      %v4449 = vrot.slane %v4448, 1
      %v4450 = vmax.f32 %v4448, %v4449
      %v4451 = vsel %vm4429, %v4190, -inf
      %v4452 = vrot.slane %v4451, 4
      %v4453 = vmax.f32 %v4451, %v4452
      %v4454 = vrot.slane %v4453, 2
      %v4455 = vmax.f32 %v4453, %v4454
      %v4456 = vrot.slane %v4455, 1
      %v4457 = vmax.f32 %v4455, %v4456
      %v4458 = vsel %vm4429, %v4191, -inf
      %v4459 = vrot.slane %v4458, 4
      %v4460 = vmax.f32 %v4458, %v4459
      %v4461 = vrot.slane %v4460, 2
      %v4462 = vmax.f32 %v4460, %v4461
      %v4463 = vrot.slane %v4462, 1
      %v4464 = vmax.f32 %v4462, %v4463
      %v4465 = vsel %vm4429, %v4192, -inf
      %v4466 = vrot.slane %v4465, 4
      %v4467 = vmax.f32 %v4465, %v4466
      %v4468 = vrot.slane %v4467, 2
      %v4469 = vmax.f32 %v4467, %v4468
      %v4470 = vrot.slane %v4469, 1
      %v4471 = vmax.f32 %v4469, %v4470
      %v4472 = vsel %vm4429, %v4193, -inf
      %v4473 = vrot.slane %v4472, 4
      %v4474 = vmax.f32 %v4472, %v4473
      %v4475 = vrot.slane %v4474, 2
      %v4476 = vmax.f32 %v4474, %v4475
      %v4477 = vrot.slane %v4476, 1
      %v4478 = vmax.f32 %v4476, %v4477
      %v4479 = vsel %vm4429, %v4194, -inf
      %v4480 = vrot.slane %v4479, 4
      %v4481 = vmax.f32 %v4479, %v4480
      %v4482 = vrot.slane %v4481, 2
      %v4483 = vmax.f32 %v4481, %v4482
      %v4484 = vrot.slane %v4483, 1
      %v4485 = vmax.f32 %v4483, %v4484
      %v4486 = vsel %vm4429, %v4195, -inf
      %v4487 = vrot.slane %v4486, 4
      %v4488 = vmax.f32 %v4486, %v4487
      %v4489 = vrot.slane %v4488, 2
      %v4490 = vmax.f32 %v4488, %v4489
      %v4491 = vrot.slane %v4490, 1
      %v4492 = vmax.f32 %v4490, %v4491
      %v4493 = vsel %vm4429, %v4196, -inf
      %v4494 = vrot.slane %v4493, 4
      %v4495 = vmax.f32 %v4493, %v4494
      %v4496 = vrot.slane %v4495, 2
      %v4497 = vmax.f32 %v4495, %v4496
      %v4498 = vrot.slane %v4497, 1
      %v4499 = vmax.f32 %v4497, %v4498
      %v4500 = vsel %vm4429, %v4197, -inf
      %v4501 = vrot.slane %v4500, 4
      %v4502 = vmax.f32 %v4500, %v4501
      %v4503 = vrot.slane %v4502, 2
      %v4504 = vmax.f32 %v4502, %v4503
      %v4505 = vrot.slane %v4504, 1
      %v4506 = vmax.f32 %v4504, %v4505
      %v4507 = vsel %vm4429, %v4198, -inf
      %v4508 = vrot.slane %v4507, 4
      %v4509 = vmax.f32 %v4507, %v4508
      %v4510 = vrot.slane %v4509, 2
      %v4511 = vmax.f32 %v4509, %v4510
      %v4512 = vrot.slane %v4511, 1
      %v4513 = vmax.f32 %v4511, %v4512
      %v4514 = vsel %vm4429, %v4199, -inf
      %v4515 = vrot.slane %v4514, 4
      %v4516 = vmax.f32 %v4514, %v4515
      %v4517 = vrot.slane %v4516, 2
      %v4518 = vmax.f32 %v4516, %v4517
      %v4519 = vrot.slane %v4518, 1
      %v4520 = vmax.f32 %v4518, %v4519
      %v4521 = vsel %vm4429, %v4200, -inf
      %v4522 = vrot.slane %v4521, 4
      %v4523 = vmax.f32 %v4521, %v4522
      %v4524 = vrot.slane %v4523, 2
      %v4525 = vmax.f32 %v4523, %v4524
      %v4526 = vrot.slane %v4525, 1
      %v4527 = vmax.f32 %v4525, %v4526
      %v4528 = vsel %vm4429, %v4201, -inf
      %v4529 = vrot.slane %v4528, 4
      %v4530 = vmax.f32 %v4528, %v4529
      %v4531 = vrot.slane %v4530, 2
      %v4532 = vmax.f32 %v4530, %v4531
      %v4533 = vrot.slane %v4532, 1
      %v4534 = vmax.f32 %v4532, %v4533
      %v4535 = vsel %vm4429, %v4202, -inf
      %v4536 = vrot.slane %v4535, 4
      %v4537 = vmax.f32 %v4535, %v4536
      %v4538 = vrot.slane %v4537, 2
      %v4539 = vmax.f32 %v4537, %v4538
      %v4540 = vrot.slane %v4539, 1
      %v4541 = vmax.f32 %v4539, %v4540
      %vm4542 = vcmask 1047558
      %v4543 = vsel %vm4542, %v4187, -inf
      %v4544 = vrot.slane %v4543, 4
      %v4545 = vmax.f32 %v4543, %v4544
      %v4546 = vrot.slane %v4545, 2
      %v4547 = vmax.f32 %v4545, %v4546
      %v4548 = vrot.slane %v4547, 1
      %v4549 = vmax.f32 %v4547, %v4548
      %v4550 = vsel %vm4542, %v4188, -inf
      %v4551 = vrot.slane %v4550, 4
      %v4552 = vmax.f32 %v4550, %v4551
      %v4553 = vrot.slane %v4552, 2
      %v4554 = vmax.f32 %v4552, %v4553
      %v4555 = vrot.slane %v4554, 1
      %v4556 = vmax.f32 %v4554, %v4555
      %v4557 = vsel %vm4542, %v4189, -inf
      %v4558 = vrot.slane %v4557, 4
      %v4559 = vmax.f32 %v4557, %v4558
      %v4560 = vrot.slane %v4559, 2
      %v4561 = vmax.f32 %v4559, %v4560
      %v4562 = vrot.slane %v4561, 1
      %v4563 = vmax.f32 %v4561, %v4562
      %v4564 = vsel %vm4542, %v4190, -inf
      %v4565 = vrot.slane %v4564, 4
      %v4566 = vmax.f32 %v4564, %v4565
      %v4567 = vrot.slane %v4566, 2
      %v4568 = vmax.f32 %v4566, %v4567
      %v4569 = vrot.slane %v4568, 1
      %v4570 = vmax.f32 %v4568, %v4569
      %v4571 = vsel %vm4542, %v4191, -inf
      %v4572 = vrot.slane %v4571, 4
      %v4573 = vmax.f32 %v4571, %v4572
      %v4574 = vrot.slane %v4573, 2
      %v4575 = vmax.f32 %v4573, %v4574
      %v4576 = vrot.slane %v4575, 1
      %v4577 = vmax.f32 %v4575, %v4576
      %v4578 = vsel %vm4542, %v4192, -inf
      %v4579 = vrot.slane %v4578, 4
      %v4580 = vmax.f32 %v4578, %v4579
      %v4581 = vrot.slane %v4580, 2
      %v4582 = vmax.f32 %v4580, %v4581
      %v4583 = vrot.slane %v4582, 1
      %v4584 = vmax.f32 %v4582, %v4583
      %v4585 = vsel %vm4542, %v4193, -inf
      %v4586 = vrot.slane %v4585, 4
      %v4587 = vmax.f32 %v4585, %v4586
      %v4588 = vrot.slane %v4587, 2
      %v4589 = vmax.f32 %v4587, %v4588
      %v4590 = vrot.slane %v4589, 1
      %v4591 = vmax.f32 %v4589, %v4590
      %v4592 = vsel %vm4542, %v4194, -inf
      %v4593 = vrot.slane %v4592, 4
      %v4594 = vmax.f32 %v4592, %v4593
      %v4595 = vrot.slane %v4594, 2
      %v4596 = vmax.f32 %v4594, %v4595
      %v4597 = vrot.slane %v4596, 1
      %v4598 = vmax.f32 %v4596, %v4597
      %v4599 = vsel %vm4542, %v4195, -inf
      %v4600 = vrot.slane %v4599, 4
      %v4601 = vmax.f32 %v4599, %v4600
      %v4602 = vrot.slane %v4601, 2
      %v4603 = vmax.f32 %v4601, %v4602
      %v4604 = vrot.slane %v4603, 1
      %v4605 = vmax.f32 %v4603, %v4604
      %v4606 = vsel %vm4542, %v4196, -inf
      %v4607 = vrot.slane %v4606, 4
      %v4608 = vmax.f32 %v4606, %v4607
      %v4609 = vrot.slane %v4608, 2
      %v4610 = vmax.f32 %v4608, %v4609
      %v4611 = vrot.slane %v4610, 1
      %v4612 = vmax.f32 %v4610, %v4611
      %v4613 = vsel %vm4542, %v4197, -inf
      %v4614 = vrot.slane %v4613, 4
      %v4615 = vmax.f32 %v4613, %v4614
      %v4616 = vrot.slane %v4615, 2
      %v4617 = vmax.f32 %v4615, %v4616
      %v4618 = vrot.slane %v4617, 1
      %v4619 = vmax.f32 %v4617, %v4618
      %v4620 = vsel %vm4542, %v4198, -inf
      %v4621 = vrot.slane %v4620, 4
      %v4622 = vmax.f32 %v4620, %v4621
      %v4623 = vrot.slane %v4622, 2
      %v4624 = vmax.f32 %v4622, %v4623
      %v4625 = vrot.slane %v4624, 1
      %v4626 = vmax.f32 %v4624, %v4625
      %v4627 = vsel %vm4542, %v4199, -inf
      %v4628 = vrot.slane %v4627, 4
      %v4629 = vmax.f32 %v4627, %v4628
      %v4630 = vrot.slane %v4629, 2
      %v4631 = vmax.f32 %v4629, %v4630
      %v4632 = vrot.slane %v4631, 1
      %v4633 = vmax.f32 %v4631, %v4632
      %v4634 = vsel %vm4542, %v4200, -inf
      %v4635 = vrot.slane %v4634, 4
      %v4636 = vmax.f32 %v4634, %v4635
      %v4637 = vrot.slane %v4636, 2
      %v4638 = vmax.f32 %v4636, %v4637
      %v4639 = vrot.slane %v4638, 1
      %v4640 = vmax.f32 %v4638, %v4639
      %v4641 = vsel %vm4542, %v4201, -inf
      %v4642 = vrot.slane %v4641, 4
      %v4643 = vmax.f32 %v4641, %v4642
      %v4644 = vrot.slane %v4643, 2
      %v4645 = vmax.f32 %v4643, %v4644
      %v4646 = vrot.slane %v4645, 1
      %v4647 = vmax.f32 %v4645, %v4646
      %v4648 = vsel %vm4542, %v4202, -inf
      %v4649 = vrot.slane %v4648, 4
      %v4650 = vmax.f32 %v4648, %v4649
      %v4651 = vrot.slane %v4650, 2
      %v4652 = vmax.f32 %v4650, %v4651
      %v4653 = vrot.slane %v4652, 1
      %v4654 = vmax.f32 %v4652, %v4653
      %vm4671 = vcmask 1041409
      %v4672 = vsel %vm4671, %v4217, %v4210
      %vm4673 = vcmask 1042434
      %v4674 = vsel %vm4673, %v4224, %v4672
      %vm4675 = vcmask 1043459
      %v4676 = vsel %vm4675, %v4231, %v4674
      %vm4677 = vcmask 1044484
      %v4678 = vsel %vm4677, %v4238, %v4676
      %vm4679 = vcmask 1045509
      %v4680 = vsel %vm4679, %v4245, %v4678
      %vm4681 = vcmask 1046534
      %v4682 = vsel %vm4681, %v4252, %v4680
      %vm4683 = vcmask 1047559
      %v4684 = vsel %vm4683, %v4259, %v4682
      %v4685 = vsel %vm4671, %v4273, %v4266
      %v4686 = vsel %vm4673, %v4280, %v4685
      %v4687 = vsel %vm4675, %v4287, %v4686
      %v4688 = vsel %vm4677, %v4294, %v4687
      %v4689 = vsel %vm4679, %v4301, %v4688
      %v4690 = vsel %vm4681, %v4308, %v4689
      %v4691 = vsel %vm4683, %v4315, %v4690
      %v4710 = vsel %vm4671, %v4330, %v4323
      %v4711 = vsel %vm4673, %v4337, %v4710
      %v4712 = vsel %vm4675, %v4344, %v4711
      %v4713 = vsel %vm4677, %v4351, %v4712
      %v4714 = vsel %vm4679, %v4358, %v4713
      %v4715 = vsel %vm4681, %v4365, %v4714
      %v4716 = vsel %vm4683, %v4372, %v4715
      %v4717 = vsel %vm4671, %v4386, %v4379
      %v4718 = vsel %vm4673, %v4393, %v4717
      %v4719 = vsel %vm4675, %v4400, %v4718
      %v4720 = vsel %vm4677, %v4407, %v4719
      %v4721 = vsel %vm4679, %v4414, %v4720
      %v4722 = vsel %vm4681, %v4421, %v4721
      %v4723 = vsel %vm4683, %v4428, %v4722
      %v4742 = vsel %vm4671, %v4443, %v4436
      %v4743 = vsel %vm4673, %v4450, %v4742
      %v4744 = vsel %vm4675, %v4457, %v4743
      %v4745 = vsel %vm4677, %v4464, %v4744
      %v4746 = vsel %vm4679, %v4471, %v4745
      %v4747 = vsel %vm4681, %v4478, %v4746
      %v4748 = vsel %vm4683, %v4485, %v4747
      %v4749 = vsel %vm4671, %v4499, %v4492
      %v4750 = vsel %vm4673, %v4506, %v4749
      %v4751 = vsel %vm4675, %v4513, %v4750
      %v4752 = vsel %vm4677, %v4520, %v4751
      %v4753 = vsel %vm4679, %v4527, %v4752
      %v4754 = vsel %vm4681, %v4534, %v4753
      %v4755 = vsel %vm4683, %v4541, %v4754
      %v4774 = vsel %vm4671, %v4556, %v4549
      %v4775 = vsel %vm4673, %v4563, %v4774
      %v4776 = vsel %vm4675, %v4570, %v4775
      %v4777 = vsel %vm4677, %v4577, %v4776
      %v4778 = vsel %vm4679, %v4584, %v4777
      %v4779 = vsel %vm4681, %v4591, %v4778
      %v4780 = vsel %vm4683, %v4598, %v4779
      %v4781 = vsel %vm4671, %v4612, %v4605
      %v4782 = vsel %vm4673, %v4619, %v4781
      %v4783 = vsel %vm4675, %v4626, %v4782
      %v4784 = vsel %vm4677, %v4633, %v4783
      %v4785 = vsel %vm4679, %v4640, %v4784
      %v4786 = vsel %vm4681, %v4647, %v4785
      %v4787 = vsel %vm4683, %v4654, %v4786
      %v4790 = vpack.c.bf16 %v4691, %v4684
      %v4791 = vpack.c.bf16 %v4723, %v4716
      %v4792 = vpack.c.bf16 %v4755, %v4748
      %v4793 = vpack.c.bf16 %v4787, %v4780
      %v4794 = vld [vmem:[%s5] sm:$0xf]
      %v4795 = vld [vmem:[%s5 + $0x4] sm:$0xf]
      %v4796 = vld [vmem:[%s5 + $0x8] sm:$0xf]
      %v4797 = vld [vmem:[%s5 + $0xc] sm:$0xf]
      %v4798 = vld [vmem:[%s5 + $0x10] sm:$0xf]
      %v4799 = vld [vmem:[%s5 + $0x14] sm:$0xf]
      %v4800 = vld [vmem:[%s5 + $0x18] sm:$0xf]
      %v4801 = vld [vmem:[%s5 + $0x1c] sm:$0xf]
      %v4802 = vld [vmem:[%s5 + $0x20] sm:$0xf]
      %v4803 = vld [vmem:[%s5 + $0x24] sm:$0xf]
      %v4804 = vld [vmem:[%s5 + $0x28] sm:$0xf]
      %v4805 = vld [vmem:[%s5 + $0x2c] sm:$0xf]
      %v4806 = vld [vmem:[%s5 + $0x30] sm:$0xf]
      %v4807 = vld [vmem:[%s5 + $0x34] sm:$0xf]
      %v4808 = vld [vmem:[%s5 + $0x38] sm:$0xf]
      %v4809 = vld [vmem:[%s5 + $0x3c] sm:$0xf]
      %v4810 = vld [vmem:[%s5 + $0x40] sm:$0xf]
      %v4811 = vld [vmem:[%s5 + $0x44] sm:$0xf]
      %v4812 = vld [vmem:[%s5 + $0x48] sm:$0xf]
      %v4813 = vld [vmem:[%s5 + $0x4c] sm:$0xf]
      %v4814 = vld [vmem:[%s5 + $0x50] sm:$0xf]
      %v4815 = vld [vmem:[%s5 + $0x54] sm:$0xf]
      %v4816 = vld [vmem:[%s5 + $0x58] sm:$0xf]
      %v4817 = vld [vmem:[%s5 + $0x5c] sm:$0xf]
      %v4818 = vld [vmem:[%s5 + $0x60] sm:$0xf]
      %v4819 = vld [vmem:[%s5 + $0x64] sm:$0xf]
      %v4820 = vld [vmem:[%s5 + $0x68] sm:$0xf]
      %v4821 = vld [vmem:[%s5 + $0x6c] sm:$0xf]
      %v4822 = vld [vmem:[%s5 + $0x70] sm:$0xf]
      %v4823 = vld [vmem:[%s5 + $0x74] sm:$0xf]
      %v4824 = vld [vmem:[%s5 + $0x78] sm:$0xf]
      %v4825 = vld [vmem:[%s5 + $0x7c] sm:$0xf]
      %v4826 = vld [vmem:[%s5 + $0x80] sm:$0xf]
      %v4827 = vld [vmem:[%s5 + $0x84] sm:$0xf]
      %v4828 = vld [vmem:[%s5 + $0x88] sm:$0xf]
      %v4829 = vld [vmem:[%s5 + $0x8c] sm:$0xf]
      %v4830 = vld [vmem:[%s5 + $0x90] sm:$0xf]
      %v4831 = vld [vmem:[%s5 + $0x94] sm:$0xf]
      %v4832 = vld [vmem:[%s5 + $0x98] sm:$0xf]
      %v4833 = vld [vmem:[%s5 + $0x9c] sm:$0xf]
      %v4834 = vld [vmem:[%s5 + $0xa0] sm:$0xf]
      %v4835 = vld [vmem:[%s5 + $0xa4] sm:$0xf]
      %v4836 = vld [vmem:[%s5 + $0xa8] sm:$0xf]
      %v4837 = vld [vmem:[%s5 + $0xac] sm:$0xf]
      %v4838 = vld [vmem:[%s5 + $0xb0] sm:$0xf]
      %v4839 = vld [vmem:[%s5 + $0xb4] sm:$0xf]
      %v4840 = vld [vmem:[%s5 + $0xb8] sm:$0xf]
      %v4841 = vld [vmem:[%s5 + $0xbc] sm:$0xf]
      %v4842 = vld [vmem:[%s5 + $0xc0] sm:$0xf]
      %v4843 = vld [vmem:[%s5 + $0xc4] sm:$0xf]
      %v4844 = vld [vmem:[%s5 + $0xc8] sm:$0xf]
      %v4845 = vld [vmem:[%s5 + $0xcc] sm:$0xf]
      %v4846 = vld [vmem:[%s5 + $0xd0] sm:$0xf]
      %v4847 = vld [vmem:[%s5 + $0xd4] sm:$0xf]
      %v4848 = vld [vmem:[%s5 + $0xd8] sm:$0xf]
      %v4849 = vld [vmem:[%s5 + $0xdc] sm:$0xf]
      %v4850 = vld [vmem:[%s5 + $0xe0] sm:$0xf]
      %v4851 = vld [vmem:[%s5 + $0xe4] sm:$0xf]
      %v4852 = vld [vmem:[%s5 + $0xe8] sm:$0xf]
      %v4853 = vld [vmem:[%s5 + $0xec] sm:$0xf]
      %v4854 = vld [vmem:[%s5 + $0xf0] sm:$0xf]
      %v4855 = vld [vmem:[%s5 + $0xf4] sm:$0xf]
      %v4856 = vld [vmem:[%s5 + $0xf8] sm:$0xf]
      %v4857 = vld [vmem:[%s5 + $0xfc] sm:$0xf]
      %v4858 = vld [vmem:[%s6] sm:$0x1]
      %v4860 = vlaneseq
      %v4861 = vshrl.u32 %v4860, 7
      %v4862 = vsub.s32 0, %v4861
      %v4863 = vrot.slane %v4858, %v4862
      %v4929 = vunpack.c.l.b16 %v4794
      %v4930 = vunpack.c.l.b16 %v4795
      %v4931 = vunpack.c.l.b16 %v4796
      %v4932 = vunpack.c.l.b16 %v4797
      %v4933 = vunpack.c.l.b16 %v4798
      %v4934 = vunpack.c.l.b16 %v4799
      %v4935 = vunpack.c.l.b16 %v4800
      %v4936 = vunpack.c.l.b16 %v4801
      %v4937 = vunpack.c.l.b16 %v4802
      %v4938 = vunpack.c.l.b16 %v4803
      %v4939 = vunpack.c.l.b16 %v4804
      %v4940 = vunpack.c.l.b16 %v4805
      %v4941 = vunpack.c.l.b16 %v4806
      %v4942 = vunpack.c.l.b16 %v4807
      %v4943 = vunpack.c.l.b16 %v4808
      %v4944 = vunpack.c.l.b16 %v4809
      %v4945 = vunpack.c.l.b16 %v4810
      %v4946 = vunpack.c.l.b16 %v4811
      %v4947 = vunpack.c.l.b16 %v4812
      %v4948 = vunpack.c.l.b16 %v4813
      %v4949 = vunpack.c.l.b16 %v4814
      %v4950 = vunpack.c.l.b16 %v4815
      %v4951 = vunpack.c.l.b16 %v4816
      %v4952 = vunpack.c.l.b16 %v4817
      %v4953 = vunpack.c.l.b16 %v4818
      %v4954 = vunpack.c.l.b16 %v4819
      %v4955 = vunpack.c.l.b16 %v4820
      %v4956 = vunpack.c.l.b16 %v4821
      %v4957 = vunpack.c.l.b16 %v4822
      %v4958 = vunpack.c.l.b16 %v4823
      %v4959 = vunpack.c.l.b16 %v4824
      %v4960 = vunpack.c.l.b16 %v4825
      %v4961 = vunpack.c.l.b16 %v4826
      %v4962 = vunpack.c.l.b16 %v4827
      %v4963 = vunpack.c.l.b16 %v4828
      %v4964 = vunpack.c.l.b16 %v4829
      %v4965 = vunpack.c.l.b16 %v4830
      %v4966 = vunpack.c.l.b16 %v4831
      %v4967 = vunpack.c.l.b16 %v4832
      %v4968 = vunpack.c.l.b16 %v4833
      %v4969 = vunpack.c.l.b16 %v4834
      %v4970 = vunpack.c.l.b16 %v4835
      %v4971 = vunpack.c.l.b16 %v4836
      %v4972 = vunpack.c.l.b16 %v4837
      %v4973 = vunpack.c.l.b16 %v4838
      %v4974 = vunpack.c.l.b16 %v4839
      %v4975 = vunpack.c.l.b16 %v4840
      %v4976 = vunpack.c.l.b16 %v4841
      %v4977 = vunpack.c.l.b16 %v4842
      %v4978 = vunpack.c.l.b16 %v4843
      %v4979 = vunpack.c.l.b16 %v4844
      %v4980 = vunpack.c.l.b16 %v4845
      %v4981 = vunpack.c.l.b16 %v4846
      %v4982 = vunpack.c.l.b16 %v4847
      %v4983 = vunpack.c.l.b16 %v4848
      %v4984 = vunpack.c.l.b16 %v4849
      %v4985 = vunpack.c.l.b16 %v4850
      %v4986 = vunpack.c.l.b16 %v4851
      %v4987 = vunpack.c.l.b16 %v4852
      %v4988 = vunpack.c.l.b16 %v4853
      %v4989 = vunpack.c.l.b16 %v4854
      %v4990 = vunpack.c.l.b16 %v4855
      %v4991 = vunpack.c.l.b16 %v4856
      %v4992 = vunpack.c.l.b16 %v4857
      %v4993 = vpack.c.b16 %v4930, %v4929
      %v4994 = vpack.c.b16 %v4932, %v4931
      %v4995 = vpack.c.b16 %v4934, %v4933
      %v4996 = vpack.c.b16 %v4936, %v4935
      %v4997 = vpack.c.b16 %v4938, %v4937
      %v4998 = vpack.c.b16 %v4940, %v4939
      %v4999 = vpack.c.b16 %v4942, %v4941
      %v5000 = vpack.c.b16 %v4944, %v4943
      %v5001 = vpack.c.b16 %v4946, %v4945
      %v5002 = vpack.c.b16 %v4948, %v4947
      %v5003 = vpack.c.b16 %v4950, %v4949
      %v5004 = vpack.c.b16 %v4952, %v4951
      %v5005 = vpack.c.b16 %v4954, %v4953
      %v5006 = vpack.c.b16 %v4956, %v4955
      %v5007 = vpack.c.b16 %v4958, %v4957
      %v5008 = vpack.c.b16 %v4960, %v4959
      %v5009 = vpack.c.b16 %v4962, %v4961
      %v5010 = vpack.c.b16 %v4964, %v4963
      %v5011 = vpack.c.b16 %v4966, %v4965
      %v5012 = vpack.c.b16 %v4968, %v4967
      %v5013 = vpack.c.b16 %v4970, %v4969
      %v5014 = vpack.c.b16 %v4972, %v4971
      %v5015 = vpack.c.b16 %v4974, %v4973
      %v5016 = vpack.c.b16 %v4976, %v4975
      %v5017 = vpack.c.b16 %v4978, %v4977
      %v5018 = vpack.c.b16 %v4980, %v4979
      %v5019 = vpack.c.b16 %v4982, %v4981
      %v5020 = vpack.c.b16 %v4984, %v4983
      %v5021 = vpack.c.b16 %v4986, %v4985
      %v5022 = vpack.c.b16 %v4988, %v4987
      %v5023 = vpack.c.b16 %v4990, %v4989
      %v5024 = vpack.c.b16 %v4992, %v4991
      %5057 = vmatprep.subr.bf16.mxu0 0
      %5058 = vmatpush1.bf16.msra.mxu0 %v4993
      %5059 = vmatprep.subr.bf16.mxu0 0
      %5060 = vmatpush1.bf16.msra.mxu0 %v4994
      %5061 = vmatprep.subr.bf16.mxu0 0
      %5062 = vmatpush1.bf16.msra.mxu0 %v4995
      %5063 = vmatprep.subr.bf16.mxu0 0
      %5064 = vmatpush1.bf16.msra.mxu0 %v4996
      %5065 = vmatprep.subr.bf16.mxu0 0
      %5066 = vmatpush1.bf16.msra.mxu0 %v4997
      %5067 = vmatprep.subr.bf16.mxu0 0
      %5068 = vmatpush1.bf16.msra.mxu0 %v4998
      %5069 = vmatprep.subr.bf16.mxu0 0
      %5070 = vmatpush1.bf16.msra.mxu0 %v4999
      %5071 = vmatprep.subr.bf16.mxu0 0
      %5072 = vmatpush1.bf16.msra.mxu0 %v5000
      %5073 = vmatprep.subr.bf16.mxu0 0
      %5074 = vmatpush1.bf16.msra.mxu0 %v5001
      %5075 = vmatprep.subr.bf16.mxu0 0
      %5076 = vmatpush1.bf16.msra.mxu0 %v5002
      %5077 = vmatprep.subr.bf16.mxu0 0
      %5078 = vmatpush1.bf16.msra.mxu0 %v5003
      %5079 = vmatprep.subr.bf16.mxu0 0
      %5080 = vmatpush1.bf16.msra.mxu0 %v5004
      %5081 = vmatprep.subr.bf16.mxu0 0
      %5082 = vmatpush1.bf16.msra.mxu0 %v5005
      %5083 = vmatprep.subr.bf16.mxu0 0
      %5084 = vmatpush1.bf16.msra.mxu0 %v5006
      %5085 = vmatprep.subr.bf16.mxu0 0
      %5086 = vmatpush1.bf16.msra.mxu0 %v5007
      %5087 = vmatprep.subr.bf16.mxu0 0
      %5088 = vmatpush1.bf16.msra.mxu0 %v5008
      %5089 = vmatprep.mubr.bf16.mxu0 %v4791
      %5090 = vmatmul.mubr.bf16.gmra.mrb[0].mxu0 %v4790
      %v5091 = vpop.f32.mrb[0].mxu0
      %v5092 = vadd.f32 %v4863, %v5091
      %v5093 = vpop.f32.mrb[0].mxu0
      %v5094 = vpop.f32.mrb[0].mxu0
      %v5095 = vadd.f32 %v4863, %v5094
      %v5096 = vpop.f32.mrb[0].mxu0
      %5097 = vdwg.mxu0
      %5098 = vmatprep.subr.bf16.mxu0 0
      %5099 = vmatpush1.bf16.msra.mxu0 %v5009
      %5100 = vmatprep.subr.bf16.mxu0 0
      %5101 = vmatpush1.bf16.msra.mxu0 %v5010
      %5102 = vmatprep.subr.bf16.mxu0 0
      %5103 = vmatpush1.bf16.msra.mxu0 %v5011
      %5104 = vmatprep.subr.bf16.mxu0 0
      %5105 = vmatpush1.bf16.msra.mxu0 %v5012
      %5106 = vmatprep.subr.bf16.mxu0 0
      %5107 = vmatpush1.bf16.msra.mxu0 %v5013
      %5108 = vmatprep.subr.bf16.mxu0 0
      %5109 = vmatpush1.bf16.msra.mxu0 %v5014
      %5110 = vmatprep.subr.bf16.mxu0 0
      %5111 = vmatpush1.bf16.msra.mxu0 %v5015
      %5112 = vmatprep.subr.bf16.mxu0 0
      %5113 = vmatpush1.bf16.msra.mxu0 %v5016
      %5114 = vmatprep.subr.bf16.mxu0 0
      %5115 = vmatpush1.bf16.msra.mxu0 %v5017
      %5116 = vmatprep.subr.bf16.mxu0 0
      %5117 = vmatpush1.bf16.msra.mxu0 %v5018
      %5118 = vmatprep.subr.bf16.mxu0 0
      %5119 = vmatpush1.bf16.msra.mxu0 %v5019
      %5120 = vmatprep.subr.bf16.mxu0 0
      %5121 = vmatpush1.bf16.msra.mxu0 %v5020
      %5122 = vmatprep.subr.bf16.mxu0 0
      %5123 = vmatpush1.bf16.msra.mxu0 %v5021
      %5124 = vmatprep.subr.bf16.mxu0 0
      %5125 = vmatpush1.bf16.msra.mxu0 %v5022
      %5126 = vmatprep.subr.bf16.mxu0 0
      %5127 = vmatpush1.bf16.msra.mxu0 %v5023
      %5128 = vmatprep.subr.bf16.mxu0 0
      %5129 = vmatpush1.bf16.msra.mxu0 %v5024
      %5130 = vmatprep.mubr.bf16.mxu0 %v4793
      %5131 = vmatmul.mubr.bf16.gmra.mrb[0].mxu0 %v4792
      %v5132 = vpop.f32.mrb[0].mxu0
      %v5133 = vadd.f32 %v5092, %v5132
      %v5134 = vpop.f32.mrb[0].mxu0
      %v5135 = vpop.f32.mrb[0].mxu0
      %v5136 = vadd.f32 %v5095, %v5135
      %v5137 = vpop.f32.mrb[0].mxu0
      %5138 = vdwg.mxu0
      %5139 = vst [vmem:[%s283] sm:$0xff] %v5133
      %5140 = vst [vmem:[%s283 + $0x8] sm:$0xff] %v5136
      %s5141 = smul.u32 2, %s18
      %p5142 = scmp.lt.s32.totalorder %s5141, 3
      %s5143 = scalar_select %p5142, %s5141, 3
      %s5144 = smul.addr %s5143, 8
      %s5145 = scalar_lea.vmem %s7, %s5144
      // Predicated region
      $region49: #{forward.1} parent=47 // pred_check
        %p5146 = pneg %p188
      $region50: #{forward.1} parent=47 // pred_check_branch
        %5148 = sbr.rel (%p5146) target = $region52
      $region51: #{forward.1} parent=47 // pred_region
        %s5149 = smul.u32 2, %s18
      $region52: #{forward.1} parent=47 // pred_fallthru
        _
    $region48: #{forward.1} parent=5 // pred_fallthru
      _
    %p5150 = scmp.le.s32.totalorder 2, %s13
    // Predicated region
    $region53: #{forward.1} parent=5 // pred_check
      %p5151 = pneg %p5150
    $region54: #{forward.1} parent=5 // pred_check_branch
      %5153 = sbr.rel (%p5151) target = $region56
    $region55: #{forward.1} parent=5 // pred_region
      %s5154 = ssub.s32 %s13, 2
      // Predicated region
      $region57: #{forward.1} parent=55 // pred_check
        %p5155 = pneg %p194
      $region58: #{forward.1} parent=55 // pred_check_branch
        %5157 = sbr.rel (%p5155) target = $region60
      $region59: #{forward.1} parent=55 // pred_region
        %s5158 = smul.u32 2, %s19
        %p5159 = scmp.lt.s32.totalorder %s5158, 3
        %s5160 = scalar_select %p5159, %s5158, 3
        %s5161 = smul.addr %s5160, 8
        %s5162 = scalar_lea.vmem %s7, %s5161
      $region60: #{forward.1} parent=55 // pred_fallthru
        _
    $region56: #{forward.1} parent=5 // pred_fallthru
      _
  $region6: #{forward.1} parent=0 // loop_footer
    %s17 = sadd.s32 1, %s13
  $region7: #{forward.1} parent=0 // loop_footer_branch
    %12 = sbr.rel target = $region3
  $region8: #{forward.1} parent=0 // loop_exit
    _

</llo_original>
